<compile_context>
chip_gen: v7x
topology: tpu7x:2x2x1
jax: 0.10.0
libtpu: 0.0.40
codegen_flags: <defaults>
</compile_context>

<pallas_src>
import functools
import numpy as np
import jax
import jax.numpy as jnp
from jax.experimental import pallas as pl
from jax.experimental.pallas import tpu as pltpu

LN_EPS = 1e-6
NEG_INF = -1e9


# ----------------------------- kernel body ----------------------------------

def _layer_norm(x, gamma, beta):
    mean = jnp.mean(x, axis=-1, keepdims=True)
    xc = x - mean
    var = jnp.mean(xc * xc, axis=-1, keepdims=True)
    return xc * jax.lax.rsqrt(var + LN_EPS) * gamma + beta


def encoder_stack_kernel(emb_ref, pos_ref, bias_ref, ln0_g_ref, ln0_b_ref,
                         wqkv_ref, bqkv_ref, wo_ref, bo_ref,
                         ln1_g_ref, ln1_b_ref,
                         w1_ref, b1_ref, w2_ref, b2_ref,
                         ln2_g_ref, ln2_b_ref,
                         o_ref, *, b_tile, L, n_head, d_k, d_v, emb_scale):
    layer = pl.program_id(1)          # grid = (batch_tiles, n_layers)
    H = n_head
    BLt = b_tile * L
    D = emb_ref.shape[-1]
    h_dk = H * d_k

    # Layer-0 prologue: (emb * scale) + pos-enc, dropout(identity), LayerNorm.
    # TODO(synk): dropout(p=0.1) is identity here (eval-mode semantics).
    @pl.when(layer == 0)
    def _():
        x3 = emb_ref[...].reshape(b_tile, L, D) * emb_scale + pos_ref[...][None, :, :]
        o_ref[...] = _layer_norm(x3.reshape(BLt, D), ln0_g_ref[...], ln0_b_ref[...])

    x = o_ref[...]                    # (BLt, D) f32, VMEM-resident across layers

    # ---------------- multi-head self-attention sublayer ----------------
    # Fused QKV projection: (BLt, D) @ (D, 2*H*dk + H*dv), f32 accumulation.
    qkv = jnp.dot(x.astype(jnp.bfloat16), wqkv_ref[0],
                  preferred_element_type=jnp.float32) + bqkv_ref[0]

    def heads(mat, col0, d):
        # Head-major batched tensor (H*b_tile, L, d): static lane slices stacked
        # along a new leading (major) dim -- single relayout, no per-head loops
        # in the compute below.
        return jnp.concatenate(
            [mat[:, col0 + h * d: col0 + (h + 1) * d].reshape(b_tile, L, d)
             for h in range(H)], axis=0).astype(jnp.bfloat16)

    q = heads(qkv, 0, d_k)            # (H*b_tile, L, dk)
    k = heads(qkv, h_dk, d_k)
    v = heads(qkv, 2 * h_dk, d_v)

    inv_temp = 1.0 / float(np.sqrt(d_k))
    # One batched MXU contraction for all heads.
    s = jnp.einsum('gld,gmd->glm', q, k,
                   preferred_element_type=jnp.float32)          # (H*b, L, L)
    # Additive key-mask bias (precomputed in wrapper), added once per layer.
    s = s.reshape(H, b_tile, L, L) * inv_temp + bias_ref[...][None, :, :, :]
    s = s - jnp.max(s, axis=-1, keepdims=True)                  # stable softmax
    p = jnp.exp(s)
    p = p * pl.reciprocal(jnp.sum(p, axis=-1, keepdims=True), approx=True)
    p = p.reshape(H * b_tile, L, L).astype(jnp.bfloat16)
    ctx = jnp.einsum('glm,gmd->gld', p, v,
                     preferred_element_type=jnp.float32)        # (H*b, L, dv)
    # Lane-dense concat of all heads -> single K = H*dv Wo matmul.
    ctx = jnp.concatenate(
        [ctx[h * b_tile:(h + 1) * b_tile].reshape(BLt, d_v) for h in range(H)],
        axis=-1)                                                # (BLt, H*dv)
    attn = jnp.dot(ctx.astype(jnp.bfloat16), wo_ref[0],
                   preferred_element_type=jnp.float32) + bo_ref[0]
    x = _layer_norm(x + attn, ln1_g_ref[0], ln1_b_ref[0])       # residual + LN

    # ---------------- position-wise feed-forward sublayer ----------------
    h1 = jnp.dot(x.astype(jnp.bfloat16), w1_ref[0],
                 preferred_element_type=jnp.float32) + b1_ref[0]
    h1 = jnp.maximum(h1, 0.0)                                   # ReLU
    y = jnp.dot(h1.astype(jnp.bfloat16), w2_ref[0],
                preferred_element_type=jnp.float32) + b2_ref[0]
    x = _layer_norm(x + y, ln2_g_ref[0], ln2_b_ref[0])          # residual + LN

    o_ref[...] = x


# ----------------------------- pallas_call wrapper ---------------------------

def _vmem_budget_bytes(BLt, D, d_inner, n_head, d_k, d_v, L, b_tile, n_qkv):
    f32, bf16 = 4, 2
    resident = 2 * BLt * D * f32                                   # out block + writeback
    inputs = 2 * (BLt * D + L * D + b_tile * L + 2 * D) * f32      # emb/pos/bias/ln0
    w_layer = (D * n_qkv + n_head * d_v * D + 2 * D * d_inner) * bf16 \
              + (n_qkv + 6 * D + d_inner) * f32
    tmp = (BLt * n_qkv + 2 * b_tile * n_head * L * L
           + 2 * BLt * n_head * d_v + BLt * d_inner) * f32         # qkv/scores/ctx/h1
    return resident + inputs + 2 * w_layer + tmp                   # 2x: double-buffering


def run_encoder_stack(emb, pos, bias, ln0_g, ln0_b, stacked, *, B, L, n_head, d_k, d_v,
                      b_tile=None, emb_scale=1.0):
    BL, D = emb.shape
    n_layers = stacked["wqkv"].shape[0]
    b_tile = B if b_tile is None else b_tile
    assert B % b_tile == 0, "b_tile must divide batch"
    num_bt = B // b_tile
    BLt = b_tile * L
    if num_bt > 1:
        assert BLt % 8 == 0 and D % 128 == 0, "row tiles must be (8,128)-aligned"

    def const_spec(shape):
        nd = len(shape)
        return pl.BlockSpec(shape, lambda bt, l, _nd=nd: (0,) * _nd)

    def per_layer_spec(shape):
        return pl.BlockSpec((1,) + tuple(shape[1:]), lambda bt, l: (l, 0, 0))

    keys = ("wqkv", "bqkv", "wo", "bo", "ln1_g", "ln1_b",
            "w1", "b1", "w2", "b2", "ln2_g", "ln2_b")
    layer_args = [stacked[k] for k in keys]

    in_specs = [
        pl.BlockSpec((BLt, D), lambda bt, l: (bt, 0)),            # embeddings (batch-tiled)
        const_spec(pos.shape),                                    # positional table slice
        pl.BlockSpec((b_tile, 1, L), lambda bt, l: (bt, 0, 0)),   # additive mask bias
        const_spec(ln0_g.shape), const_spec(ln0_b.shape),
    ] + [per_layer_spec(a.shape) for a in layer_args]
    # Constant block index along the layer axis -> activation stays resident in VMEM.
    out_spec = pl.BlockSpec((BLt, D), lambda bt, l: (bt, 0))

    kernel = functools.partial(encoder_stack_kernel, b_tile=b_tile, L=L,
                               n_head=n_head, d_k=d_k, d_v=d_v, emb_scale=emb_scale)

    n_qkv = 2 * n_head * d_k + n_head * d_v
    d_inner = stacked["w1"].shape[-1]
    budget = _vmem_budget_bytes(BLt, D, d_inner, n_head, d_k, d_v, L, b_tile, n_qkv)
    vmem_limit = int(min(max(4 * budget, 32 * 1024 * 1024), 48 * 1024 * 1024))

    return pl.pallas_call(
        kernel,
        out_shape=jax.ShapeDtypeStruct((BL, D), jnp.float32),
        grid=(num_bt, n_layers),
        in_specs=in_specs,
        out_specs=out_spec,
        compiler_params=pltpu.CompilerParams(
            # batch tiles are independent (-> megacore on v7x); layer axis carries
            # the resident activation.
            dimension_semantics=("parallel", "arbitrary"),
            vmem_limit_bytes=vmem_limit),
    )(emb, pos, bias, ln0_g, ln0_b, *layer_args)


# ----------------------------- parameters / buffers -------------------------

def sinusoid_table(n_position, d_hid):
    pos = np.arange(n_position, dtype=np.float64)[:, None]
    i = np.arange(d_hid)[None, :]
    angle = pos / np.power(10000.0, 2.0 * (i // 2) / d_hid)
    # Reference code applies np.sin to BOTH even and odd columns (quirk preserved).
    return jnp.asarray(np.sin(angle), jnp.float32)            # (n_position, d_hid)


def init_params(key, *, n_src_vocab, d_word_vec, n_layers, n_head, d_k, d_v,
                d_model, d_inner, pad_idx, n_position):
    keys = jax.random.split(key, 1 + n_layers)
    emb = jax.random.normal(keys[0], (n_src_vocab, d_word_vec), jnp.float32) * 0.1
    emb = emb.at[pad_idx].set(0.0)               # nn.Embedding padding_idx row = 0

    def lin(k, fi, fo):
        return jax.random.normal(k, (fi, fo), jnp.float32) * (1.0 / np.sqrt(fi))

    per_layer = {k: [] for k in ("wqkv", "bqkv", "wo", "bo", "ln1_g", "ln1_b",
                                 "w1", "b1", "w2", "b2", "ln2_g", "ln2_b")}
    for l in range(n_layers):
        ks = jax.random.split(keys[1 + l], 10)
        wq = lin(ks[0], d_model, n_head * d_k)
        wk = lin(ks[2], d_model, n_head * d_k)
        wv = lin(ks[4], d_model, n_head * d_v)
        bq = jax.random.normal(ks[1], (1, n_head * d_k), jnp.float32) * 0.01
        bk = jax.random.normal(ks[3], (1, n_head * d_k), jnp.float32) * 0.01
        bv = jax.random.normal(ks[5], (1, n_head * d_v), jnp.float32) * 0.01
        per_layer["wqkv"].append(jnp.concatenate([wq, wk, wv], axis=-1))
        per_layer["bqkv"].append(jnp.concatenate([bq, bk, bv], axis=-1))
        per_layer["wo"].append(lin(ks[6], n_head * d_v, d_model))
        per_layer["bo"].append(jnp.zeros((1, d_model), jnp.float32))
        per_layer["ln1_g"].append(jnp.ones((1, d_model), jnp.float32))
        per_layer["ln1_b"].append(jnp.zeros((1, d_model), jnp.float32))
        per_layer["w1"].append(lin(ks[7], d_model, d_inner))
        per_layer["b1"].append(jax.random.normal(ks[8], (1, d_inner), jnp.float32) * 0.01)
        per_layer["w2"].append(lin(ks[9], d_inner, d_model))
        per_layer["b2"].append(jnp.zeros((1, d_model), jnp.float32))
        per_layer["ln2_g"].append(jnp.ones((1, d_model), jnp.float32))
        per_layer["ln2_b"].append(jnp.zeros((1, d_model), jnp.float32))

    bf16_keys = ("wqkv", "wo", "w1", "w2")       # MXU operands stored bf16
    stacked = {k: jnp.stack(v).astype(jnp.bfloat16 if k in bf16_keys else jnp.float32)
               for k, v in per_layer.items()}
    return dict(
        emb=emb,
        pos_table=sinusoid_table(n_position, d_model),
        ln_g=jnp.ones((1, d_model), jnp.float32),
        ln_b=jnp.zeros((1, d_model), jnp.float32),
        layers=stacked,
    )


# ----------------------------- encoder forward ------------------------------

def encoder_forward(params, src_seq, src_mask, *, n_head, d_k, d_v, d_model,
                    scale_emb=False, b_tile=None):
    B, L = src_seq.shape
    # Embedding gather stays in XLA (glue); everything downstream is fused in-kernel.
    emb = jnp.take(params["emb"], src_seq.reshape(-1), axis=0)         # (B*L, D)
    pos = params["pos_table"][:L]                                      # (L, D)
    # Additive attention-mask bias (tiny, computed once): masked_fill(mask==0, -1e9).
    bias = jnp.where(src_mask[:, None, :] == 0, NEG_INF, 0.0).astype(jnp.float32)
    # NOTE: reference code literally multiplies by d_model * 0.5 (not ** 0.5).
    scale = float(d_model) * 0.5 if scale_emb else 1.0
    out = run_encoder_stack(emb, pos, bias, params["ln_g"], params["ln_b"],
                            params["layers"], B=B, L=L,
                            n_head=n_head, d_k=d_k, d_v=d_v,
                            b_tile=b_tile, emb_scale=scale)
    return (out.reshape(B, L, d_model),)                               # matches (enc_output,)


# ----------------------------------- main ------------------------------------

if __name__ == "__main__":
    # Shapes chosen so every MXU/VPU op is lane/row-dense:
    #   d_model = 128 lanes, B*L per batch-tile = 2*64 = 128 MXU rows,
    #   H*d_k = H*d_v = 128 (fused head concat is a full vreg of lanes).
    n_src_vocab, d_model, d_inner = 16, 128, 256
    n_layers, n_head, d_k, d_v = 2, 4, 32, 32
    pad_idx, n_position = 0, 200
    B, L = 4, 64
    b_tile = 2          # 2 independent batch tiles -> "parallel" axis (both TCs on v7x)

    key = jax.random.PRNGKey(0)
    pkey, skey = jax.random.split(key)
    params = init_params(pkey, n_src_vocab=n_src_vocab, d_word_vec=d_model,
                         n_layers=n_layers, n_head=n_head, d_k=d_k, d_v=d_v,
                         d_model=d_model, d_inner=d_inner, pad_idx=pad_idx,
                         n_position=n_position)

    src_seq = jax.random.randint(skey, (B, L), 1, n_src_vocab, dtype=jnp.int32)
    src_seq = src_seq.at[0, L - 3:].set(pad_idx)               # some padding tokens
    src_seq = src_seq.at[B - 1, L - 8:].set(pad_idx)
    src_mask = (src_seq != pad_idx).astype(jnp.int32)          # (B, L)

    (enc_out,) = encoder_forward(params, src_seq, src_mask,
                                 n_head=n_head, d_k=d_k, d_v=d_v,
                                 d_model=d_model, scale_emb=False, b_tile=b_tile)
    enc_out = jax.block_until_ready(enc_out)
    assert enc_out.shape == (B, L, d_model)
    assert bool(jnp.all(jnp.isfinite(enc_out)))
    print("KERNEL_OK")
</pallas_src>

<mosaic_0001>
module attributes {stable_mosaic.version = 11 : i64} {
  func.func @encoder_stack_kernel(%arg0: i32, %arg1: i32, %arg2: memref<128x128xf32, #tpu.memory_space<vmem>>, %arg3: memref<64x128xf32, #tpu.memory_space<vmem>>, %arg4: memref<2x1x64xf32, #tpu.memory_space<vmem>>, %arg5: memref<1x128xf32, #tpu.memory_space<vmem>>, %arg6: memref<1x128xf32, #tpu.memory_space<vmem>>, %arg7: memref<1x128x384xbf16, #tpu.memory_space<vmem>>, %arg8: memref<1x1x384xf32, #tpu.memory_space<vmem>>, %arg9: memref<1x128x128xbf16, #tpu.memory_space<vmem>>, %arg10: memref<1x1x128xf32, #tpu.memory_space<vmem>>, %arg11: memref<1x1x128xf32, #tpu.memory_space<vmem>>, %arg12: memref<1x1x128xf32, #tpu.memory_space<vmem>>, %arg13: memref<1x128x256xbf16, #tpu.memory_space<vmem>>, %arg14: memref<1x1x256xf32, #tpu.memory_space<vmem>>, %arg15: memref<1x256x128xbf16, #tpu.memory_space<vmem>>, %arg16: memref<1x1x128xf32, #tpu.memory_space<vmem>>, %arg17: memref<1x1x128xf32, #tpu.memory_space<vmem>>, %arg18: memref<1x1x128xf32, #tpu.memory_space<vmem>>, %arg19: memref<128x128xf32, #tpu.memory_space<vmem>>) attributes {dimension_semantics = [#tpu.dimension_semantics<parallel>, #tpu.dimension_semantics<arbitrary>], iteration_bounds = array<i64: 2, 2>, scalar_prefetch = 0 : i64, scratch_operands = 0 : i64, tpu.core_type = #tpu.core_type<tc>, window_params = [{transform_indices = @transform_0, window_bounds = array<i64: 128, 128>}, {pipeline_mode = #tpu.pipeline_mode<synchronous>, transform_indices = @transform_1, window_bounds = array<i64: 64, 128>}, {transform_indices = @transform_2, window_bounds = array<i64: 2, 1, 64>}, {pipeline_mode = #tpu.pipeline_mode<synchronous>, transform_indices = @transform_3, window_bounds = array<i64: 1, 128>}, {pipeline_mode = #tpu.pipeline_mode<synchronous>, transform_indices = @transform_4, window_bounds = array<i64: 1, 128>}, {transform_indices = @transform_5, window_bounds = array<i64: 1, 128, 384>}, {transform_indices = @transform_6, window_bounds = array<i64: 1, 1, 384>}, {transform_indices = @transform_7, window_bounds = array<i64: 1, 128, 128>}, {transform_indices = @transform_8, window_bounds = array<i64: 1, 1, 128>}, {transform_indices = @transform_9, window_bounds = array<i64: 1, 1, 128>}, {transform_indices = @transform_10, window_bounds = array<i64: 1, 1, 128>}, {transform_indices = @transform_11, window_bounds = array<i64: 1, 128, 256>}, {transform_indices = @transform_12, window_bounds = array<i64: 1, 1, 256>}, {transform_indices = @transform_13, window_bounds = array<i64: 1, 256, 128>}, {transform_indices = @transform_14, window_bounds = array<i64: 1, 1, 128>}, {transform_indices = @transform_15, window_bounds = array<i64: 1, 1, 128>}, {transform_indices = @transform_16, window_bounds = array<i64: 1, 1, 128>}, {transform_indices = @transform_17, window_bounds = array<i64: 128, 128>}]} {
    %c0_i32 = arith.constant 0 : i32
    %0 = arith.cmpi eq, %arg1, %c0_i32 : i32
    %1 = arith.extui %0 : i1 to i32
    %c0_i32_0 = arith.constant 0 : i32
    %2 = arith.cmpi ne, %1, %c0_i32_0 : i32
    scf.if %2 {
      %c0_62 = arith.constant 0 : index
      %c0_63 = arith.constant 0 : index
      %149 = vector.load %arg2[%c0_62, %c0_63] : memref<128x128xf32, #tpu.memory_space<vmem>>, vector<128x128xf32>
      %150 = vector.shape_cast %149 : vector<128x128xf32> to vector<2x64x128xf32>
      %cst_64 = arith.constant 1.000000e+00 : f32
      %151 = vector.broadcast %cst_64 : f32 to vector<2x64x128xf32>
      %152 = arith.mulf %150, %151 : vector<2x64x128xf32>
      %c0_65 = arith.constant 0 : index
      %c0_66 = arith.constant 0 : index
      %153 = vector.load %arg3[%c0_65, %c0_66] : memref<64x128xf32, #tpu.memory_space<vmem>>, vector<64x128xf32>
      %154 = vector.shape_cast %153 : vector<64x128xf32> to vector<1x64x128xf32>
      %155 = vector.broadcast %154 : vector<1x64x128xf32> to vector<2x64x128xf32>
      %156 = arith.addf %152, %155 : vector<2x64x128xf32>
      %157 = vector.shape_cast %156 : vector<2x64x128xf32> to vector<128x128xf32>
      %c0_67 = arith.constant 0 : index
      %c0_68 = arith.constant 0 : index
      %158 = vector.load %arg5[%c0_67, %c0_68] : memref<1x128xf32, #tpu.memory_space<vmem>>, vector<1x128xf32>
      %c0_69 = arith.constant 0 : index
      %c0_70 = arith.constant 0 : index
      %159 = vector.load %arg6[%c0_69, %c0_70] : memref<1x128xf32, #tpu.memory_space<vmem>>, vector<1x128xf32>
      %cst_71 = arith.constant dense<0.000000e+00> : vector<128xf32>
      %160 = vector.multi_reduction <add>, %157, %cst_71 [1] : vector<128x128xf32> to vector<128xf32>
      %161 = vector.shape_cast %160 : vector<128xf32> to vector<128x1xf32>
      %cst_72 = arith.constant 1.280000e+02 : f32
      %162 = vector.broadcast %cst_72 : f32 to vector<128x1xf32>
      %163 = arith.divf %161, %162 : vector<128x1xf32>
      %164 = vector.broadcast %163 : vector<128x1xf32> to vector<128x128xf32>
      %165 = arith.subf %157, %164 : vector<128x128xf32>
      %166 = arith.mulf %165, %165 : vector<128x128xf32>
      %cst_73 = arith.constant dense<0.000000e+00> : vector<128xf32>
      %167 = vector.multi_reduction <add>, %166, %cst_73 [1] : vector<128x128xf32> to vector<128xf32>
      %168 = vector.shape_cast %167 : vector<128xf32> to vector<128x1xf32>
      %cst_74 = arith.constant 1.280000e+02 : f32
      %169 = vector.broadcast %cst_74 : f32 to vector<128x1xf32>
      %170 = arith.divf %168, %169 : vector<128x1xf32>
      %cst_75 = arith.constant 9.99999997E-7 : f32
      %171 = vector.broadcast %cst_75 : f32 to vector<128x1xf32>
      %172 = arith.addf %170, %171 : vector<128x1xf32>
      %173 = math.rsqrt %172 : vector<128x1xf32>
      %174 = vector.broadcast %173 : vector<128x1xf32> to vector<128x128xf32>
      %175 = arith.mulf %165, %174 : vector<128x128xf32>
      %176 = vector.broadcast %158 : vector<1x128xf32> to vector<128x128xf32>
      %177 = arith.mulf %175, %176 : vector<128x128xf32>
      %178 = vector.broadcast %159 : vector<1x128xf32> to vector<128x128xf32>
      %179 = arith.addf %177, %178 : vector<128x128xf32>
      %c0_76 = arith.constant 0 : index
      %c0_77 = arith.constant 0 : index
      %180 = vector.load %arg19[%c0_76, %c0_77] : memref<128x128xf32, #tpu.memory_space<vmem>>, vector<128x128xf32>
      tpu.vector_store %arg19[%c0_76, %c0_77], %179 {strides = array<i32>} : memref<128x128xf32, #tpu.memory_space<vmem>>, vector<128x128xf32>,
    } else {
    }
    %c0 = arith.constant 0 : index
    %c0_1 = arith.constant 0 : index
    %3 = vector.load %arg19[%c0, %c0_1] : memref<128x128xf32, #tpu.memory_space<vmem>>, vector<128x128xf32>
    %4 = arith.truncf %3 : vector<128x128xf32> to vector<128x128xbf16>
    %c0_2 = arith.constant 0 : index
    %c0_3 = arith.constant 0 : index
    %c0_4 = arith.constant 0 : index
    %5 = vector.load %arg7[%c0_2, %c0_3, %c0_4] : memref<1x128x384xbf16, #tpu.memory_space<vmem>>, vector<1x128x384xbf16>
    %6 = vector.shape_cast %5 : vector<1x128x384xbf16> to vector<128x384xbf16>
    %cst = arith.constant dense<0.000000e+00> : vector<128x384xf32>
    %7 = tpu.matmul %4, %6, %cst {dimension_numbers = #tpu.dot_dimension_numbers<[1], [0], [0], [1], [0, 0, 1, 1], [], []>} : vector<128x128xbf16>, vector<128x384xbf16>, vector<128x384xf32> -> vector<128x384xf32>
    %c0_5 = arith.constant 0 : index
    %c0_6 = arith.constant 0 : index
    %c0_7 = arith.constant 0 : index
    %8 = vector.load %arg8[%c0_5, %c0_6, %c0_7] : memref<1x1x384xf32, #tpu.memory_space<vmem>>, vector<1x1x384xf32>
    %9 = vector.shape_cast %8 : vector<1x1x384xf32> to vector<1x384xf32>
    %10 = vector.broadcast %9 : vector<1x384xf32> to vector<128x384xf32>
    %11 = arith.addf %7, %10 : vector<128x384xf32>
    %12 = vector.extract_strided_slice %11 {offsets = [0, 0], sizes = [128, 32], strides = [1, 1]} : vector<128x384xf32> to vector<128x32xf32>
    %13 = vector.shape_cast %12 : vector<128x32xf32> to vector<2x64x32xf32>
    %14 = vector.extract_strided_slice %11 {offsets = [0, 32], sizes = [128, 32], strides = [1, 1]} : vector<128x384xf32> to vector<128x32xf32>
    %15 = vector.shape_cast %14 : vector<128x32xf32> to vector<2x64x32xf32>
    %16 = vector.extract_strided_slice %11 {offsets = [0, 64], sizes = [128, 32], strides = [1, 1]} : vector<128x384xf32> to vector<128x32xf32>
    %17 = vector.shape_cast %16 : vector<128x32xf32> to vector<2x64x32xf32>
    %18 = vector.extract_strided_slice %11 {offsets = [0, 96], sizes = [128, 32], strides = [1, 1]} : vector<128x384xf32> to vector<128x32xf32>
    %19 = vector.shape_cast %18 : vector<128x32xf32> to vector<2x64x32xf32>
    %20 = tpu.concatenate %13, %15, %17, %19 in 0 : vector<2x64x32xf32>, vector<2x64x32xf32>, vector<2x64x32xf32>, vector<2x64x32xf32> -> vector<8x64x32xf32>
    %21 = arith.truncf %20 : vector<8x64x32xf32> to vector<8x64x32xbf16>
    %22 = vector.extract_strided_slice %11 {offsets = [0, 128], sizes = [128, 32], strides = [1, 1]} : vector<128x384xf32> to vector<128x32xf32>
    %23 = vector.shape_cast %22 : vector<128x32xf32> to vector<2x64x32xf32>
    %24 = vector.extract_strided_slice %11 {offsets = [0, 160], sizes = [128, 32], strides = [1, 1]} : vector<128x384xf32> to vector<128x32xf32>
    %25 = vector.shape_cast %24 : vector<128x32xf32> to vector<2x64x32xf32>
    %26 = vector.extract_strided_slice %11 {offsets = [0, 192], sizes = [128, 32], strides = [1, 1]} : vector<128x384xf32> to vector<128x32xf32>
    %27 = vector.shape_cast %26 : vector<128x32xf32> to vector<2x64x32xf32>
    %28 = vector.extract_strided_slice %11 {offsets = [0, 224], sizes = [128, 32], strides = [1, 1]} : vector<128x384xf32> to vector<128x32xf32>
    %29 = vector.shape_cast %28 : vector<128x32xf32> to vector<2x64x32xf32>
    %30 = tpu.concatenate %23, %25, %27, %29 in 0 : vector<2x64x32xf32>, vector<2x64x32xf32>, vector<2x64x32xf32>, vector<2x64x32xf32> -> vector<8x64x32xf32>
    %31 = arith.truncf %30 : vector<8x64x32xf32> to vector<8x64x32xbf16>
    %32 = vector.extract_strided_slice %11 {offsets = [0, 256], sizes = [128, 32], strides = [1, 1]} : vector<128x384xf32> to vector<128x32xf32>
    %33 = vector.shape_cast %32 : vector<128x32xf32> to vector<2x64x32xf32>
    %34 = vector.extract_strided_slice %11 {offsets = [0, 288], sizes = [128, 32], strides = [1, 1]} : vector<128x384xf32> to vector<128x32xf32>
    %35 = vector.shape_cast %34 : vector<128x32xf32> to vector<2x64x32xf32>
    %36 = vector.extract_strided_slice %11 {offsets = [0, 320], sizes = [128, 32], strides = [1, 1]} : vector<128x384xf32> to vector<128x32xf32>
    %37 = vector.shape_cast %36 : vector<128x32xf32> to vector<2x64x32xf32>
    %38 = vector.extract_strided_slice %11 {offsets = [0, 352], sizes = [128, 32], strides = [1, 1]} : vector<128x384xf32> to vector<128x32xf32>
    %39 = vector.shape_cast %38 : vector<128x32xf32> to vector<2x64x32xf32>
    %40 = tpu.concatenate %33, %35, %37, %39 in 0 : vector<2x64x32xf32>, vector<2x64x32xf32>, vector<2x64x32xf32>, vector<2x64x32xf32> -> vector<8x64x32xf32>
    %41 = arith.truncf %40 : vector<8x64x32xf32> to vector<8x64x32xbf16>
    "tpu.trace_start"() <{level = 10 : i32, message = "gld,gmd->glm"}> : () -> ()
    %cst_8 = arith.constant dense<0.000000e+00> : vector<8x64x64xf32>
    %42 = tpu.matmul %21, %31, %cst_8 {dimension_numbers = #tpu.dot_dimension_numbers<[2], [2], [1], [1], [0, 0, 0, 1, 1, 1], [0], [0]>} : vector<8x64x32xbf16>, vector<8x64x32xbf16>, vector<8x64x64xf32> -> vector<8x64x64xf32>
    "tpu.trace_stop"() : () -> ()
    %43 = vector.shape_cast %42 : vector<8x64x64xf32> to vector<4x2x64x64xf32>
    %cst_9 = arith.constant 0.176776692 : f32
    %44 = vector.broadcast %cst_9 : f32 to vector<4x2x64x64xf32>
    %45 = arith.mulf %43, %44 : vector<4x2x64x64xf32>
    %c0_10 = arith.constant 0 : index
    %c0_11 = arith.constant 0 : index
    %c0_12 = arith.constant 0 : index
    %46 = vector.load %arg4[%c0_10, %c0_11, %c0_12] : memref<2x1x64xf32, #tpu.memory_space<vmem>>, vector<2x1x64xf32>
    %47 = vector.shape_cast %46 : vector<2x1x64xf32> to vector<1x2x1x64xf32>
    %48 = vector.broadcast %47 : vector<1x2x1x64xf32> to vector<4x2x64x64xf32>
    %49 = arith.addf %45, %48 : vector<4x2x64x64xf32>
    %cst_13 = arith.constant dense<0xFF800000> : vector<4x2x64xf32>
    %50 = vector.multi_reduction <maximumf>, %49, %cst_13 [3] : vector<4x2x64x64xf32> to vector<4x2x64xf32>
    %51 = vector.shape_cast %50 : vector<4x2x64xf32> to vector<4x2x64x1xf32>
    %52 = vector.broadcast %51 : vector<4x2x64x1xf32> to vector<4x2x64x64xf32>
    %53 = arith.subf %49, %52 : vector<4x2x64x64xf32>
    %54 = math.exp %53 : vector<4x2x64x64xf32>
    %cst_14 = arith.constant dense<0.000000e+00> : vector<4x2x64xf32>
    %55 = vector.multi_reduction <add>, %54, %cst_14 [3] : vector<4x2x64x64xf32> to vector<4x2x64xf32>
    %56 = vector.shape_cast %55 : vector<4x2x64xf32> to vector<4x2x64x1xf32>
    %57 = tpu.reciprocal %56 {approx = true} : vector<4x2x64x1xf32> -> vector<4x2x64x1xf32>
    %58 = vector.broadcast %57 : vector<4x2x64x1xf32> to vector<4x2x64x64xf32>
    %59 = arith.mulf %54, %58 : vector<4x2x64x64xf32>
    %60 = vector.shape_cast %59 : vector<4x2x64x64xf32> to vector<8x64x64xf32>
    %61 = arith.truncf %60 : vector<8x64x64xf32> to vector<8x64x64xbf16>
    "tpu.trace_start"() <{level = 10 : i32, message = "glm,gmd->gld"}> : () -> ()
    %cst_15 = arith.constant dense<0.000000e+00> : vector<8x64x32xf32>
    %62 = tpu.matmul %61, %41, %cst_15 {dimension_numbers = #tpu.dot_dimension_numbers<[2], [1], [1], [2], [0, 0, 0, 1, 1, 2], [0], [0]>} : vector<8x64x64xbf16>, vector<8x64x32xbf16>, vector<8x64x32xf32> -> vector<8x64x32xf32>
    "tpu.trace_stop"() : () -> ()
    %63 = vector.extract_strided_slice %62 {offsets = [0, 0, 0], sizes = [2, 64, 32], strides = [1, 1, 1]} : vector<8x64x32xf32> to vector<2x64x32xf32>
    %64 = vector.shape_cast %63 : vector<2x64x32xf32> to vector<128x32xf32>
    %65 = vector.extract_strided_slice %62 {offsets = [2, 0, 0], sizes = [2, 64, 32], strides = [1, 1, 1]} : vector<8x64x32xf32> to vector<2x64x32xf32>
    %66 = vector.shape_cast %65 : vector<2x64x32xf32> to vector<128x32xf32>
    %67 = vector.extract_strided_slice %62 {offsets = [4, 0, 0], sizes = [2, 64, 32], strides = [1, 1, 1]} : vector<8x64x32xf32> to vector<2x64x32xf32>
    %68 = vector.shape_cast %67 : vector<2x64x32xf32> to vector<128x32xf32>
    %69 = vector.extract_strided_slice %62 {offsets = [6, 0, 0], sizes = [2, 64, 32], strides = [1, 1, 1]} : vector<8x64x32xf32> to vector<2x64x32xf32>
    %70 = vector.shape_cast %69 : vector<2x64x32xf32> to vector<128x32xf32>
    %71 = tpu.concatenate %64, %66, %68, %70 in 1 : vector<128x32xf32>, vector<128x32xf32>, vector<128x32xf32>, vector<128x32xf32> -> vector<128x128xf32>
    %72 = arith.truncf %71 : vector<128x128xf32> to vector<128x128xbf16>
    %c0_16 = arith.constant 0 : index
    %c0_17 = arith.constant 0 : index
    %c0_18 = arith.constant 0 : index
    %73 = vector.load %arg9[%c0_16, %c0_17, %c0_18] : memref<1x128x128xbf16, #tpu.memory_space<vmem>>, vector<1x128x128xbf16>
    %74 = vector.shape_cast %73 : vector<1x128x128xbf16> to vector<128x128xbf16>
    %cst_19 = arith.constant dense<0.000000e+00> : vector<128x128xf32>
    %75 = tpu.matmul %72, %74, %cst_19 {dimension_numbers = #tpu.dot_dimension_numbers<[1], [0], [0], [1], [0, 0, 1, 1], [], []>} : vector<128x128xbf16>, vector<128x128xbf16>, vector<128x128xf32> -> vector<128x128xf32>
    %c0_20 = arith.constant 0 : index
    %c0_21 = arith.constant 0 : index
    %c0_22 = arith.constant 0 : index
    %76 = vector.load %arg10[%c0_20, %c0_21, %c0_22] : memref<1x1x128xf32, #tpu.memory_space<vmem>>, vector<1x1x128xf32>
    %77 = vector.shape_cast %76 : vector<1x1x128xf32> to vector<1x128xf32>
    %78 = vector.broadcast %77 : vector<1x128xf32> to vector<128x128xf32>
    %79 = arith.addf %75, %78 : vector<128x128xf32>
    %80 = arith.addf %3, %79 : vector<128x128xf32>
    %c0_23 = arith.constant 0 : index
    %c0_24 = arith.constant 0 : index
    %c0_25 = arith.constant 0 : index
    %81 = vector.load %arg11[%c0_23, %c0_24, %c0_25] : memref<1x1x128xf32, #tpu.memory_space<vmem>>, vector<1x1x128xf32>
    %82 = vector.shape_cast %81 : vector<1x1x128xf32> to vector<1x128xf32>
    %c0_26 = arith.constant 0 : index
    %c0_27 = arith.constant 0 : index
    %c0_28 = arith.constant 0 : index
    %83 = vector.load %arg12[%c0_26, %c0_27, %c0_28] : memref<1x1x128xf32, #tpu.memory_space<vmem>>, vector<1x1x128xf32>
    %84 = vector.shape_cast %83 : vector<1x1x128xf32> to vector<1x128xf32>
    %cst_29 = arith.constant dense<0.000000e+00> : vector<128xf32>
    %85 = vector.multi_reduction <add>, %80, %cst_29 [1] : vector<128x128xf32> to vector<128xf32>
    %86 = vector.shape_cast %85 : vector<128xf32> to vector<128x1xf32>
    %cst_30 = arith.constant 1.280000e+02 : f32
    %87 = vector.broadcast %cst_30 : f32 to vector<128x1xf32>
    %88 = arith.divf %86, %87 : vector<128x1xf32>
    %89 = vector.broadcast %88 : vector<128x1xf32> to vector<128x128xf32>
    %90 = arith.subf %80, %89 : vector<128x128xf32>
    %91 = arith.mulf %90, %90 : vector<128x128xf32>
    %cst_31 = arith.constant dense<0.000000e+00> : vector<128xf32>
    %92 = vector.multi_reduction <add>, %91, %cst_31 [1] : vector<128x128xf32> to vector<128xf32>
    %93 = vector.shape_cast %92 : vector<128xf32> to vector<128x1xf32>
    %cst_32 = arith.constant 1.280000e+02 : f32
    %94 = vector.broadcast %cst_32 : f32 to vector<128x1xf32>
    %95 = arith.divf %93, %94 : vector<128x1xf32>
    %cst_33 = arith.constant 9.99999997E-7 : f32
    %96 = vector.broadcast %cst_33 : f32 to vector<128x1xf32>
    %97 = arith.addf %95, %96 : vector<128x1xf32>
    %98 = math.rsqrt %97 : vector<128x1xf32>
    %99 = vector.broadcast %98 : vector<128x1xf32> to vector<128x128xf32>
    %100 = arith.mulf %90, %99 : vector<128x128xf32>
    %101 = vector.broadcast %82 : vector<1x128xf32> to vector<128x128xf32>
    %102 = arith.mulf %100, %101 : vector<128x128xf32>
    %103 = vector.broadcast %84 : vector<1x128xf32> to vector<128x128xf32>
    %104 = arith.addf %102, %103 : vector<128x128xf32>
    %105 = arith.truncf %104 : vector<128x128xf32> to vector<128x128xbf16>
    %c0_34 = arith.constant 0 : index
    %c0_35 = arith.constant 0 : index
    %c0_36 = arith.constant 0 : index
    %106 = vector.load %arg13[%c0_34, %c0_35, %c0_36] : memref<1x128x256xbf16, #tpu.memory_space<vmem>>, vector<1x128x256xbf16>
    %107 = vector.shape_cast %106 : vector<1x128x256xbf16> to vector<128x256xbf16>
    %cst_37 = arith.constant dense<0.000000e+00> : vector<128x256xf32>
    %108 = tpu.matmul %105, %107, %cst_37 {dimension_numbers = #tpu.dot_dimension_numbers<[1], [0], [0], [1], [0, 0, 1, 1], [], []>} : vector<128x128xbf16>, vector<128x256xbf16>, vector<128x256xf32> -> vector<128x256xf32>
    %c0_38 = arith.constant 0 : index
    %c0_39 = arith.constant 0 : index
    %c0_40 = arith.constant 0 : index
    %109 = vector.load %arg14[%c0_38, %c0_39, %c0_40] : memref<1x1x256xf32, #tpu.memory_space<vmem>>, vector<1x1x256xf32>
    %110 = vector.shape_cast %109 : vector<1x1x256xf32> to vector<1x256xf32>
    %111 = vector.broadcast %110 : vector<1x256xf32> to vector<128x256xf32>
    %112 = arith.addf %108, %111 : vector<128x256xf32>
    %cst_41 = arith.constant 0.000000e+00 : f32
    %113 = vector.broadcast %cst_41 : f32 to vector<128x256xf32>
    %114 = arith.maximumf %112, %113 : vector<128x256xf32>
    %115 = arith.truncf %114 : vector<128x256xf32> to vector<128x256xbf16>
    %c0_42 = arith.constant 0 : index
    %c0_43 = arith.constant 0 : index
    %c0_44 = arith.constant 0 : index
    %116 = vector.load %arg15[%c0_42, %c0_43, %c0_44] : memref<1x256x128xbf16, #tpu.memory_space<vmem>>, vector<1x256x128xbf16>
    %117 = vector.shape_cast %116 : vector<1x256x128xbf16> to vector<256x128xbf16>
    %cst_45 = arith.constant dense<0.000000e+00> : vector<128x128xf32>
    %118 = tpu.matmul %115, %117, %cst_45 {dimension_numbers = #tpu.dot_dimension_numbers<[1], [0], [0], [1], [0, 0, 1, 1], [], []>} : vector<128x256xbf16>, vector<256x128xbf16>, vector<128x128xf32> -> vector<128x128xf32>
    %c0_46 = arith.constant 0 : index
    %c0_47 = arith.constant 0 : index
    %c0_48 = arith.constant 0 : index
    %119 = vector.load %arg16[%c0_46, %c0_47, %c0_48] : memref<1x1x128xf32, #tpu.memory_space<vmem>>, vector<1x1x128xf32>
    %120 = vector.shape_cast %119 : vector<1x1x128xf32> to vector<1x128xf32>
    %121 = vector.broadcast %120 : vector<1x128xf32> to vector<128x128xf32>
    %122 = arith.addf %118, %121 : vector<128x128xf32>
    %123 = arith.addf %104, %122 : vector<128x128xf32>
    %c0_49 = arith.constant 0 : index
    %c0_50 = arith.constant 0 : index
    %c0_51 = arith.constant 0 : index
    %124 = vector.load %arg17[%c0_49, %c0_50, %c0_51] : memref<1x1x128xf32, #tpu.memory_space<vmem>>, vector<1x1x128xf32>
    %125 = vector.shape_cast %124 : vector<1x1x128xf32> to vector<1x128xf32>
    %c0_52 = arith.constant 0 : index
    %c0_53 = arith.constant 0 : index
    %c0_54 = arith.constant 0 : index
    %126 = vector.load %arg18[%c0_52, %c0_53, %c0_54] : memref<1x1x128xf32, #tpu.memory_space<vmem>>, vector<1x1x128xf32>
    %127 = vector.shape_cast %126 : vector<1x1x128xf32> to vector<1x128xf32>
    %cst_55 = arith.constant dense<0.000000e+00> : vector<128xf32>
    %128 = vector.multi_reduction <add>, %123, %cst_55 [1] : vector<128x128xf32> to vector<128xf32>
    %129 = vector.shape_cast %128 : vector<128xf32> to vector<128x1xf32>
    %cst_56 = arith.constant 1.280000e+02 : f32
    %130 = vector.broadcast %cst_56 : f32 to vector<128x1xf32>
    %131 = arith.divf %129, %130 : vector<128x1xf32>
    %132 = vector.broadcast %131 : vector<128x1xf32> to vector<128x128xf32>
    %133 = arith.subf %123, %132 : vector<128x128xf32>
    %134 = arith.mulf %133, %133 : vector<128x128xf32>
    %cst_57 = arith.constant dense<0.000000e+00> : vector<128xf32>
    %135 = vector.multi_reduction <add>, %134, %cst_57 [1] : vector<128x128xf32> to vector<128xf32>
    %136 = vector.shape_cast %135 : vector<128xf32> to vector<128x1xf32>
    %cst_58 = arith.constant 1.280000e+02 : f32
    %137 = vector.broadcast %cst_58 : f32 to vector<128x1xf32>
    %138 = arith.divf %136, %137 : vector<128x1xf32>
    %cst_59 = arith.constant 9.99999997E-7 : f32
    %139 = vector.broadcast %cst_59 : f32 to vector<128x1xf32>
    %140 = arith.addf %138, %139 : vector<128x1xf32>
    %141 = math.rsqrt %140 : vector<128x1xf32>
    %142 = vector.broadcast %141 : vector<128x1xf32> to vector<128x128xf32>
    %143 = arith.mulf %133, %142 : vector<128x128xf32>
    %144 = vector.broadcast %125 : vector<1x128xf32> to vector<128x128xf32>
    %145 = arith.mulf %143, %144 : vector<128x128xf32>
    %146 = vector.broadcast %127 : vector<1x128xf32> to vector<128x128xf32>
    %147 = arith.addf %145, %146 : vector<128x128xf32>
    %c0_60 = arith.constant 0 : index
    %c0_61 = arith.constant 0 : index
    %148 = vector.load %arg19[%c0_60, %c0_61] : memref<128x128xf32, #tpu.memory_space<vmem>>, vector<128x128xf32>
    tpu.vector_store %arg19[%c0_60, %c0_61], %147 {strides = array<i32>} : memref<128x128xf32, #tpu.memory_space<vmem>>, vector<128x128xf32>,
    return
  }
  func.func @transform_0(%arg0: i32, %arg1: i32) -> (i32, i32) {
    %c0_i32 = arith.constant 0 : i32
    %c0_i32_0 = arith.constant 0 : i32
    return %arg0, %c0_i32 : i32, i32
  }
  func.func @transform_1(%arg0: i32, %arg1: i32) -> (i32, i32) {
    %c0_i32 = arith.constant 0 : i32
    %c0_i32_0 = arith.constant 0 : i32
    %c0_i32_1 = arith.constant 0 : i32
    return %c0_i32, %c0_i32_0 : i32, i32
  }
  func.func @transform_2(%arg0: i32, %arg1: i32) -> (i32, i32, i32) {
    %c0_i32 = arith.constant 0 : i32
    %c0_i32_0 = arith.constant 0 : i32
    %c0_i32_1 = arith.constant 0 : i32
    return %arg0, %c0_i32, %c0_i32_0 : i32, i32, i32
  }
  func.func @transform_3(%arg0: i32, %arg1: i32) -> (i32, i32) {
    %c0_i32 = arith.constant 0 : i32
    %c0_i32_0 = arith.constant 0 : i32
    %c0_i32_1 = arith.constant 0 : i32
    return %c0_i32, %c0_i32_0 : i32, i32
  }
  func.func @transform_4(%arg0: i32, %arg1: i32) -> (i32, i32) {
    %c0_i32 = arith.constant 0 : i32
    %c0_i32_0 = arith.constant 0 : i32
    %c0_i32_1 = arith.constant 0 : i32
    return %c0_i32, %c0_i32_0 : i32, i32
  }
  func.func @transform_5(%arg0: i32, %arg1: i32) -> (i32, i32, i32) {
    %c0_i32 = arith.constant 0 : i32
    %c0_i32_0 = arith.constant 0 : i32
    %c0_i32_1 = arith.constant 0 : i32
    return %arg1, %c0_i32, %c0_i32_0 : i32, i32, i32
  }
  func.func @transform_6(%arg0: i32, %arg1: i32) -> (i32, i32, i32) {
    %c0_i32 = arith.constant 0 : i32
    %c0_i32_0 = arith.constant 0 : i32
    %c0_i32_1 = arith.constant 0 : i32
    return %arg1, %c0_i32, %c0_i32_0 : i32, i32, i32
  }
  func.func @transform_7(%arg0: i32, %arg1: i32) -> (i32, i32, i32) {
    %c0_i32 = arith.constant 0 : i32
    %c0_i32_0 = arith.constant 0 : i32
    %c0_i32_1 = arith.constant 0 : i32
    return %arg1, %c0_i32, %c0_i32_0 : i32, i32, i32
  }
  func.func @transform_8(%arg0: i32, %arg1: i32) -> (i32, i32, i32) {
    %c0_i32 = arith.constant 0 : i32
    %c0_i32_0 = arith.constant 0 : i32
    %c0_i32_1 = arith.constant 0 : i32
    return %arg1, %c0_i32, %c0_i32_0 : i32, i32, i32
  }
  func.func @transform_9(%arg0: i32, %arg1: i32) -> (i32, i32, i32) {
    %c0_i32 = arith.constant 0 : i32
    %c0_i32_0 = arith.constant 0 : i32
    %c0_i32_1 = arith.constant 0 : i32
    return %arg1, %c0_i32, %c0_i32_0 : i32, i32, i32
  }
  func.func @transform_10(%arg0: i32, %arg1: i32) -> (i32, i32, i32) {
    %c0_i32 = arith.constant 0 : i32
    %c0_i32_0 = arith.constant 0 : i32
    %c0_i32_1 = arith.constant 0 : i32
    return %arg1, %c0_i32, %c0_i32_0 : i32, i32, i32
  }
  func.func @transform_11(%arg0: i32, %arg1: i32) -> (i32, i32, i32) {
    %c0_i32 = arith.constant 0 : i32
    %c0_i32_0 = arith.constant 0 : i32
    %c0_i32_1 = arith.constant 0 : i32
    return %arg1, %c0_i32, %c0_i32_0 : i32, i32, i32
  }
  func.func @transform_12(%arg0: i32, %arg1: i32) -> (i32, i32, i32) {
    %c0_i32 = arith.constant 0 : i32
    %c0_i32_0 = arith.constant 0 : i32
    %c0_i32_1 = arith.constant 0 : i32
    return %arg1, %c0_i32, %c0_i32_0 : i32, i32, i32
  }
  func.func @transform_13(%arg0: i32, %arg1: i32) -> (i32, i32, i32) {
    %c0_i32 = arith.constant 0 : i32
    %c0_i32_0 = arith.constant 0 : i32
    %c0_i32_1 = arith.constant 0 : i32
    return %arg1, %c0_i32, %c0_i32_0 : i32, i32, i32
  }
  func.func @transform_14(%arg0: i32, %arg1: i32) -> (i32, i32, i32) {
    %c0_i32 = arith.constant 0 : i32
    %c0_i32_0 = arith.constant 0 : i32
    %c0_i32_1 = arith.constant 0 : i32
    return %arg1, %c0_i32, %c0_i32_0 : i32, i32, i32
  }
  func.func @transform_15(%arg0: i32, %arg1: i32) -> (i32, i32, i32) {
    %c0_i32 = arith.constant 0 : i32
    %c0_i32_0 = arith.constant 0 : i32
    %c0_i32_1 = arith.constant 0 : i32
    return %arg1, %c0_i32, %c0_i32_0 : i32, i32, i32
  }
  func.func @transform_16(%arg0: i32, %arg1: i32) -> (i32, i32, i32) {
    %c0_i32 = arith.constant 0 : i32
    %c0_i32_0 = arith.constant 0 : i32
    %c0_i32_1 = arith.constant 0 : i32
    return %arg1, %c0_i32, %c0_i32_0 : i32, i32, i32
  }
  func.func @transform_17(%arg0: i32, %arg1: i32) -> (i32, i32) {
    %c0_i32 = arith.constant 0 : i32
    %c0_i32_0 = arith.constant 0 : i32
    return %arg0, %c0_i32 : i32, i32
  }
}

</mosaic_0001>

<llo_original>
// kernel: tpu_custom_call.1
$region0: #{tpu_custom_call.1}
  #allocation0 [shape = 'u32[]', space=smem, size = 0x4, offset = 0x4, fixed_abs, tag = 'smem constant byte address 0x4 - core index']
  #allocation1 [shape = 'u32[144,128]{1,0:T(1,128)}', space=vmem, size = 0x12000, scoped, tag = 'internal scratch']
  %s0 = inlined_call_operand.hbm [shape: f32[256,128], index: 0, kind: input, shape index: {}]
  %s1 = inlined_call_operand.hbm [shape: f32[64,128], index: 1, kind: input, shape index: {}]
  %s2 = inlined_call_operand.vmem [shape: f32[4,1,64], index: 2, kind: input, shape index: {}]
  %s3 = inlined_call_operand.hbm [shape: f32[1,128], index: 3, kind: input, shape index: {}]
  %s4 = inlined_call_operand.hbm [shape: f32[1,128], index: 4, kind: input, shape index: {}]
  %s5 = inlined_call_operand.hbm [shape: bf16[2,128,384], index: 5, kind: input, shape index: {}]
  %s6 = inlined_call_operand.vmem [shape: f32[2,1,384], index: 6, kind: input, shape index: {}]
  %s7 = inlined_call_operand.hbm [shape: bf16[2,128,128], index: 7, kind: input, shape index: {}]
  %s8 = inlined_call_operand.vmem [shape: f32[2,1,128], index: 8, kind: input, shape index: {}]
  %s9 = inlined_call_operand.vmem [shape: f32[2,1,128], index: 9, kind: input, shape index: {}]
  %s10 = inlined_call_operand.vmem [shape: f32[2,1,128], index: 10, kind: input, shape index: {}]
  %s11 = inlined_call_operand.hbm [shape: bf16[2,128,256], index: 11, kind: input, shape index: {}]
  %s12 = inlined_call_operand.vmem [shape: f32[2,1,256], index: 12, kind: input, shape index: {}]
  %s13 = inlined_call_operand.hbm [shape: bf16[2,256,128], index: 13, kind: input, shape index: {}]
  %s14 = inlined_call_operand.vmem [shape: f32[2,1,128], index: 14, kind: input, shape index: {}]
  %s15 = inlined_call_operand.vmem [shape: f32[2,1,128], index: 15, kind: input, shape index: {}]
  %s16 = inlined_call_operand.vmem [shape: f32[2,1,128], index: 16, kind: input, shape index: {}]
  %s17 = inlined_call_operand.hbm [shape: f32[256,128], index: 17, kind: output, shape index: {}]
  %s18 = sld [smem:[#allocation0]]
  $region137: #{tpu_custom_call.1} parent=0
    _
  %s20 = ssub.s32 1, %s18
  %s21 = scalar_select 0, %s20, %s18
  $region1: #{tpu_custom_call.1} parent=0
    #allocation2 [shape = 'u8[131072]{0}', space=vmem, size = 0x20000, scoped, tag = 'input window, operand 0']
    #allocation3 [shape = 's32[2]{0}', space=sflag, size = 0x8, scoped, tag = 'scoped memory for tpu_custom_call.1']
    #allocation4 [shape = 's32[2]{0}', space=sflag, size = 0x8, scoped, tag = 'scoped memory for tpu_custom_call.1']
    #allocation5 [shape = 'u8[32768]{0}', space=vmem, size = 0x8000, scoped, tag = 'input window, operand 1, single buffered']
    #allocation6 [shape = 's32[1]{0}', space=sflag, size = 0x4, scoped, tag = 'scoped memory for tpu_custom_call.1']
    #allocation7 [shape = 'u8[512]{0}', space=vmem, size = 0x400, scoped, tag = 'input window, operand 3, single buffered']
    #allocation8 [shape = 'u8[512]{0}', space=vmem, size = 0x400, scoped, tag = 'input window, operand 4, single buffered']
    #allocation9 [shape = 's32[1]{0}', space=sflag, size = 0x4, scoped, tag = 'scoped memory for tpu_custom_call.1']
    #allocation10 [shape = 'u8[196608]{0}', space=vmem, size = 0x30000, scoped, tag = 'input window, operand 5']
    #allocation11 [shape = 'u8[65536]{0}', space=vmem, size = 0x10000, scoped, tag = 'input window, operand 7']
    #allocation12 [shape = 'u8[131072]{0}', space=vmem, size = 0x20000, scoped, tag = 'input window, operand 11']
    #allocation13 [shape = 'u8[131072]{0}', space=vmem, size = 0x20000, scoped, tag = 'input window, operand 13']
    #allocation14 [shape = 'u8[131072]{0}', space=vmem, size = 0x20000, scoped, tag = 'output window, operand 0']
    %22 = vsyncpa [#allocation3], 0
    %s23 = scalar_lea.sflag [#allocation3], 1
    %24 = vsyncpa %s23, 0
    %25 = vsyncpa [#allocation6], 0
    %26 = vsyncpa [#allocation9], 0
    %27 = vsyncpa [#allocation4], 0
    %s28 = scalar_lea.sflag [#allocation4], 1
    %29 = vsyncpa %s28, 0
    loop: start=0, step=1, limit=6
    $region2: #{tpu_custom_call.1} parent=1 // loop_pre_header
      _
    $region3: #{tpu_custom_call.1} parent=1 // loop_header
      %s31 = sphi 0, %s35
      %p32 = scmp.ge.s32.totalorder %s31, 6
      %s38 = sphi 0, %s50
      %s39 = sphi 0, %s46
      %s40 = sphi 0, %s38
      %s41 = sphi 0, %s39
      %s42 = sphi 0, %s40
      %s43 = sphi 0, %s41
      %s53 = sphi 0, %s55
      %s56 = sphi 0, %s53
      %s57 = sphi 0, %s56
      %s73 = sphi 0, %s57
      %s77 = sphi 0, %s77
      %s79 = sphi 0, %s77
      %s80 = sphi 0, %s79
      %s94 = sphi 0, %s80
      %s100 = sphi 0, %s102
      %s103 = sphi 0, %s100
      %s104 = sphi 0, %s103
      %s120 = sphi 0, %s104
      %s124 = sphi 0, %s124
      %s126 = sphi 0, %s124
      %s127 = sphi 0, %s126
      %s141 = sphi 0, %s127
      %s145 = sphi 0, %s145
      %s147 = sphi 0, %s145
      %s148 = sphi 0, %s147
      %s162 = sphi 0, %s148
      %s168 = sphi 0, %s170
      %s171 = sphi 0, %s168
      %s172 = sphi 0, %s171
      %s188 = sphi 0, %s172
      %s194 = sphi 0, %s196
      %s197 = sphi 0, %s194
      %s198 = sphi 0, %s197
      %s214 = sphi 0, %s198
      %s220 = sphi 0, %s222
      %s223 = sphi 0, %s220
      %s224 = sphi 0, %s223
      %s240 = sphi 0, %s224
      %s246 = sphi 0, %s248
      %s249 = sphi 0, %s246
      %s250 = sphi 0, %s249
      %s266 = sphi 0, %s250
      %s272 = sphi 0, %s274
      %s275 = sphi 0, %s272
      %s276 = sphi 0, %s275
      %s292 = sphi 0, %s276
      %s298 = sphi 0, %s300
      %s301 = sphi 0, %s298
      %s302 = sphi 0, %s301
      %s318 = sphi 0, %s302
      %s324 = sphi 0, %s326
      %s327 = sphi 0, %s324
      %s328 = sphi 0, %s327
      %s344 = sphi 0, %s328
      %s350 = sphi 0, %s352
      %s353 = sphi 0, %s350
      %s354 = sphi 0, %s353
      %s370 = sphi 0, %s354
      %s376 = sphi 0, %s378
      %s379 = sphi 0, %s376
      %s380 = sphi 0, %s379
      %s396 = sphi 0, %s380
      %s402 = sphi 0, %s404
      %s405 = sphi 0, %s402
      %s406 = sphi 0, %s405
      %s422 = sphi 0, %s406
      %s428 = sphi 0, %s430
      %s431 = sphi 0, %s428
      %s432 = sphi 0, %s431
      %s448 = sphi 0, %s432
      %s454 = sphi 0, %s456
      %s457 = sphi 0, %s454
      %s458 = sphi 0, %s457
      %s474 = sphi 0, %s458
      %s480 = sphi 0, %s482
      %s483 = sphi 0, %s480
      %s484 = sphi 0, %s483
      %s500 = sphi 0, %s484
    $region4: #{tpu_custom_call.1} parent=1 // loop_header_branch
      %34 = sbr.rel (%p32) target = $region8
    $region5: #{tpu_custom_call.1} parent=1 // loop_body
      %s36 = ssub.s32 %s31, 1
      %s37 = ssub.s32 %s31, 2
      %s44 = sadd.s32 1, %s39
      %p45 = scmp.ge.s32.totalorder %s44, 2
      %s46 = scalar_select %p45, 0, %s44
      %s47 = sadd.s32 1, %s38
      %s48 = scalar_select %p45, %s47, %s38
      %p49 = scmp.ge.s32.totalorder %s48, 2
      %s50 = scalar_select %p49, 0, %s48
      %s51 = ssub.s32 %s38, %s50
      %p52 = scmp.eq.s32.totalorder %s51, 0
      %s54 = sadd.s32 %s53, 1
      %s55 = scalar_select %p52, %s53, %s54
      %p58 = pneg %p52
      %p59 = scmp.eq.s32.totalorder %s31, 3
      %p60 = por %p58, %p59
      %p61 = scmp.ne.s32.totalorder %s53, %s56
      %p62 = scmp.eq.s32.totalorder %s31, 0
      %p63 = por %p61, %p62
      %p64 = scmp.ne.s32.totalorder %s53, %s56
      %p65 = scmp.eq.s32.totalorder %s36, 3
      %p66 = por %p64, %p65
      %p67 = scmp.ne.s32.totalorder %s56, %s57
      %p68 = scmp.eq.s32.totalorder %s36, 0
      %p69 = por %p67, %p68
      %p70 = scmp.ne.s32.totalorder %s56, %s57
      %p71 = scmp.eq.s32.totalorder %s37, 3
      %p72 = por %p70, %p71
      %p74 = scmp.ne.s32.totalorder %s57, %s73
      %p75 = scmp.eq.s32.totalorder %s37, 0
      %p76 = por %p74, %p75
      %s78 = sadd.s32 %s77, 1
      %p81 = scmp.eq.s32.totalorder %s31, 3
      %p82 = scmp.ne.s32.totalorder %s77, %s79
      %p83 = scmp.eq.s32.totalorder %s31, 0
      %p84 = por %p82, %p83
      %p85 = scmp.ne.s32.totalorder %s77, %s79
      %p86 = scmp.eq.s32.totalorder %s36, 3
      %p87 = por %p85, %p86
      %p88 = scmp.ne.s32.totalorder %s79, %s80
      %p89 = scmp.eq.s32.totalorder %s36, 0
      %p90 = por %p88, %p89
      %p91 = scmp.ne.s32.totalorder %s79, %s80
      %p92 = scmp.eq.s32.totalorder %s37, 3
      %p93 = por %p91, %p92
      %p95 = scmp.ne.s32.totalorder %s80, %s94
      %p96 = scmp.eq.s32.totalorder %s37, 0
      %p97 = por %p95, %p96
      %s98 = ssub.s32 %s38, %s50
      %p99 = scmp.eq.s32.totalorder %s98, 0
      %s101 = sadd.s32 %s100, 1
      %s102 = scalar_select %p99, %s100, %s101
      %p105 = pneg %p99
      %p106 = scmp.eq.s32.totalorder %s31, 3
      %p107 = por %p105, %p106
      %p108 = scmp.ne.s32.totalorder %s100, %s103
      %p109 = scmp.eq.s32.totalorder %s31, 0
      %p110 = por %p108, %p109
      %p111 = scmp.ne.s32.totalorder %s100, %s103
      %p112 = scmp.eq.s32.totalorder %s36, 3
      %p113 = por %p111, %p112
      %p114 = scmp.ne.s32.totalorder %s103, %s104
      %p115 = scmp.eq.s32.totalorder %s36, 0
      %p116 = por %p114, %p115
      %p117 = scmp.ne.s32.totalorder %s103, %s104
      %p118 = scmp.eq.s32.totalorder %s37, 3
      %p119 = por %p117, %p118
      %p121 = scmp.ne.s32.totalorder %s104, %s120
      %p122 = scmp.eq.s32.totalorder %s37, 0
      %p123 = por %p121, %p122
      %s125 = sadd.s32 %s124, 1
      %p128 = scmp.eq.s32.totalorder %s31, 3
      %p129 = scmp.ne.s32.totalorder %s124, %s126
      %p130 = scmp.eq.s32.totalorder %s31, 0
      %p131 = por %p129, %p130
      %p132 = scmp.ne.s32.totalorder %s124, %s126
      %p133 = scmp.eq.s32.totalorder %s36, 3
      %p134 = por %p132, %p133
      %p135 = scmp.ne.s32.totalorder %s126, %s127
      %p136 = scmp.eq.s32.totalorder %s36, 0
      %p137 = por %p135, %p136
      %p138 = scmp.ne.s32.totalorder %s126, %s127
      %p139 = scmp.eq.s32.totalorder %s37, 3
      %p140 = por %p138, %p139
      %p142 = scmp.ne.s32.totalorder %s127, %s141
      %p143 = scmp.eq.s32.totalorder %s37, 0
      %p144 = por %p142, %p143
      %s146 = sadd.s32 %s145, 1
      %p149 = scmp.eq.s32.totalorder %s31, 3
      %p150 = scmp.ne.s32.totalorder %s145, %s147
      %p151 = scmp.eq.s32.totalorder %s31, 0
      %p152 = por %p150, %p151
      %p153 = scmp.ne.s32.totalorder %s145, %s147
      %p154 = scmp.eq.s32.totalorder %s36, 3
      %p155 = por %p153, %p154
      %p156 = scmp.ne.s32.totalorder %s147, %s148
      %p157 = scmp.eq.s32.totalorder %s36, 0
      %p158 = por %p156, %p157
      %p159 = scmp.ne.s32.totalorder %s147, %s148
      %p160 = scmp.eq.s32.totalorder %s37, 3
      %p161 = por %p159, %p160
      %p163 = scmp.ne.s32.totalorder %s148, %s162
      %p164 = scmp.eq.s32.totalorder %s37, 0
      %p165 = por %p163, %p164
      %s166 = ssub.s32 %s39, %s46
      %p167 = scmp.eq.s32.totalorder %s166, 0
      %s169 = sadd.s32 %s168, 1
      %s170 = scalar_select %p167, %s168, %s169
      %p173 = pneg %p167
      %p174 = scmp.eq.s32.totalorder %s31, 3
      %p175 = por %p173, %p174
      %p176 = scmp.ne.s32.totalorder %s168, %s171
      %p177 = scmp.eq.s32.totalorder %s31, 0
      %p178 = por %p176, %p177
      %p179 = scmp.ne.s32.totalorder %s168, %s171
      %p180 = scmp.eq.s32.totalorder %s36, 3
      %p181 = por %p179, %p180
      %p182 = scmp.ne.s32.totalorder %s171, %s172
      %p183 = scmp.eq.s32.totalorder %s36, 0
      %p184 = por %p182, %p183
      %p185 = scmp.ne.s32.totalorder %s171, %s172
      %p186 = scmp.eq.s32.totalorder %s37, 3
      %p187 = por %p185, %p186
      %p189 = scmp.ne.s32.totalorder %s172, %s188
      %p190 = scmp.eq.s32.totalorder %s37, 0
      %p191 = por %p189, %p190
      %s192 = ssub.s32 %s39, %s46
      %p193 = scmp.eq.s32.totalorder %s192, 0
      %s195 = sadd.s32 %s194, 1
      %s196 = scalar_select %p193, %s194, %s195
      %p199 = pneg %p193
      %p200 = scmp.eq.s32.totalorder %s31, 3
      %p201 = por %p199, %p200
      %p202 = scmp.ne.s32.totalorder %s194, %s197
      %p203 = scmp.eq.s32.totalorder %s31, 0
      %p204 = por %p202, %p203
      %p205 = scmp.ne.s32.totalorder %s194, %s197
      %p206 = scmp.eq.s32.totalorder %s36, 3
      %p207 = por %p205, %p206
      %p208 = scmp.ne.s32.totalorder %s197, %s198
      %p209 = scmp.eq.s32.totalorder %s36, 0
      %p210 = por %p208, %p209
      %p211 = scmp.ne.s32.totalorder %s197, %s198
      %p212 = scmp.eq.s32.totalorder %s37, 3
      %p213 = por %p211, %p212
      %p215 = scmp.ne.s32.totalorder %s198, %s214
      %p216 = scmp.eq.s32.totalorder %s37, 0
      %p217 = por %p215, %p216
      %s218 = ssub.s32 %s39, %s46
      %p219 = scmp.eq.s32.totalorder %s218, 0
      %s221 = sadd.s32 %s220, 1
      %s222 = scalar_select %p219, %s220, %s221
      %p225 = pneg %p219
      %p226 = scmp.eq.s32.totalorder %s31, 3
      %p227 = por %p225, %p226
      %p228 = scmp.ne.s32.totalorder %s220, %s223
      %p229 = scmp.eq.s32.totalorder %s31, 0
      %p230 = por %p228, %p229
      %p231 = scmp.ne.s32.totalorder %s220, %s223
      %p232 = scmp.eq.s32.totalorder %s36, 3
      %p233 = por %p231, %p232
      %p234 = scmp.ne.s32.totalorder %s223, %s224
      %p235 = scmp.eq.s32.totalorder %s36, 0
      %p236 = por %p234, %p235
      %p237 = scmp.ne.s32.totalorder %s223, %s224
      %p238 = scmp.eq.s32.totalorder %s37, 3
      %p239 = por %p237, %p238
      %p241 = scmp.ne.s32.totalorder %s224, %s240
      %p242 = scmp.eq.s32.totalorder %s37, 0
      %p243 = por %p241, %p242
      %s244 = ssub.s32 %s39, %s46
      %p245 = scmp.eq.s32.totalorder %s244, 0
      %s247 = sadd.s32 %s246, 1
      %s248 = scalar_select %p245, %s246, %s247
      %p251 = pneg %p245
      %p252 = scmp.eq.s32.totalorder %s31, 3
      %p253 = por %p251, %p252
      %p254 = scmp.ne.s32.totalorder %s246, %s249
      %p255 = scmp.eq.s32.totalorder %s31, 0
      %p256 = por %p254, %p255
      %p257 = scmp.ne.s32.totalorder %s246, %s249
      %p258 = scmp.eq.s32.totalorder %s36, 3
      %p259 = por %p257, %p258
      %p260 = scmp.ne.s32.totalorder %s249, %s250
      %p261 = scmp.eq.s32.totalorder %s36, 0
      %p262 = por %p260, %p261
      %p263 = scmp.ne.s32.totalorder %s249, %s250
      %p264 = scmp.eq.s32.totalorder %s37, 3
      %p265 = por %p263, %p264
      %p267 = scmp.ne.s32.totalorder %s250, %s266
      %p268 = scmp.eq.s32.totalorder %s37, 0
      %p269 = por %p267, %p268
      %s270 = ssub.s32 %s39, %s46
      %p271 = scmp.eq.s32.totalorder %s270, 0
      %s273 = sadd.s32 %s272, 1
      %s274 = scalar_select %p271, %s272, %s273
      %p277 = pneg %p271
      %p278 = scmp.eq.s32.totalorder %s31, 3
      %p279 = por %p277, %p278
      %p280 = scmp.ne.s32.totalorder %s272, %s275
      %p281 = scmp.eq.s32.totalorder %s31, 0
      %p282 = por %p280, %p281
      %p283 = scmp.ne.s32.totalorder %s272, %s275
      %p284 = scmp.eq.s32.totalorder %s36, 3
      %p285 = por %p283, %p284
      %p286 = scmp.ne.s32.totalorder %s275, %s276
      %p287 = scmp.eq.s32.totalorder %s36, 0
      %p288 = por %p286, %p287
      %p289 = scmp.ne.s32.totalorder %s275, %s276
      %p290 = scmp.eq.s32.totalorder %s37, 3
      %p291 = por %p289, %p290
      %p293 = scmp.ne.s32.totalorder %s276, %s292
      %p294 = scmp.eq.s32.totalorder %s37, 0
      %p295 = por %p293, %p294
      %s296 = ssub.s32 %s39, %s46
      %p297 = scmp.eq.s32.totalorder %s296, 0
      %s299 = sadd.s32 %s298, 1
      %s300 = scalar_select %p297, %s298, %s299
      %p303 = pneg %p297
      %p304 = scmp.eq.s32.totalorder %s31, 3
      %p305 = por %p303, %p304
      %p306 = scmp.ne.s32.totalorder %s298, %s301
      %p307 = scmp.eq.s32.totalorder %s31, 0
      %p308 = por %p306, %p307
      %p309 = scmp.ne.s32.totalorder %s298, %s301
      %p310 = scmp.eq.s32.totalorder %s36, 3
      %p311 = por %p309, %p310
      %p312 = scmp.ne.s32.totalorder %s301, %s302
      %p313 = scmp.eq.s32.totalorder %s36, 0
      %p314 = por %p312, %p313
      %p315 = scmp.ne.s32.totalorder %s301, %s302
      %p316 = scmp.eq.s32.totalorder %s37, 3
      %p317 = por %p315, %p316
      %p319 = scmp.ne.s32.totalorder %s302, %s318
      %p320 = scmp.eq.s32.totalorder %s37, 0
      %p321 = por %p319, %p320
      %s322 = ssub.s32 %s39, %s46
      %p323 = scmp.eq.s32.totalorder %s322, 0
      %s325 = sadd.s32 %s324, 1
      %s326 = scalar_select %p323, %s324, %s325
      %p329 = pneg %p323
      %p330 = scmp.eq.s32.totalorder %s31, 3
      %p331 = por %p329, %p330
      %p332 = scmp.ne.s32.totalorder %s324, %s327
      %p333 = scmp.eq.s32.totalorder %s31, 0
      %p334 = por %p332, %p333
      %p335 = scmp.ne.s32.totalorder %s324, %s327
      %p336 = scmp.eq.s32.totalorder %s36, 3
      %p337 = por %p335, %p336
      %p338 = scmp.ne.s32.totalorder %s327, %s328
      %p339 = scmp.eq.s32.totalorder %s36, 0
      %p340 = por %p338, %p339
      %p341 = scmp.ne.s32.totalorder %s327, %s328
      %p342 = scmp.eq.s32.totalorder %s37, 3
      %p343 = por %p341, %p342
      %p345 = scmp.ne.s32.totalorder %s328, %s344
      %p346 = scmp.eq.s32.totalorder %s37, 0
      %p347 = por %p345, %p346
      %s348 = ssub.s32 %s39, %s46
      %p349 = scmp.eq.s32.totalorder %s348, 0
      %s351 = sadd.s32 %s350, 1
      %s352 = scalar_select %p349, %s350, %s351
      %p355 = pneg %p349
      %p356 = scmp.eq.s32.totalorder %s31, 3
      %p357 = por %p355, %p356
      %p358 = scmp.ne.s32.totalorder %s350, %s353
      %p359 = scmp.eq.s32.totalorder %s31, 0
      %p360 = por %p358, %p359
      %p361 = scmp.ne.s32.totalorder %s350, %s353
      %p362 = scmp.eq.s32.totalorder %s36, 3
      %p363 = por %p361, %p362
      %p364 = scmp.ne.s32.totalorder %s353, %s354
      %p365 = scmp.eq.s32.totalorder %s36, 0
      %p366 = por %p364, %p365
      %p367 = scmp.ne.s32.totalorder %s353, %s354
      %p368 = scmp.eq.s32.totalorder %s37, 3
      %p369 = por %p367, %p368
      %p371 = scmp.ne.s32.totalorder %s354, %s370
      %p372 = scmp.eq.s32.totalorder %s37, 0
      %p373 = por %p371, %p372
      %s374 = ssub.s32 %s39, %s46
      %p375 = scmp.eq.s32.totalorder %s374, 0
      %s377 = sadd.s32 %s376, 1
      %s378 = scalar_select %p375, %s376, %s377
      %p381 = pneg %p375
      %p382 = scmp.eq.s32.totalorder %s31, 3
      %p383 = por %p381, %p382
      %p384 = scmp.ne.s32.totalorder %s376, %s379
      %p385 = scmp.eq.s32.totalorder %s31, 0
      %p386 = por %p384, %p385
      %p387 = scmp.ne.s32.totalorder %s376, %s379
      %p388 = scmp.eq.s32.totalorder %s36, 3
      %p389 = por %p387, %p388
      %p390 = scmp.ne.s32.totalorder %s379, %s380
      %p391 = scmp.eq.s32.totalorder %s36, 0
      %p392 = por %p390, %p391
      %p393 = scmp.ne.s32.totalorder %s379, %s380
      %p394 = scmp.eq.s32.totalorder %s37, 3
      %p395 = por %p393, %p394
      %p397 = scmp.ne.s32.totalorder %s380, %s396
      %p398 = scmp.eq.s32.totalorder %s37, 0
      %p399 = por %p397, %p398
      %s400 = ssub.s32 %s39, %s46
      %p401 = scmp.eq.s32.totalorder %s400, 0
      %s403 = sadd.s32 %s402, 1
      %s404 = scalar_select %p401, %s402, %s403
      %p407 = pneg %p401
      %p408 = scmp.eq.s32.totalorder %s31, 3
      %p409 = por %p407, %p408
      %p410 = scmp.ne.s32.totalorder %s402, %s405
      %p411 = scmp.eq.s32.totalorder %s31, 0
      %p412 = por %p410, %p411
      %p413 = scmp.ne.s32.totalorder %s402, %s405
      %p414 = scmp.eq.s32.totalorder %s36, 3
      %p415 = por %p413, %p414
      %p416 = scmp.ne.s32.totalorder %s405, %s406
      %p417 = scmp.eq.s32.totalorder %s36, 0
      %p418 = por %p416, %p417
      %p419 = scmp.ne.s32.totalorder %s405, %s406
      %p420 = scmp.eq.s32.totalorder %s37, 3
      %p421 = por %p419, %p420
      %p423 = scmp.ne.s32.totalorder %s406, %s422
      %p424 = scmp.eq.s32.totalorder %s37, 0
      %p425 = por %p423, %p424
      %s426 = ssub.s32 %s39, %s46
      %p427 = scmp.eq.s32.totalorder %s426, 0
      %s429 = sadd.s32 %s428, 1
      %s430 = scalar_select %p427, %s428, %s429
      %p433 = pneg %p427
      %p434 = scmp.eq.s32.totalorder %s31, 3
      %p435 = por %p433, %p434
      %p436 = scmp.ne.s32.totalorder %s428, %s431
      %p437 = scmp.eq.s32.totalorder %s31, 0
      %p438 = por %p436, %p437
      %p439 = scmp.ne.s32.totalorder %s428, %s431
      %p440 = scmp.eq.s32.totalorder %s36, 3
      %p441 = por %p439, %p440
      %p442 = scmp.ne.s32.totalorder %s431, %s432
      %p443 = scmp.eq.s32.totalorder %s36, 0
      %p444 = por %p442, %p443
      %p445 = scmp.ne.s32.totalorder %s431, %s432
      %p446 = scmp.eq.s32.totalorder %s37, 3
      %p447 = por %p445, %p446
      %p449 = scmp.ne.s32.totalorder %s432, %s448
      %p450 = scmp.eq.s32.totalorder %s37, 0
      %p451 = por %p449, %p450
      %s452 = ssub.s32 %s39, %s46
      %p453 = scmp.eq.s32.totalorder %s452, 0
      %s455 = sadd.s32 %s454, 1
      %s456 = scalar_select %p453, %s454, %s455
      %p459 = pneg %p453
      %p460 = scmp.eq.s32.totalorder %s31, 3
      %p461 = por %p459, %p460
      %p462 = scmp.ne.s32.totalorder %s454, %s457
      %p463 = scmp.eq.s32.totalorder %s31, 0
      %p464 = por %p462, %p463
      %p465 = scmp.ne.s32.totalorder %s454, %s457
      %p466 = scmp.eq.s32.totalorder %s36, 3
      %p467 = por %p465, %p466
      %p468 = scmp.ne.s32.totalorder %s457, %s458
      %p469 = scmp.eq.s32.totalorder %s36, 0
      %p470 = por %p468, %p469
      %p471 = scmp.ne.s32.totalorder %s457, %s458
      %p472 = scmp.eq.s32.totalorder %s37, 3
      %p473 = por %p471, %p472
      %p475 = scmp.ne.s32.totalorder %s458, %s474
      %p476 = scmp.eq.s32.totalorder %s37, 0
      %p477 = por %p475, %p476
      %s478 = ssub.s32 %s38, %s50
      %p479 = scmp.eq.s32.totalorder %s478, 0
      %s481 = sadd.s32 %s480, 1
      %s482 = scalar_select %p479, %s480, %s481
      %p485 = pneg %p479
      %p486 = scmp.eq.s32.totalorder %s31, 3
      %p487 = por %p485, %p486
      %p488 = scmp.ne.s32.totalorder %s480, %s483
      %p489 = scmp.eq.s32.totalorder %s31, 0
      %p490 = por %p488, %p489
      %p491 = scmp.ne.s32.totalorder %s480, %s483
      %p492 = scmp.eq.s32.totalorder %s36, 3
      %p493 = por %p491, %p492
      %p494 = scmp.ne.s32.totalorder %s483, %s484
      %p495 = scmp.eq.s32.totalorder %s36, 0
      %p496 = por %p494, %p495
      %p497 = scmp.ne.s32.totalorder %s483, %s484
      %p498 = scmp.eq.s32.totalorder %s37, 3
      %p499 = por %p497, %p498
      %p501 = scmp.ne.s32.totalorder %s484, %s500
      %p502 = scmp.eq.s32.totalorder %s37, 0
      %p503 = por %p501, %p502
      %p504 = scmp.le.s32.totalorder 1, %s31
      %p505 = scmp.lt.s32.totalorder %s31, 5
      %p506 = pnand %p504, %p505
      %p507 = pneg %p506
      // Predicated region
      $region9: #{tpu_custom_call.1} parent=5 // pred_check
        _
      $region10: #{tpu_custom_call.1} parent=5 // pred_check_branch
        %509 = sbr.rel (%p506) target = $region12
      $region11: #{tpu_custom_call.1} parent=5 // pred_region
        %s510 = ssub.s32 %s31, 1
        // Predicated region
        $region13: #{tpu_custom_call.1} parent=11 // pred_check
          %p511 = pneg %p90
        $region14: #{tpu_custom_call.1} parent=11 // pred_check_branch
          %513 = sbr.rel (%p511) target = $region16
        $region15: #{tpu_custom_call.1} parent=11 // pred_region
          %s515 = ssub.s32 1024, 1024
          %516 = vsyncadd [#allocation6], %s515
          %s517 = sshll.u32 [#allocation5], 4
          %s518 = int_to_ptr.vmem [resolvable:$true] %s517
          %523 = dma.hbm_to_vmem [thread:$0]  %s1, 1024, %s518, [#allocation6], 128, 128, 8
        $region16: #{tpu_custom_call.1} parent=11 // pred_fallthru
          _
        // Predicated region
        $region17: #{tpu_custom_call.1} parent=11 // pred_check
          %p524 = pneg %p137
        $region18: #{tpu_custom_call.1} parent=11 // pred_check_branch
          %526 = sbr.rel (%p524) target = $region20
        $region19: #{tpu_custom_call.1} parent=11 // pred_region
          %s528 = ssub.s32 16, 16
          %529 = vsyncadd [#allocation6], %s528
          %s531 = sshll.u32 [#allocation7], 4
          %s532 = int_to_ptr.vmem [resolvable:$true] %s531
          %534 = dma.hbm_to_vmem [thread:$0]  %s3, 16, %s532, [#allocation6]
        $region20: #{tpu_custom_call.1} parent=11 // pred_fallthru
          _
        // Predicated region
        $region21: #{tpu_custom_call.1} parent=11 // pred_check
          %p535 = pneg %p158
        $region22: #{tpu_custom_call.1} parent=11 // pred_check_branch
          %537 = sbr.rel (%p535) target = $region24
        $region23: #{tpu_custom_call.1} parent=11 // pred_region
          %s539 = ssub.s32 16, 16
          %540 = vsyncadd [#allocation9], %s539
          %s542 = sshll.u32 [#allocation8], 4
          %s543 = int_to_ptr.vmem [resolvable:$true] %s542
          %545 = dma.hbm_to_vmem [thread:$0]  %s4, 16, %s543, [#allocation9]
        $region24: #{tpu_custom_call.1} parent=11 // pred_fallthru
          _
      $region12: #{tpu_custom_call.1} parent=5 // pred_fallthru
        _
      %p546 = scmp.lt.s32.totalorder %s31, 4
      // Predicated region
      $region25: #{tpu_custom_call.1} parent=5 // pred_check
        %p547 = pneg %p546
      $region26: #{tpu_custom_call.1} parent=5 // pred_check_branch
        %549 = sbr.rel (%p547) target = $region28
      $region27: #{tpu_custom_call.1} parent=5 // pred_region
        // Predicated region
        $region29: #{tpu_custom_call.1} parent=27 // pred_check
          %p550 = pneg %p63
        $region30: #{tpu_custom_call.1} parent=27 // pred_check_branch
          %552 = sbr.rel (%p550) target = $region32
        $region31: #{tpu_custom_call.1} parent=27 // pred_region
          %s553 = sand.u32 %s31, 1
          %s554 = scalar_lea.sflag [#allocation3], %s553
          %s555 = sand.u32 %s53, 1
          %s556 = smul.addr %s555, 128
          %s557 = scalar_lea.vmem [#allocation2], %s556
          %s558 = smul.u32 16, %s38
          %s560 = ssub.s32 2048, 2048
          %561 = vsyncadd %s554, %s560
          %s562 = smul.addr %s558, 128
          %s563 = scalar_lea.hbm %s0, %s562
          %s564 = sshll.u32 %s557, 4
          %s565 = int_to_ptr.vmem [resolvable:$true] %s564
          %570 = dma.hbm_to_vmem [thread:$0]  %s563, 2048, %s565, %s554, 128, 128, 8
        $region32: #{tpu_custom_call.1} parent=27 // pred_fallthru
          _
        // Predicated region
        $region33: #{tpu_custom_call.1} parent=27 // pred_check
          %p571 = pneg %p110
        $region34: #{tpu_custom_call.1} parent=27 // pred_check_branch
          %573 = sbr.rel (%p571) target = $region36
        $region35: #{tpu_custom_call.1} parent=27 // pred_region
          %s574 = smul.u32 2, %s38
          %p575 = scmp.lt.s32.totalorder %s574, 3
          %s576 = scalar_select %p575, %s574, 3
          %s577 = scalar_lea.vmem %s2, %s576
          %s578 = smul.u32 2, %s38
        $region36: #{tpu_custom_call.1} parent=27 // pred_fallthru
          _
        // Predicated region
        $region37: #{tpu_custom_call.1} parent=27 // pred_check
          %p579 = pneg %p178
        $region38: #{tpu_custom_call.1} parent=27 // pred_check_branch
          %581 = sbr.rel (%p579) target = $region40
        $region39: #{tpu_custom_call.1} parent=27 // pred_region
          %s582 = sand.u32 %s31, 1
          %s583 = scalar_lea.sflag [#allocation3], %s582
          %s584 = sand.u32 %s168, 1
          %s585 = smul.addr %s584, 192
          %s586 = scalar_lea.vmem [#allocation10], %s585
          %s588 = ssub.s32 3072, 3072
          %589 = vsyncadd %s583, %s588
          %s590 = smul.addr %s39, 48
          %s591 = smul.addr %s590, 64
          %s592 = scalar_lea.hbm %s5, %s591
          %s593 = sshll.u32 %s586, 4
          %s594 = int_to_ptr.vmem [resolvable:$true] %s593
          %599 = dma.hbm_to_vmem [thread:$0]  %s592, 3072, %s594, %s583, 192, 192, 12
        $region40: #{tpu_custom_call.1} parent=27 // pred_fallthru
          _
        // Predicated region
        $region41: #{tpu_custom_call.1} parent=27 // pred_check
          %p600 = pneg %p204
        $region42: #{tpu_custom_call.1} parent=27 // pred_check_branch
          %602 = sbr.rel (%p600) target = $region44
        $region43: #{tpu_custom_call.1} parent=27 // pred_region
          %p603 = scmp.lt.s32.totalorder %s39, 1
          %s604 = scalar_select %p603, %s39, 1
          %s605 = smul.addr %s604, 3
          %s606 = scalar_lea.vmem %s6, %s605
        $region44: #{tpu_custom_call.1} parent=27 // pred_fallthru
          _
        // Predicated region
        $region45: #{tpu_custom_call.1} parent=27 // pred_check
          %p607 = pneg %p230
        $region46: #{tpu_custom_call.1} parent=27 // pred_check_branch
          %609 = sbr.rel (%p607) target = $region48
        $region47: #{tpu_custom_call.1} parent=27 // pred_region
          %s610 = sand.u32 %s31, 1
          %s611 = scalar_lea.sflag [#allocation3], %s610
          %s612 = sand.u32 %s220, 1
          %s613 = smul.addr %s612, 64
          %s614 = scalar_lea.vmem [#allocation11], %s613
          %s616 = ssub.s32 1024, 1024
          %617 = vsyncadd %s611, %s616
          %s618 = smul.addr %s39, 16
          %s619 = smul.addr %s618, 64
          %s620 = scalar_lea.hbm %s7, %s619
          %s621 = sshll.u32 %s614, 4
          %s622 = int_to_ptr.vmem [resolvable:$true] %s621
          %627 = dma.hbm_to_vmem [thread:$0]  %s620, 1024, %s622, %s611, 64, 64, 4
        $region48: #{tpu_custom_call.1} parent=27 // pred_fallthru
          _
        // Predicated region
        $region49: #{tpu_custom_call.1} parent=27 // pred_check
          %p628 = pneg %p256
        $region50: #{tpu_custom_call.1} parent=27 // pred_check_branch
          %630 = sbr.rel (%p628) target = $region52
        $region51: #{tpu_custom_call.1} parent=27 // pred_region
          %p631 = scmp.lt.s32.totalorder %s39, 1
          %s632 = scalar_select %p631, %s39, 1
          %s633 = scalar_lea.vmem %s8, %s632
        $region52: #{tpu_custom_call.1} parent=27 // pred_fallthru
          _
        // Predicated region
        $region53: #{tpu_custom_call.1} parent=27 // pred_check
          %p634 = pneg %p282
        $region54: #{tpu_custom_call.1} parent=27 // pred_check_branch
          %636 = sbr.rel (%p634) target = $region56
        $region55: #{tpu_custom_call.1} parent=27 // pred_region
          %p637 = scmp.lt.s32.totalorder %s39, 1
          %s638 = scalar_select %p637, %s39, 1
          %s639 = scalar_lea.vmem %s9, %s638
        $region56: #{tpu_custom_call.1} parent=27 // pred_fallthru
          _
        // Predicated region
        $region57: #{tpu_custom_call.1} parent=27 // pred_check
          %p640 = pneg %p308
        $region58: #{tpu_custom_call.1} parent=27 // pred_check_branch
          %642 = sbr.rel (%p640) target = $region60
        $region59: #{tpu_custom_call.1} parent=27 // pred_region
          %p643 = scmp.lt.s32.totalorder %s39, 1
          %s644 = scalar_select %p643, %s39, 1
          %s645 = scalar_lea.vmem %s10, %s644
        $region60: #{tpu_custom_call.1} parent=27 // pred_fallthru
          _
        // Predicated region
        $region61: #{tpu_custom_call.1} parent=27 // pred_check
          %p646 = pneg %p334
        $region62: #{tpu_custom_call.1} parent=27 // pred_check_branch
          %648 = sbr.rel (%p646) target = $region64
        $region63: #{tpu_custom_call.1} parent=27 // pred_region
          %s649 = sand.u32 %s31, 1
          %s650 = scalar_lea.sflag [#allocation3], %s649
          %s651 = sand.u32 %s324, 1
          %s652 = smul.addr %s651, 128
          %s653 = scalar_lea.vmem [#allocation12], %s652
          %s655 = ssub.s32 2048, 2048
          %656 = vsyncadd %s650, %s655
          %s657 = smul.addr %s39, 32
          %s658 = smul.addr %s657, 64
          %s659 = scalar_lea.hbm %s11, %s658
          %s660 = sshll.u32 %s653, 4
          %s661 = int_to_ptr.vmem [resolvable:$true] %s660
          %666 = dma.hbm_to_vmem [thread:$0]  %s659, 2048, %s661, %s650, 128, 128, 8
        $region64: #{tpu_custom_call.1} parent=27 // pred_fallthru
          _
        // Predicated region
        $region65: #{tpu_custom_call.1} parent=27 // pred_check
          %p667 = pneg %p360
        $region66: #{tpu_custom_call.1} parent=27 // pred_check_branch
          %669 = sbr.rel (%p667) target = $region68
        $region67: #{tpu_custom_call.1} parent=27 // pred_region
          %p670 = scmp.lt.s32.totalorder %s39, 1
          %s671 = scalar_select %p670, %s39, 1
          %s672 = smul.addr %s671, 2
          %s673 = scalar_lea.vmem %s12, %s672
        $region68: #{tpu_custom_call.1} parent=27 // pred_fallthru
          _
        // Predicated region
        $region69: #{tpu_custom_call.1} parent=27 // pred_check
          %p674 = pneg %p386
        $region70: #{tpu_custom_call.1} parent=27 // pred_check_branch
          %676 = sbr.rel (%p674) target = $region72
        $region71: #{tpu_custom_call.1} parent=27 // pred_region
          %s677 = sand.u32 %s31, 1
          %s678 = scalar_lea.sflag [#allocation3], %s677
          %s679 = sand.u32 %s376, 1
          %s680 = smul.addr %s679, 128
          %s681 = scalar_lea.vmem [#allocation13], %s680
          %s683 = ssub.s32 2048, 2048
          %684 = vsyncadd %s678, %s683
          %s685 = smul.addr %s39, 32
          %s686 = smul.addr %s685, 64
          %s687 = scalar_lea.hbm %s13, %s686
          %s688 = sshll.u32 %s681, 4
          %s689 = int_to_ptr.vmem [resolvable:$true] %s688
          %694 = dma.hbm_to_vmem [thread:$0]  %s687, 2048, %s689, %s678, 64, 64, 4
        $region72: #{tpu_custom_call.1} parent=27 // pred_fallthru
          _
        // Predicated region
        $region73: #{tpu_custom_call.1} parent=27 // pred_check
          %p695 = pneg %p412
        $region74: #{tpu_custom_call.1} parent=27 // pred_check_branch
          %697 = sbr.rel (%p695) target = $region76
        $region75: #{tpu_custom_call.1} parent=27 // pred_region
          %p698 = scmp.lt.s32.totalorder %s39, 1
          %s699 = scalar_select %p698, %s39, 1
          %s700 = scalar_lea.vmem %s14, %s699
        $region76: #{tpu_custom_call.1} parent=27 // pred_fallthru
          _
        // Predicated region
        $region77: #{tpu_custom_call.1} parent=27 // pred_check
          %p701 = pneg %p438
        $region78: #{tpu_custom_call.1} parent=27 // pred_check_branch
          %703 = sbr.rel (%p701) target = $region80
        $region79: #{tpu_custom_call.1} parent=27 // pred_region
          %p704 = scmp.lt.s32.totalorder %s39, 1
          %s705 = scalar_select %p704, %s39, 1
          %s706 = scalar_lea.vmem %s15, %s705
        $region80: #{tpu_custom_call.1} parent=27 // pred_fallthru
          _
        // Predicated region
        $region81: #{tpu_custom_call.1} parent=27 // pred_check
          %p707 = pneg %p464
        $region82: #{tpu_custom_call.1} parent=27 // pred_check_branch
          %709 = sbr.rel (%p707) target = $region84
        $region83: #{tpu_custom_call.1} parent=27 // pred_region
          %p710 = scmp.lt.s32.totalorder %s39, 1
          %s711 = scalar_select %p710, %s39, 1
          %s712 = scalar_lea.vmem %s16, %s711
        $region84: #{tpu_custom_call.1} parent=27 // pred_fallthru
          _
      $region28: #{tpu_custom_call.1} parent=5 // pred_fallthru
        _
      %p713 = scmp.le.s32.totalorder 1, %s31
      %p714 = scmp.lt.s32.totalorder %s31, 5
      %p715 = pnand %p713, %p714
      %p716 = pneg %p715
      // Predicated region
      $region85: #{tpu_custom_call.1} parent=5 // pred_check
        _
      $region86: #{tpu_custom_call.1} parent=5 // pred_check_branch
        %718 = sbr.rel (%p715) target = $region88
      $region87: #{tpu_custom_call.1} parent=5 // pred_region
        %s719 = ssub.s32 %s31, 1
        %s720 = sand.u32 %s36, 1
        %s721 = scalar_lea.sflag [#allocation3], %s720
        %s722 = sand.u32 %s56, 1
        %s723 = smul.addr %s722, 128
        %s724 = scalar_lea.vmem [#allocation2], %s723
        // Predicated region
        $region89: #{tpu_custom_call.1} parent=87 // pred_check
          %p725 = pneg %p69
        $region90: #{tpu_custom_call.1} parent=87 // pred_check_branch
          %727 = sbr.rel (%p725) target = $region92
        $region91: #{tpu_custom_call.1} parent=87 // pred_region
          %728 = dma.done %s721, 2048
        $region92: #{tpu_custom_call.1} parent=87 // pred_fallthru
          _
        // Predicated region
        $region93: #{tpu_custom_call.1} parent=87 // pred_check
          %p729 = pneg %p90
        $region94: #{tpu_custom_call.1} parent=87 // pred_check_branch
          %731 = sbr.rel (%p729) target = $region96
        $region95: #{tpu_custom_call.1} parent=87 // pred_region
          %732 = dma.done [#allocation6], 1024
        $region96: #{tpu_custom_call.1} parent=87 // pred_fallthru
          _
        // Predicated region
        $region97: #{tpu_custom_call.1} parent=87 // pred_check
          %p733 = pneg %p137
        $region98: #{tpu_custom_call.1} parent=87 // pred_check_branch
          %735 = sbr.rel (%p733) target = $region100
        $region99: #{tpu_custom_call.1} parent=87 // pred_region
          %736 = dma.done [#allocation6], 16
        $region100: #{tpu_custom_call.1} parent=87 // pred_fallthru
          _
        // Predicated region
        $region101: #{tpu_custom_call.1} parent=87 // pred_check
          %p737 = pneg %p158
        $region102: #{tpu_custom_call.1} parent=87 // pred_check_branch
          %739 = sbr.rel (%p737) target = $region104
        $region103: #{tpu_custom_call.1} parent=87 // pred_region
          %740 = dma.done [#allocation9], 16
        $region104: #{tpu_custom_call.1} parent=87 // pred_fallthru
          _
        %s741 = sand.u32 %s36, 1
        %s742 = scalar_lea.sflag [#allocation3], %s741
        %s743 = sand.u32 %s171, 1
        %s744 = smul.addr %s743, 192
        %s745 = scalar_lea.vmem [#allocation10], %s744
        // Predicated region
        $region105: #{tpu_custom_call.1} parent=87 // pred_check
          %p746 = pneg %p184
        $region106: #{tpu_custom_call.1} parent=87 // pred_check_branch
          %748 = sbr.rel (%p746) target = $region108
        $region107: #{tpu_custom_call.1} parent=87 // pred_region
          %749 = dma.done %s742, 3072
        $region108: #{tpu_custom_call.1} parent=87 // pred_fallthru
          _
        %s750 = sand.u32 %s36, 1
        %s751 = scalar_lea.sflag [#allocation3], %s750
        %s752 = sand.u32 %s223, 1
        %s753 = smul.addr %s752, 64
        %s754 = scalar_lea.vmem [#allocation11], %s753
        // Predicated region
        $region109: #{tpu_custom_call.1} parent=87 // pred_check
          %p755 = pneg %p236
        $region110: #{tpu_custom_call.1} parent=87 // pred_check_branch
          %757 = sbr.rel (%p755) target = $region112
        $region111: #{tpu_custom_call.1} parent=87 // pred_region
          %758 = dma.done %s751, 1024
        $region112: #{tpu_custom_call.1} parent=87 // pred_fallthru
          _
        %s759 = sand.u32 %s36, 1
        %s760 = scalar_lea.sflag [#allocation3], %s759
        %s761 = sand.u32 %s327, 1
        %s762 = smul.addr %s761, 128
        %s763 = scalar_lea.vmem [#allocation12], %s762
        // Predicated region
        $region113: #{tpu_custom_call.1} parent=87 // pred_check
          %p764 = pneg %p340
        $region114: #{tpu_custom_call.1} parent=87 // pred_check_branch
          %766 = sbr.rel (%p764) target = $region116
        $region115: #{tpu_custom_call.1} parent=87 // pred_region
          %767 = dma.done %s760, 2048
        $region116: #{tpu_custom_call.1} parent=87 // pred_fallthru
          _
        %s768 = sand.u32 %s36, 1
        %s769 = scalar_lea.sflag [#allocation3], %s768
        %s770 = sand.u32 %s379, 1
        %s771 = smul.addr %s770, 128
        %s772 = scalar_lea.vmem [#allocation13], %s771
        // Predicated region
        $region117: #{tpu_custom_call.1} parent=87 // pred_check
          %p773 = pneg %p392
        $region118: #{tpu_custom_call.1} parent=87 // pred_check_branch
          %775 = sbr.rel (%p773) target = $region120
        $region119: #{tpu_custom_call.1} parent=87 // pred_region
          %776 = dma.done %s769, 2048
        $region120: #{tpu_custom_call.1} parent=87 // pred_fallthru
          _
        %s777 = sand.u32 %s36, 1
        %s778 = scalar_lea.sflag [#allocation3], %s777
        %s779 = sand.u32 %s56, 1
        %s780 = smul.addr %s779, 128
        %s781 = scalar_lea.vmem [#allocation2], %s780
        %p782 = pneg %p69
        %p783 = pneg %p66
        %p784 = pneg %p90
        %p785 = pneg %p87
        %s786 = smul.u32 2, %s40
        %p787 = scmp.lt.s32.totalorder %s786, 3
        %s788 = scalar_select %p787, %s786, 3
        %s789 = scalar_lea.vmem %s2, %s788
        %p790 = pneg %p116
        %p791 = pneg %p113
        %p792 = pneg %p137
        %p793 = pneg %p134
        %p794 = pneg %p158
        %p795 = pneg %p155
        %s796 = sand.u32 %s36, 1
        %s797 = scalar_lea.sflag [#allocation3], %s796
        %s798 = sand.u32 %s171, 1
        %s799 = smul.addr %s798, 192
        %s800 = scalar_lea.vmem [#allocation10], %s799
        %p801 = pneg %p184
        %p802 = pneg %p181
        %p803 = scmp.lt.s32.totalorder %s41, 1
        %s804 = scalar_select %p803, %s41, 1
        %s805 = smul.addr %s804, 3
        %s806 = scalar_lea.vmem %s6, %s805
        %p807 = pneg %p210
        %p808 = pneg %p207
        %s809 = sand.u32 %s36, 1
        %s810 = scalar_lea.sflag [#allocation3], %s809
        %s811 = sand.u32 %s223, 1
        %s812 = smul.addr %s811, 64
        %s813 = scalar_lea.vmem [#allocation11], %s812
        %p814 = pneg %p236
        %p815 = pneg %p233
        %p816 = scmp.lt.s32.totalorder %s41, 1
        %s817 = scalar_select %p816, %s41, 1
        %s818 = scalar_lea.vmem %s8, %s817
        %p819 = pneg %p262
        %p820 = pneg %p259
        %p821 = scmp.lt.s32.totalorder %s41, 1
        %s822 = scalar_select %p821, %s41, 1
        %s823 = scalar_lea.vmem %s9, %s822
        %p824 = pneg %p288
        %p825 = pneg %p285
        %p826 = scmp.lt.s32.totalorder %s41, 1
        %s827 = scalar_select %p826, %s41, 1
        %s828 = scalar_lea.vmem %s10, %s827
        %p829 = pneg %p314
        %p830 = pneg %p311
        %s831 = sand.u32 %s36, 1
        %s832 = scalar_lea.sflag [#allocation3], %s831
        %s833 = sand.u32 %s327, 1
        %s834 = smul.addr %s833, 128
        %s835 = scalar_lea.vmem [#allocation12], %s834
        %p836 = pneg %p340
        %p837 = pneg %p337
        %p838 = scmp.lt.s32.totalorder %s41, 1
        %s839 = scalar_select %p838, %s41, 1
        %s840 = smul.addr %s839, 2
        %s841 = scalar_lea.vmem %s12, %s840
        %p842 = pneg %p366
        %p843 = pneg %p363
        %s844 = sand.u32 %s36, 1
        %s845 = scalar_lea.sflag [#allocation3], %s844
        %s846 = sand.u32 %s379, 1
        %s847 = smul.addr %s846, 128
        %s848 = scalar_lea.vmem [#allocation13], %s847
        %p849 = pneg %p392
        %p850 = pneg %p389
        %p851 = scmp.lt.s32.totalorder %s41, 1
        %s852 = scalar_select %p851, %s41, 1
        %s853 = scalar_lea.vmem %s14, %s852
        %p854 = pneg %p418
        %p855 = pneg %p415
        %p856 = scmp.lt.s32.totalorder %s41, 1
        %s857 = scalar_select %p856, %s41, 1
        %s858 = scalar_lea.vmem %s15, %s857
        %p859 = pneg %p444
        %p860 = pneg %p441
        %p861 = scmp.lt.s32.totalorder %s41, 1
        %s862 = scalar_select %p861, %s41, 1
        %s863 = scalar_lea.vmem %s16, %s862
        %p864 = pneg %p470
        %p865 = pneg %p467
        %p866 = pneg %p496
        %p867 = pneg %p493
        %s868 = sand.u32 %s483, 1
        %s869 = scalar_lea.sflag [#allocation4], %s868
        %s870 = sand.u32 %s483, 1
        %s871 = smul.addr %s870, 128
        %s872 = scalar_lea.vmem [#allocation14], %s871
        %s873 = smul.u32 16, %s40
        %s874 = smul.u32 2, %s40
        %p875 = scmp.lt.s32.totalorder %s874, 3
        %s876 = scalar_select %p875, %s874, 3
        %s877 = scalar_lea.vmem %s2, %s876
        %s878 = smul.u32 2, %s40
        %p879 = scmp.lt.s32.totalorder %s41, 1
        %s880 = scalar_select %p879, %s41, 1
        %s881 = smul.addr %s880, 3
        %s882 = scalar_lea.vmem %s6, %s881
        %p883 = scmp.lt.s32.totalorder %s41, 1
        %s884 = scalar_select %p883, %s41, 1
        %s885 = scalar_lea.vmem %s8, %s884
        %p886 = scmp.lt.s32.totalorder %s41, 1
        %s887 = scalar_select %p886, %s41, 1
        %s888 = scalar_lea.vmem %s9, %s887
        %p889 = scmp.lt.s32.totalorder %s41, 1
        %s890 = scalar_select %p889, %s41, 1
        %s891 = scalar_lea.vmem %s10, %s890
        %p892 = scmp.lt.s32.totalorder %s41, 1
        %s893 = scalar_select %p892, %s41, 1
        %s894 = smul.addr %s893, 2
        %s895 = scalar_lea.vmem %s12, %s894
        %p896 = scmp.lt.s32.totalorder %s41, 1
        %s897 = scalar_select %p896, %s41, 1
        %s898 = scalar_lea.vmem %s14, %s897
        %p899 = scmp.lt.s32.totalorder %s41, 1
        %s900 = scalar_select %p899, %s41, 1
        %s901 = scalar_lea.vmem %s15, %s900
        %p902 = scmp.lt.s32.totalorder %s41, 1
        %s903 = scalar_select %p902, %s41, 1
        %s904 = scalar_lea.vmem %s16, %s903
        %s905 = smul.u32 16, %s40
        %p907 = scmp.eq.s32.totalorder %s41, 0
        // Predicated region
        $region121: #{tpu_custom_call.1} parent=87 // pred_check
          %p908 = pneg %p907
        $region122: #{tpu_custom_call.1} parent=87 // pred_check_branch
          %910 = sbr.rel (%p908) target = $region124
        $region123: #{tpu_custom_call.1} parent=87 // pred_region
          %v911 = vld [vmem:[%s724] sm:$0xff]
          %v912 = vld [vmem:[%s724 + $0x8] sm:$0xff]
          %v913 = vld [vmem:[%s724 + $0x10] sm:$0xff]
          %v914 = vld [vmem:[%s724 + $0x18] sm:$0xff]
          %v915 = vld [vmem:[%s724 + $0x20] sm:$0xff]
          %v916 = vld [vmem:[%s724 + $0x28] sm:$0xff]
          %v917 = vld [vmem:[%s724 + $0x30] sm:$0xff]
          %v918 = vld [vmem:[%s724 + $0x38] sm:$0xff]
          %v919 = vld [vmem:[%s724 + $0x40] sm:$0xff]
          %v920 = vld [vmem:[%s724 + $0x48] sm:$0xff]
          %v921 = vld [vmem:[%s724 + $0x50] sm:$0xff]
          %v922 = vld [vmem:[%s724 + $0x58] sm:$0xff]
          %v923 = vld [vmem:[%s724 + $0x60] sm:$0xff]
          %v924 = vld [vmem:[%s724 + $0x68] sm:$0xff]
          %v925 = vld [vmem:[%s724 + $0x70] sm:$0xff]
          %v926 = vld [vmem:[%s724 + $0x78] sm:$0xff]
          %v927 = vld [vmem:[#allocation5] sm:$0xff]
          %v928 = vld [vmem:[#allocation5 + $0x8] sm:$0xff]
          %v929 = vld [vmem:[#allocation5 + $0x10] sm:$0xff]
          %v930 = vld [vmem:[#allocation5 + $0x18] sm:$0xff]
          %v931 = vld [vmem:[#allocation5 + $0x20] sm:$0xff]
          %v932 = vld [vmem:[#allocation5 + $0x28] sm:$0xff]
          %v933 = vld [vmem:[#allocation5 + $0x30] sm:$0xff]
          %v934 = vld [vmem:[#allocation5 + $0x38] sm:$0xff]
          %v935 = vadd.f32 %v911, %v927
          %v936 = vadd.f32 %v912, %v928
          %v937 = vadd.f32 %v913, %v929
          %v938 = vadd.f32 %v914, %v930
          %v939 = vadd.f32 %v915, %v931
          %v940 = vadd.f32 %v916, %v932
          %v941 = vadd.f32 %v917, %v933
          %v942 = vadd.f32 %v918, %v934
          %v943 = vadd.f32 %v919, %v927
          %v944 = vadd.f32 %v920, %v928
          %v945 = vadd.f32 %v921, %v929
          %v946 = vadd.f32 %v922, %v930
          %v947 = vadd.f32 %v923, %v931
          %v948 = vadd.f32 %v924, %v932
          %v949 = vadd.f32 %v925, %v933
          %v950 = vadd.f32 %v926, %v934
          %v951 = vld [vmem:[#allocation7] sm:$0x1]
          %v952 = vld [vmem:[#allocation8] sm:$0x1]
          %953 = vadd.xlane.f32.xlu0 %v935
          %v954 = vpop.xlane.xlu0 %953
          %955 = vadd.xlane.f32.xlu0 %v936
          %v956 = vpop.xlane.xlu0 %955
          %957 = vadd.xlane.f32.xlu0 %v937
          %v958 = vpop.xlane.xlu0 %957
          %959 = vadd.xlane.f32.xlu0 %v938
          %v960 = vpop.xlane.xlu0 %959
          %961 = vadd.xlane.f32.xlu0 %v939
          %v962 = vpop.xlane.xlu0 %961
          %963 = vadd.xlane.f32.xlu0 %v940
          %v964 = vpop.xlane.xlu0 %963
          %965 = vadd.xlane.f32.xlu0 %v941
          %v966 = vpop.xlane.xlu0 %965
          %967 = vadd.xlane.f32.xlu0 %v942
          %v968 = vpop.xlane.xlu0 %967
          %969 = vadd.xlane.f32.xlu0 %v943
          %v970 = vpop.xlane.xlu0 %969
          %971 = vadd.xlane.f32.xlu0 %v944
          %v972 = vpop.xlane.xlu0 %971
          %973 = vadd.xlane.f32.xlu0 %v945
          %v974 = vpop.xlane.xlu0 %973
          %975 = vadd.xlane.f32.xlu0 %v946
          %v976 = vpop.xlane.xlu0 %975
          %977 = vadd.xlane.f32.xlu0 %v947
          %v978 = vpop.xlane.xlu0 %977
          %979 = vadd.xlane.f32.xlu0 %v948
          %v980 = vpop.xlane.xlu0 %979
          %981 = vadd.xlane.f32.xlu0 %v949
          %v982 = vpop.xlane.xlu0 %981
          %983 = vadd.xlane.f32.xlu0 %v950
          %v984 = vpop.xlane.xlu0 %983
          %v985 = vrcp.pop 128.0
          %v986 = vmul.f32 %v954, %v985
          %v987 = vmul.f32 %v956, %v985
          %v988 = vmul.f32 %v958, %v985
          %v989 = vmul.f32 %v960, %v985
          %v990 = vmul.f32 %v962, %v985
          %v991 = vmul.f32 %v964, %v985
          %v992 = vmul.f32 %v966, %v985
          %v993 = vmul.f32 %v968, %v985
          %v994 = vmul.f32 %v970, %v985
          %v995 = vmul.f32 %v972, %v985
          %v996 = vmul.f32 %v974, %v985
          %v997 = vmul.f32 %v976, %v985
          %v998 = vmul.f32 %v978, %v985
          %v999 = vmul.f32 %v980, %v985
          %v1000 = vmul.f32 %v982, %v985
          %v1001 = vmul.f32 %v984, %v985
          %v1002 = vsub.f32 %v935, %v986
          %v1003 = vsub.f32 %v936, %v987
          %v1004 = vsub.f32 %v937, %v988
          %v1005 = vsub.f32 %v938, %v989
          %v1006 = vsub.f32 %v939, %v990
          %v1007 = vsub.f32 %v940, %v991
          %v1008 = vsub.f32 %v941, %v992
          %v1009 = vsub.f32 %v942, %v993
          %v1010 = vsub.f32 %v943, %v994
          %v1011 = vsub.f32 %v944, %v995
          %v1012 = vsub.f32 %v945, %v996
          %v1013 = vsub.f32 %v946, %v997
          %v1014 = vsub.f32 %v947, %v998
          %v1015 = vsub.f32 %v948, %v999
          %v1016 = vsub.f32 %v949, %v1000
          %v1017 = vsub.f32 %v950, %v1001
          %v1018 = vmul.f32 %v1002, %v1002
          %v1019 = vmul.f32 %v1003, %v1003
          %v1020 = vmul.f32 %v1004, %v1004
          %v1021 = vmul.f32 %v1005, %v1005
          %v1022 = vmul.f32 %v1006, %v1006
          %v1023 = vmul.f32 %v1007, %v1007
          %v1024 = vmul.f32 %v1008, %v1008
          %v1025 = vmul.f32 %v1009, %v1009
          %v1026 = vmul.f32 %v1010, %v1010
          %v1027 = vmul.f32 %v1011, %v1011
          %v1028 = vmul.f32 %v1012, %v1012
          %v1029 = vmul.f32 %v1013, %v1013
          %v1030 = vmul.f32 %v1014, %v1014
          %v1031 = vmul.f32 %v1015, %v1015
          %v1032 = vmul.f32 %v1016, %v1016
          %v1033 = vmul.f32 %v1017, %v1017
          %1034 = vadd.xlane.f32.xlu0 %v1018
          %v1035 = vpop.xlane.xlu0 %1034
          %1036 = vadd.xlane.f32.xlu0 %v1019
          %v1037 = vpop.xlane.xlu0 %1036
          %1038 = vadd.xlane.f32.xlu0 %v1020
          %v1039 = vpop.xlane.xlu0 %1038
          %1040 = vadd.xlane.f32.xlu0 %v1021
          %v1041 = vpop.xlane.xlu0 %1040
          %1042 = vadd.xlane.f32.xlu0 %v1022
          %v1043 = vpop.xlane.xlu0 %1042
          %1044 = vadd.xlane.f32.xlu0 %v1023
          %v1045 = vpop.xlane.xlu0 %1044
          %1046 = vadd.xlane.f32.xlu0 %v1024
          %v1047 = vpop.xlane.xlu0 %1046
          %1048 = vadd.xlane.f32.xlu0 %v1025
          %v1049 = vpop.xlane.xlu0 %1048
          %1050 = vadd.xlane.f32.xlu0 %v1026
          %v1051 = vpop.xlane.xlu0 %1050
          %1052 = vadd.xlane.f32.xlu0 %v1027
          %v1053 = vpop.xlane.xlu0 %1052
          %1054 = vadd.xlane.f32.xlu0 %v1028
          %v1055 = vpop.xlane.xlu0 %1054
          %1056 = vadd.xlane.f32.xlu0 %v1029
          %v1057 = vpop.xlane.xlu0 %1056
          %1058 = vadd.xlane.f32.xlu0 %v1030
          %v1059 = vpop.xlane.xlu0 %1058
          %1060 = vadd.xlane.f32.xlu0 %v1031
          %v1061 = vpop.xlane.xlu0 %1060
          %1062 = vadd.xlane.f32.xlu0 %v1032
          %v1063 = vpop.xlane.xlu0 %1062
          %1064 = vadd.xlane.f32.xlu0 %v1033
          %v1065 = vpop.xlane.xlu0 %1064
          %v1066 = vmul.f32 %v1035, %v985
          %v1067 = vmul.f32 %v1037, %v985
          %v1068 = vmul.f32 %v1039, %v985
          %v1069 = vmul.f32 %v1041, %v985
          %v1070 = vmul.f32 %v1043, %v985
          %v1071 = vmul.f32 %v1045, %v985
          %v1072 = vmul.f32 %v1047, %v985
          %v1073 = vmul.f32 %v1049, %v985
          %v1074 = vmul.f32 %v1051, %v985
          %v1075 = vmul.f32 %v1053, %v985
          %v1076 = vmul.f32 %v1055, %v985
          %v1077 = vmul.f32 %v1057, %v985
          %v1078 = vmul.f32 %v1059, %v985
          %v1079 = vmul.f32 %v1061, %v985
          %v1080 = vmul.f32 %v1063, %v985
          %v1081 = vmul.f32 %v1065, %v985
          %v1082 = vadd.f32 %v1066, 1e-06
          %v1083 = vadd.f32 %v1067, 1e-06
          %v1084 = vadd.f32 %v1068, 1e-06
          %v1085 = vadd.f32 %v1069, 1e-06
          %v1086 = vadd.f32 %v1070, 1e-06
          %v1087 = vadd.f32 %v1071, 1e-06
          %v1088 = vadd.f32 %v1072, 1e-06
          %v1089 = vadd.f32 %v1073, 1e-06
          %v1090 = vadd.f32 %v1074, 1e-06
          %v1091 = vadd.f32 %v1075, 1e-06
          %v1092 = vadd.f32 %v1076, 1e-06
          %v1093 = vadd.f32 %v1077, 1e-06
          %v1094 = vadd.f32 %v1078, 1e-06
          %v1095 = vadd.f32 %v1079, 1e-06
          %v1096 = vadd.f32 %v1080, 1e-06
          %v1097 = vadd.f32 %v1081, 1e-06
          %v1098 = vrsqrt.pop %v1082
          %v1099 = vrsqrt.pop %v1083
          %v1100 = vrsqrt.pop %v1084
          %v1101 = vrsqrt.pop %v1085
          %v1102 = vrsqrt.pop %v1086
          %v1103 = vrsqrt.pop %v1087
          %v1104 = vrsqrt.pop %v1088
          %v1105 = vrsqrt.pop %v1089
          %v1106 = vrsqrt.pop %v1090
          %v1107 = vrsqrt.pop %v1091
          %v1108 = vrsqrt.pop %v1092
          %v1109 = vrsqrt.pop %v1093
          %v1110 = vrsqrt.pop %v1094
          %v1111 = vrsqrt.pop %v1095
          %v1112 = vrsqrt.pop %v1096
          %v1113 = vrsqrt.pop %v1097
          %v1114 = vmul.f32 %v1002, %v1098
          %v1115 = vmul.f32 %v1003, %v1099
          %v1116 = vmul.f32 %v1004, %v1100
          %v1117 = vmul.f32 %v1005, %v1101
          %v1118 = vmul.f32 %v1006, %v1102
          %v1119 = vmul.f32 %v1007, %v1103
          %v1120 = vmul.f32 %v1008, %v1104
          %v1121 = vmul.f32 %v1009, %v1105
          %v1122 = vmul.f32 %v1010, %v1106
          %v1123 = vmul.f32 %v1011, %v1107
          %v1124 = vmul.f32 %v1012, %v1108
          %v1125 = vmul.f32 %v1013, %v1109
          %v1126 = vmul.f32 %v1014, %v1110
          %v1127 = vmul.f32 %v1015, %v1111
          %v1128 = vmul.f32 %v1016, %v1112
          %v1129 = vmul.f32 %v1017, %v1113
          %v1131 = vlaneseq
          %v1132 = vshrl.u32 %v1131, 7
          %v1133 = vsub.s32 0, %v1132
          %v1134 = vrot.slane %v951, %v1133
          %v1136 = vmul.f32 %v1114, %v1134
          %v1137 = vmul.f32 %v1115, %v1134
          %v1138 = vmul.f32 %v1116, %v1134
          %v1139 = vmul.f32 %v1117, %v1134
          %v1140 = vmul.f32 %v1118, %v1134
          %v1141 = vmul.f32 %v1119, %v1134
          %v1142 = vmul.f32 %v1120, %v1134
          %v1143 = vmul.f32 %v1121, %v1134
          %v1144 = vmul.f32 %v1122, %v1134
          %v1145 = vmul.f32 %v1123, %v1134
          %v1146 = vmul.f32 %v1124, %v1134
          %v1147 = vmul.f32 %v1125, %v1134
          %v1148 = vmul.f32 %v1126, %v1134
          %v1149 = vmul.f32 %v1127, %v1134
          %v1150 = vmul.f32 %v1128, %v1134
          %v1151 = vmul.f32 %v1129, %v1134
          %v1153 = vlaneseq
          %v1154 = vshrl.u32 %v1153, 7
          %v1155 = vsub.s32 0, %v1154
          %v1156 = vrot.slane %v952, %v1155
          %v1158 = vadd.f32 %v1136, %v1156
          %v1159 = vadd.f32 %v1137, %v1156
          %v1160 = vadd.f32 %v1138, %v1156
          %v1161 = vadd.f32 %v1139, %v1156
          %v1162 = vadd.f32 %v1140, %v1156
          %v1163 = vadd.f32 %v1141, %v1156
          %v1164 = vadd.f32 %v1142, %v1156
          %v1165 = vadd.f32 %v1143, %v1156
          %v1166 = vadd.f32 %v1144, %v1156
          %v1167 = vadd.f32 %v1145, %v1156
          %v1168 = vadd.f32 %v1146, %v1156
          %v1169 = vadd.f32 %v1147, %v1156
          %v1170 = vadd.f32 %v1148, %v1156
          %v1171 = vadd.f32 %v1149, %v1156
          %v1172 = vadd.f32 %v1150, %v1156
          %v1173 = vadd.f32 %v1151, %v1156
          %1174 = vst [vmem:[%s872] sm:$0xff] %v1158
          %1175 = vst [vmem:[%s872 + $0x8] sm:$0xff] %v1159
          %1176 = vst [vmem:[%s872 + $0x10] sm:$0xff] %v1160
          %1177 = vst [vmem:[%s872 + $0x18] sm:$0xff] %v1161
          %1178 = vst [vmem:[%s872 + $0x20] sm:$0xff] %v1162
          %1179 = vst [vmem:[%s872 + $0x28] sm:$0xff] %v1163
          %1180 = vst [vmem:[%s872 + $0x30] sm:$0xff] %v1164
          %1181 = vst [vmem:[%s872 + $0x38] sm:$0xff] %v1165
          %1182 = vst [vmem:[%s872 + $0x40] sm:$0xff] %v1166
          %1183 = vst [vmem:[%s872 + $0x48] sm:$0xff] %v1167
          %1184 = vst [vmem:[%s872 + $0x50] sm:$0xff] %v1168
          %1185 = vst [vmem:[%s872 + $0x58] sm:$0xff] %v1169
          %1186 = vst [vmem:[%s872 + $0x60] sm:$0xff] %v1170
          %1187 = vst [vmem:[%s872 + $0x68] sm:$0xff] %v1171
          %1188 = vst [vmem:[%s872 + $0x70] sm:$0xff] %v1172
          %1189 = vst [vmem:[%s872 + $0x78] sm:$0xff] %v1173
        $region124: #{tpu_custom_call.1} parent=87 // pred_fallthru
          _
        %v1190 = vld [vmem:[%s872] sm:$0xff]
        %v1191 = vld [vmem:[%s872 + $0x8] sm:$0xff]
        %v1192 = vld [vmem:[%s872 + $0x10] sm:$0xff]
        %v1193 = vld [vmem:[%s872 + $0x18] sm:$0xff]
        %v1194 = vld [vmem:[%s872 + $0x20] sm:$0xff]
        %v1195 = vld [vmem:[%s872 + $0x28] sm:$0xff]
        %v1196 = vld [vmem:[%s872 + $0x30] sm:$0xff]
        %v1197 = vld [vmem:[%s872 + $0x38] sm:$0xff]
        %v1198 = vld [vmem:[%s872 + $0x40] sm:$0xff]
        %v1199 = vld [vmem:[%s872 + $0x48] sm:$0xff]
        %v1200 = vld [vmem:[%s872 + $0x50] sm:$0xff]
        %v1201 = vld [vmem:[%s872 + $0x58] sm:$0xff]
        %v1202 = vld [vmem:[%s872 + $0x60] sm:$0xff]
        %v1203 = vld [vmem:[%s872 + $0x68] sm:$0xff]
        %v1204 = vld [vmem:[%s872 + $0x70] sm:$0xff]
        %v1205 = vld [vmem:[%s872 + $0x78] sm:$0xff]
        %v1206 = vpack.c.bf16 %v1191, %v1190
        %v1207 = vpack.c.bf16 %v1193, %v1192
        %v1208 = vpack.c.bf16 %v1195, %v1194
        %v1209 = vpack.c.bf16 %v1197, %v1196
        %v1210 = vpack.c.bf16 %v1199, %v1198
        %v1211 = vpack.c.bf16 %v1201, %v1200
        %v1212 = vpack.c.bf16 %v1203, %v1202
        %v1213 = vpack.c.bf16 %v1205, %v1204
        %v1214 = vld [vmem:[%s745] sm:$0xff]
        %v1215 = vld [vmem:[%s745 + $0x8] sm:$0xf]
        %v1216 = vld [vmem:[%s745 + $0xc] sm:$0xff]
        %v1217 = vld [vmem:[%s745 + $0x14] sm:$0xf]
        %v1218 = vld [vmem:[%s745 + $0x18] sm:$0xff]
        %v1219 = vld [vmem:[%s745 + $0x20] sm:$0xf]
        %v1220 = vld [vmem:[%s745 + $0x24] sm:$0xff]
        %v1221 = vld [vmem:[%s745 + $0x2c] sm:$0xf]
        %v1222 = vld [vmem:[%s745 + $0x30] sm:$0xff]
        %v1223 = vld [vmem:[%s745 + $0x38] sm:$0xf]
        %v1224 = vld [vmem:[%s745 + $0x3c] sm:$0xff]
        %v1225 = vld [vmem:[%s745 + $0x44] sm:$0xf]
        %v1226 = vld [vmem:[%s745 + $0x48] sm:$0xff]
        %v1227 = vld [vmem:[%s745 + $0x50] sm:$0xf]
        %v1228 = vld [vmem:[%s745 + $0x54] sm:$0xff]
        %v1229 = vld [vmem:[%s745 + $0x5c] sm:$0xf]
        %v1230 = vld [vmem:[%s745 + $0x60] sm:$0xff]
        %v1231 = vld [vmem:[%s745 + $0x68] sm:$0xf]
        %v1232 = vld [vmem:[%s745 + $0x6c] sm:$0xff]
        %v1233 = vld [vmem:[%s745 + $0x74] sm:$0xf]
        %v1234 = vld [vmem:[%s745 + $0x78] sm:$0xff]
        %v1235 = vld [vmem:[%s745 + $0x80] sm:$0xf]
        %v1236 = vld [vmem:[%s745 + $0x84] sm:$0xff]
        %v1237 = vld [vmem:[%s745 + $0x8c] sm:$0xf]
        %v1238 = vld [vmem:[%s745 + $0x90] sm:$0xff]
        %v1239 = vld [vmem:[%s745 + $0x98] sm:$0xf]
        %v1240 = vld [vmem:[%s745 + $0x9c] sm:$0xff]
        %v1241 = vld [vmem:[%s745 + $0xa4] sm:$0xf]
        %v1242 = vld [vmem:[%s745 + $0xa8] sm:$0xff]
        %v1243 = vld [vmem:[%s745 + $0xb0] sm:$0xf]
        %v1244 = vld [vmem:[%s745 + $0xb4] sm:$0xff]
        %v1245 = vld [vmem:[%s745 + $0xbc] sm:$0xf]
        %v1246 = vld [vmem:[%s882] sm:$0x7]
        %v1248 = vlaneseq
        %v1249 = vshrl.u32 %v1248, 7
        %v1250 = vsub.s32 0, %v1249
        %v1251 = vrot.slane %v1246, %v1250
        %v1252 = vlaneseq
        %v1253 = vshrl.u32 %v1252, 7
        %v1254 = vsub.s32 1, %v1253
        %v1255 = vrot.slane %v1246, %v1254
        %v1256 = vlaneseq
        %v1257 = vshrl.u32 %v1256, 7
        %v1258 = vsub.s32 2, %v1257
        %v1259 = vrot.slane %v1246, %v1258
        %v1295 = vunpack.c.l.b16 %v1214
        %v1296 = vunpack.c.h.b16 %v1214
        %v1297 = vunpack.c.l.b16 %v1215
        %v1298 = vunpack.c.l.b16 %v1216
        %v1299 = vunpack.c.h.b16 %v1216
        %v1300 = vunpack.c.l.b16 %v1217
        %v1301 = vunpack.c.l.b16 %v1218
        %v1302 = vunpack.c.h.b16 %v1218
        %v1303 = vunpack.c.l.b16 %v1219
        %v1304 = vunpack.c.l.b16 %v1220
        %v1305 = vunpack.c.h.b16 %v1220
        %v1306 = vunpack.c.l.b16 %v1221
        %v1307 = vunpack.c.l.b16 %v1222
        %v1308 = vunpack.c.h.b16 %v1222
        %v1309 = vunpack.c.l.b16 %v1223
        %v1310 = vunpack.c.l.b16 %v1224
        %v1311 = vunpack.c.h.b16 %v1224
        %v1312 = vunpack.c.l.b16 %v1225
        %v1313 = vunpack.c.l.b16 %v1226
        %v1314 = vunpack.c.h.b16 %v1226
        %v1315 = vunpack.c.l.b16 %v1227
        %v1316 = vunpack.c.l.b16 %v1228
        %v1317 = vunpack.c.h.b16 %v1228
        %v1318 = vunpack.c.l.b16 %v1229
        %v1319 = vunpack.c.l.b16 %v1230
        %v1320 = vunpack.c.h.b16 %v1230
        %v1321 = vunpack.c.l.b16 %v1231
        %v1322 = vunpack.c.l.b16 %v1232
        %v1323 = vunpack.c.h.b16 %v1232
        %v1324 = vunpack.c.l.b16 %v1233
        %v1325 = vunpack.c.l.b16 %v1234
        %v1326 = vunpack.c.h.b16 %v1234
        %v1327 = vunpack.c.l.b16 %v1235
        %v1328 = vunpack.c.l.b16 %v1236
        %v1329 = vunpack.c.h.b16 %v1236
        %v1330 = vunpack.c.l.b16 %v1237
        %v1331 = vunpack.c.l.b16 %v1238
        %v1332 = vunpack.c.h.b16 %v1238
        %v1333 = vunpack.c.l.b16 %v1239
        %v1334 = vunpack.c.l.b16 %v1240
        %v1335 = vunpack.c.h.b16 %v1240
        %v1336 = vunpack.c.l.b16 %v1241
        %v1337 = vunpack.c.l.b16 %v1242
        %v1338 = vunpack.c.h.b16 %v1242
        %v1339 = vunpack.c.l.b16 %v1243
        %v1340 = vunpack.c.l.b16 %v1244
        %v1341 = vunpack.c.h.b16 %v1244
        %v1342 = vunpack.c.l.b16 %v1245
        %v1343 = vpack.c.b16 %v1298, %v1295
        %v1344 = vpack.c.b16 %v1299, %v1296
        %v1345 = vpack.c.b16 %v1300, %v1297
        %v1346 = vpack.c.b16 %v1304, %v1301
        %v1347 = vpack.c.b16 %v1305, %v1302
        %v1348 = vpack.c.b16 %v1306, %v1303
        %v1349 = vpack.c.b16 %v1310, %v1307
        %v1350 = vpack.c.b16 %v1311, %v1308
        %v1351 = vpack.c.b16 %v1312, %v1309
        %v1352 = vpack.c.b16 %v1316, %v1313
        %v1353 = vpack.c.b16 %v1317, %v1314
        %v1354 = vpack.c.b16 %v1318, %v1315
        %v1355 = vpack.c.b16 %v1322, %v1319
        %v1356 = vpack.c.b16 %v1323, %v1320
        %v1357 = vpack.c.b16 %v1324, %v1321
        %v1358 = vpack.c.b16 %v1328, %v1325
        %v1359 = vpack.c.b16 %v1329, %v1326
        %v1360 = vpack.c.b16 %v1330, %v1327
        %v1361 = vpack.c.b16 %v1334, %v1331
        %v1362 = vpack.c.b16 %v1335, %v1332
        %v1363 = vpack.c.b16 %v1336, %v1333
        %v1364 = vpack.c.b16 %v1340, %v1337
        %v1365 = vpack.c.b16 %v1341, %v1338
        %v1366 = vpack.c.b16 %v1342, %v1339
        %1391 = vmatprep.subr.bf16.mxu0 %v1344
        %1392 = vmatpush1.bf16.msra.mxu0 %v1343
        %1393 = vmatprep.subr.bf16.mxu0 %v1347
        %1394 = vmatpush1.bf16.msra.mxu0 %v1346
        %1395 = vmatprep.subr.bf16.mxu0 %v1350
        %1396 = vmatpush1.bf16.msra.mxu0 %v1349
        %1397 = vmatprep.subr.bf16.mxu0 %v1353
        %1398 = vmatpush1.bf16.msra.mxu0 %v1352
        %1399 = vmatprep.subr.bf16.mxu0 %v1356
        %1400 = vmatpush1.bf16.msra.mxu0 %v1355
        %1401 = vmatprep.subr.bf16.mxu0 %v1359
        %1402 = vmatpush1.bf16.msra.mxu0 %v1358
        %1403 = vmatprep.subr.bf16.mxu0 %v1362
        %1404 = vmatpush1.bf16.msra.mxu0 %v1361
        %1405 = vmatprep.subr.bf16.mxu0 %v1365
        %1406 = vmatpush1.bf16.msra.mxu0 %v1364
        %1407 = vmatprep.subr.bf16.mxu0 0
        %1408 = vmatpush1.bf16.msra.mxu0 0
        %1409 = vmatprep.subr.bf16.mxu0 0
        %1410 = vmatpush1.bf16.msra.mxu0 0
        %1411 = vmatprep.subr.bf16.mxu0 0
        %1412 = vmatpush1.bf16.msra.mxu0 0
        %1413 = vmatprep.subr.bf16.mxu0 0
        %1414 = vmatpush1.bf16.msra.mxu0 0
        %1415 = vmatprep.subr.bf16.mxu0 0
        %1416 = vmatpush1.bf16.msra.mxu0 0
        %1417 = vmatprep.subr.bf16.mxu0 0
        %1418 = vmatpush1.bf16.msra.mxu0 0
        %1419 = vmatprep.subr.bf16.mxu0 0
        %1420 = vmatpush1.bf16.msra.mxu0 0
        %1421 = vmatprep.subr.bf16.mxu0 0
        %1422 = vmatpush1.bf16.msra.mxu0 0
        %1423 = vmatprep.mubr.bf16.mxu0 0
        %1424 = vmatmul.mubr.bf16.gmra.mrb[0].mxu0 %v1206
        %v1425 = vpop.f32.mrb[0].mxu0
        %v1426 = vadd.f32 %v1251, %v1425
        %v1427 = vpop.f32.mrb[0].mxu0
        %v1428 = vadd.f32 %v1255, %v1427
        %v1429 = vpop.f32.mrb[0].mxu0
        %v1430 = vadd.f32 %v1251, %v1429
        %v1431 = vpop.f32.mrb[0].mxu0
        %v1432 = vadd.f32 %v1255, %v1431
        %1433 = vmatprep.mubr.bf16.mxu0 0
        %1434 = vmatmul.mubr.bf16.gmra.mrb[0].mxu0 %v1207
        %v1435 = vpop.f32.mrb[0].mxu0
        %v1436 = vadd.f32 %v1251, %v1435
        %v1437 = vpop.f32.mrb[0].mxu0
        %v1438 = vadd.f32 %v1255, %v1437
        %v1439 = vpop.f32.mrb[0].mxu0
        %v1440 = vadd.f32 %v1251, %v1439
        %v1441 = vpop.f32.mrb[0].mxu0
        %v1442 = vadd.f32 %v1255, %v1441
        %1443 = vmatprep.mubr.bf16.mxu0 0
        %1444 = vmatmul.mubr.bf16.gmra.mrb[0].mxu0 %v1208
        %v1445 = vpop.f32.mrb[0].mxu0
        %v1446 = vadd.f32 %v1251, %v1445
        %v1447 = vpop.f32.mrb[0].mxu0
        %v1448 = vadd.f32 %v1255, %v1447
        %v1449 = vpop.f32.mrb[0].mxu0
        %v1450 = vadd.f32 %v1251, %v1449
        %v1451 = vpop.f32.mrb[0].mxu0
        %v1452 = vadd.f32 %v1255, %v1451
        %1453 = vmatprep.mubr.bf16.mxu0 0
        %1454 = vmatmul.mubr.bf16.gmra.mrb[0].mxu0 %v1209
        %v1455 = vpop.f32.mrb[0].mxu0
        %v1456 = vadd.f32 %v1251, %v1455
        %v1457 = vpop.f32.mrb[0].mxu0
        %v1458 = vadd.f32 %v1255, %v1457
        %v1459 = vpop.f32.mrb[0].mxu0
        %v1460 = vadd.f32 %v1251, %v1459
        %v1461 = vpop.f32.mrb[0].mxu0
        %v1462 = vadd.f32 %v1255, %v1461
        %1463 = vmatprep.mubr.bf16.mxu0 0
        %1464 = vmatmul.mubr.bf16.gmra.mrb[0].mxu0 %v1210
        %v1465 = vpop.f32.mrb[0].mxu0
        %v1466 = vadd.f32 %v1251, %v1465
        %v1467 = vpop.f32.mrb[0].mxu0
        %v1468 = vadd.f32 %v1255, %v1467
        %v1469 = vpop.f32.mrb[0].mxu0
        %v1470 = vadd.f32 %v1251, %v1469
        %v1471 = vpop.f32.mrb[0].mxu0
        %v1472 = vadd.f32 %v1255, %v1471
        %1473 = vmatprep.mubr.bf16.mxu0 0
        %1474 = vmatmul.mubr.bf16.gmra.mrb[0].mxu0 %v1211
        %v1475 = vpop.f32.mrb[0].mxu0
        %v1476 = vadd.f32 %v1251, %v1475
        %v1477 = vpop.f32.mrb[0].mxu0
        %v1478 = vadd.f32 %v1255, %v1477
        %v1479 = vpop.f32.mrb[0].mxu0
        %v1480 = vadd.f32 %v1251, %v1479
        %v1481 = vpop.f32.mrb[0].mxu0
        %v1482 = vadd.f32 %v1255, %v1481
        %1483 = vmatprep.mubr.bf16.mxu0 0
        %1484 = vmatmul.mubr.bf16.gmra.mrb[0].mxu0 %v1212
        %v1485 = vpop.f32.mrb[0].mxu0
        %v1486 = vadd.f32 %v1251, %v1485
        %v1487 = vpop.f32.mrb[0].mxu0
        %v1488 = vadd.f32 %v1255, %v1487
        %v1489 = vpop.f32.mrb[0].mxu0
        %v1490 = vadd.f32 %v1251, %v1489
        %v1491 = vpop.f32.mrb[0].mxu0
        %v1492 = vadd.f32 %v1255, %v1491
        %1493 = vmatprep.mubr.bf16.mxu0 0
        %1494 = vmatmul.mubr.bf16.gmra.mrb[0].mxu0 %v1213
        %v1495 = vpop.f32.mrb[0].mxu0
        %v1496 = vadd.f32 %v1251, %v1495
        %v1497 = vpop.f32.mrb[0].mxu0
        %v1498 = vadd.f32 %v1255, %v1497
        %v1499 = vpop.f32.mrb[0].mxu0
        %v1500 = vadd.f32 %v1251, %v1499
        %v1501 = vpop.f32.mrb[0].mxu0
        %v1502 = vadd.f32 %v1255, %v1501
        %1503 = vdwg.mxu0
        %1504 = vmatprep.subr.bf16.mxu0 0
        %1505 = vmatpush1.bf16.msra.mxu0 %v1345
        %1506 = vmatprep.subr.bf16.mxu0 0
        %1507 = vmatpush1.bf16.msra.mxu0 %v1348
        %1508 = vmatprep.subr.bf16.mxu0 0
        %1509 = vmatpush1.bf16.msra.mxu0 %v1351
        %1510 = vmatprep.subr.bf16.mxu0 0
        %1511 = vmatpush1.bf16.msra.mxu0 %v1354
        %1512 = vmatprep.subr.bf16.mxu0 0
        %1513 = vmatpush1.bf16.msra.mxu0 %v1357
        %1514 = vmatprep.subr.bf16.mxu0 0
        %1515 = vmatpush1.bf16.msra.mxu0 %v1360
        %1516 = vmatprep.subr.bf16.mxu0 0
        %1517 = vmatpush1.bf16.msra.mxu0 %v1363
        %1518 = vmatprep.subr.bf16.mxu0 0
        %1519 = vmatpush1.bf16.msra.mxu0 %v1366
        %1520 = vmatprep.subr.bf16.mxu0 0
        %1521 = vmatpush1.bf16.msra.mxu0 0
        %1522 = vmatprep.subr.bf16.mxu0 0
        %1523 = vmatpush1.bf16.msra.mxu0 0
        %1524 = vmatprep.subr.bf16.mxu0 0
        %1525 = vmatpush1.bf16.msra.mxu0 0
        %1526 = vmatprep.subr.bf16.mxu0 0
        %1527 = vmatpush1.bf16.msra.mxu0 0
        %1528 = vmatprep.subr.bf16.mxu0 0
        %1529 = vmatpush1.bf16.msra.mxu0 0
        %1530 = vmatprep.subr.bf16.mxu0 0
        %1531 = vmatpush1.bf16.msra.mxu0 0
        %1532 = vmatprep.subr.bf16.mxu0 0
        %1533 = vmatpush1.bf16.msra.mxu0 0
        %1534 = vmatprep.subr.bf16.mxu0 0
        %1535 = vmatpush1.bf16.msra.mxu0 0
        %1536 = vmatprep.mubr.bf16.mxu0 0
        %1537 = vmatmul.mubr.bf16.gmra.mrb[0].mxu0 %v1206
        %v1538 = vpop.f32.mrb[0].mxu0
        %v1539 = vadd.f32 %v1259, %v1538
        %v1540 = vpop.f32.mrb[0].mxu0
        %v1541 = vpop.f32.mrb[0].mxu0
        %v1542 = vadd.f32 %v1259, %v1541
        %v1543 = vpop.f32.mrb[0].mxu0
        %1544 = vmatprep.mubr.bf16.mxu0 0
        %1545 = vmatmul.mubr.bf16.gmra.mrb[0].mxu0 %v1207
        %v1546 = vpop.f32.mrb[0].mxu0
        %v1547 = vadd.f32 %v1259, %v1546
        %v1548 = vpop.f32.mrb[0].mxu0
        %v1549 = vpop.f32.mrb[0].mxu0
        %v1550 = vadd.f32 %v1259, %v1549
        %v1551 = vpop.f32.mrb[0].mxu0
        %1552 = vmatprep.mubr.bf16.mxu0 0
        %1553 = vmatmul.mubr.bf16.gmra.mrb[0].mxu0 %v1208
        %v1554 = vpop.f32.mrb[0].mxu0
        %v1555 = vadd.f32 %v1259, %v1554
        %v1556 = vpop.f32.mrb[0].mxu0
        %v1557 = vpop.f32.mrb[0].mxu0
        %v1558 = vadd.f32 %v1259, %v1557
        %v1559 = vpop.f32.mrb[0].mxu0
        %1560 = vmatprep.mubr.bf16.mxu0 0
        %1561 = vmatmul.mubr.bf16.gmra.mrb[0].mxu0 %v1209
        %v1562 = vpop.f32.mrb[0].mxu0
        %v1563 = vadd.f32 %v1259, %v1562
        %v1564 = vpop.f32.mrb[0].mxu0
        %v1565 = vpop.f32.mrb[0].mxu0
        %v1566 = vadd.f32 %v1259, %v1565
        %v1567 = vpop.f32.mrb[0].mxu0
        %1568 = vmatprep.mubr.bf16.mxu0 0
        %1569 = vmatmul.mubr.bf16.gmra.mrb[0].mxu0 %v1210
        %v1570 = vpop.f32.mrb[0].mxu0
        %v1571 = vadd.f32 %v1259, %v1570
        %v1572 = vpop.f32.mrb[0].mxu0
        %v1573 = vpop.f32.mrb[0].mxu0
        %v1574 = vadd.f32 %v1259, %v1573
        %v1575 = vpop.f32.mrb[0].mxu0
        %1576 = vmatprep.mubr.bf16.mxu0 0
        %1577 = vmatmul.mubr.bf16.gmra.mrb[0].mxu0 %v1211
        %v1578 = vpop.f32.mrb[0].mxu0
        %v1579 = vadd.f32 %v1259, %v1578
        %v1580 = vpop.f32.mrb[0].mxu0
        %v1581 = vpop.f32.mrb[0].mxu0
        %v1582 = vadd.f32 %v1259, %v1581
        %v1583 = vpop.f32.mrb[0].mxu0
        %1584 = vmatprep.mubr.bf16.mxu0 0
        %1585 = vmatmul.mubr.bf16.gmra.mrb[0].mxu0 %v1212
        %v1586 = vpop.f32.mrb[0].mxu0
        %v1587 = vadd.f32 %v1259, %v1586
        %v1588 = vpop.f32.mrb[0].mxu0
        %v1589 = vpop.f32.mrb[0].mxu0
        %v1590 = vadd.f32 %v1259, %v1589
        %v1591 = vpop.f32.mrb[0].mxu0
        %1592 = vmatprep.mubr.bf16.mxu0 0
        %1593 = vmatmul.mubr.bf16.gmra.mrb[0].mxu0 %v1213
        %v1594 = vpop.f32.mrb[0].mxu0
        %v1595 = vadd.f32 %v1259, %v1594
        %v1596 = vpop.f32.mrb[0].mxu0
        %v1597 = vpop.f32.mrb[0].mxu0
        %v1598 = vadd.f32 %v1259, %v1597
        %v1599 = vpop.f32.mrb[0].mxu0
        %1600 = vdwg.mxu0
        %1617 = vrot.lane.b32.xlu0 %v1426, 96
        %v1618 = vpop.permute.xlu0 %1617
        %1619 = vrot.lane.b32.xlu0 %v1430, 96
        %v1620 = vpop.permute.xlu0 %1619
        %1621 = vrot.lane.b32.xlu0 %v1436, 96
        %v1622 = vpop.permute.xlu0 %1621
        %1623 = vrot.lane.b32.xlu0 %v1440, 96
        %v1624 = vpop.permute.xlu0 %1623
        %1625 = vrot.lane.b32.xlu0 %v1446, 96
        %v1626 = vpop.permute.xlu0 %1625
        %1627 = vrot.lane.b32.xlu0 %v1450, 96
        %v1628 = vpop.permute.xlu0 %1627
        %1629 = vrot.lane.b32.xlu0 %v1456, 96
        %v1630 = vpop.permute.xlu0 %1629
        %1631 = vrot.lane.b32.xlu0 %v1460, 96
        %v1632 = vpop.permute.xlu0 %1631
        %1633 = vrot.lane.b32.xlu0 %v1466, 96
        %v1634 = vpop.permute.xlu0 %1633
        %1635 = vrot.lane.b32.xlu0 %v1470, 96
        %v1636 = vpop.permute.xlu0 %1635
        %1637 = vrot.lane.b32.xlu0 %v1476, 96
        %v1638 = vpop.permute.xlu0 %1637
        %1639 = vrot.lane.b32.xlu0 %v1480, 96
        %v1640 = vpop.permute.xlu0 %1639
        %1641 = vrot.lane.b32.xlu0 %v1486, 96
        %v1642 = vpop.permute.xlu0 %1641
        %1643 = vrot.lane.b32.xlu0 %v1490, 96
        %v1644 = vpop.permute.xlu0 %1643
        %1645 = vrot.lane.b32.xlu0 %v1496, 96
        %v1646 = vpop.permute.xlu0 %1645
        %1647 = vrot.lane.b32.xlu0 %v1500, 96
        %v1648 = vpop.permute.xlu0 %1647
        %1665 = vrot.lane.b32.xlu0 %v1426, 64
        %v1666 = vpop.permute.xlu0 %1665
        %1667 = vrot.lane.b32.xlu0 %v1430, 64
        %v1668 = vpop.permute.xlu0 %1667
        %1669 = vrot.lane.b32.xlu0 %v1436, 64
        %v1670 = vpop.permute.xlu0 %1669
        %1671 = vrot.lane.b32.xlu0 %v1440, 64
        %v1672 = vpop.permute.xlu0 %1671
        %1673 = vrot.lane.b32.xlu0 %v1446, 64
        %v1674 = vpop.permute.xlu0 %1673
        %1675 = vrot.lane.b32.xlu0 %v1450, 64
        %v1676 = vpop.permute.xlu0 %1675
        %1677 = vrot.lane.b32.xlu0 %v1456, 64
        %v1678 = vpop.permute.xlu0 %1677
        %1679 = vrot.lane.b32.xlu0 %v1460, 64
        %v1680 = vpop.permute.xlu0 %1679
        %1681 = vrot.lane.b32.xlu0 %v1466, 64
        %v1682 = vpop.permute.xlu0 %1681
        %1683 = vrot.lane.b32.xlu0 %v1470, 64
        %v1684 = vpop.permute.xlu0 %1683
        %1685 = vrot.lane.b32.xlu0 %v1476, 64
        %v1686 = vpop.permute.xlu0 %1685
        %1687 = vrot.lane.b32.xlu0 %v1480, 64
        %v1688 = vpop.permute.xlu0 %1687
        %1689 = vrot.lane.b32.xlu0 %v1486, 64
        %v1690 = vpop.permute.xlu0 %1689
        %1691 = vrot.lane.b32.xlu0 %v1490, 64
        %v1692 = vpop.permute.xlu0 %1691
        %1693 = vrot.lane.b32.xlu0 %v1496, 64
        %v1694 = vpop.permute.xlu0 %1693
        %1695 = vrot.lane.b32.xlu0 %v1500, 64
        %v1696 = vpop.permute.xlu0 %1695
        %1713 = vrot.lane.b32.xlu0 %v1426, 32
        %v1714 = vpop.permute.xlu0 %1713
        %1715 = vrot.lane.b32.xlu0 %v1430, 32
        %v1716 = vpop.permute.xlu0 %1715
        %1717 = vrot.lane.b32.xlu0 %v1436, 32
        %v1718 = vpop.permute.xlu0 %1717
        %1719 = vrot.lane.b32.xlu0 %v1440, 32
        %v1720 = vpop.permute.xlu0 %1719
        %1721 = vrot.lane.b32.xlu0 %v1446, 32
        %v1722 = vpop.permute.xlu0 %1721
        %1723 = vrot.lane.b32.xlu0 %v1450, 32
        %v1724 = vpop.permute.xlu0 %1723
        %1725 = vrot.lane.b32.xlu0 %v1456, 32
        %v1726 = vpop.permute.xlu0 %1725
        %1727 = vrot.lane.b32.xlu0 %v1460, 32
        %v1728 = vpop.permute.xlu0 %1727
        %1729 = vrot.lane.b32.xlu0 %v1466, 32
        %v1730 = vpop.permute.xlu0 %1729
        %1731 = vrot.lane.b32.xlu0 %v1470, 32
        %v1732 = vpop.permute.xlu0 %1731
        %1733 = vrot.lane.b32.xlu0 %v1476, 32
        %v1734 = vpop.permute.xlu0 %1733
        %1735 = vrot.lane.b32.xlu0 %v1480, 32
        %v1736 = vpop.permute.xlu0 %1735
        %1737 = vrot.lane.b32.xlu0 %v1486, 32
        %v1738 = vpop.permute.xlu0 %1737
        %1739 = vrot.lane.b32.xlu0 %v1490, 32
        %v1740 = vpop.permute.xlu0 %1739
        %1741 = vrot.lane.b32.xlu0 %v1496, 32
        %v1742 = vpop.permute.xlu0 %1741
        %1743 = vrot.lane.b32.xlu0 %v1500, 32
        %v1744 = vpop.permute.xlu0 %1743
        %v1761 = vpack.c.bf16 %v1430, %v1426
        %v1762 = vpack.c.bf16 %v1440, %v1436
        %v1763 = vpack.c.bf16 %v1450, %v1446
        %v1764 = vpack.c.bf16 %v1460, %v1456
        %v1765 = vpack.c.bf16 %v1470, %v1466
        %v1766 = vpack.c.bf16 %v1480, %v1476
        %v1767 = vpack.c.bf16 %v1490, %v1486
        %v1768 = vpack.c.bf16 %v1500, %v1496
        %v1769 = vpack.c.bf16 %v1620, %v1618
        %v1770 = vpack.c.bf16 %v1624, %v1622
        %v1771 = vpack.c.bf16 %v1628, %v1626
        %v1772 = vpack.c.bf16 %v1632, %v1630
        %v1773 = vpack.c.bf16 %v1636, %v1634
        %v1774 = vpack.c.bf16 %v1640, %v1638
        %v1775 = vpack.c.bf16 %v1644, %v1642
        %v1776 = vpack.c.bf16 %v1648, %v1646
        %v1777 = vpack.c.bf16 %v1668, %v1666
        %v1778 = vpack.c.bf16 %v1672, %v1670
        %v1779 = vpack.c.bf16 %v1676, %v1674
        %v1780 = vpack.c.bf16 %v1680, %v1678
        %v1781 = vpack.c.bf16 %v1684, %v1682
        %v1782 = vpack.c.bf16 %v1688, %v1686
        %v1783 = vpack.c.bf16 %v1692, %v1690
        %v1784 = vpack.c.bf16 %v1696, %v1694
        %v1785 = vpack.c.bf16 %v1716, %v1714
        %v1786 = vpack.c.bf16 %v1720, %v1718
        %v1787 = vpack.c.bf16 %v1724, %v1722
        %v1788 = vpack.c.bf16 %v1728, %v1726
        %v1789 = vpack.c.bf16 %v1732, %v1730
        %v1790 = vpack.c.bf16 %v1736, %v1734
        %v1791 = vpack.c.bf16 %v1740, %v1738
        %v1792 = vpack.c.bf16 %v1744, %v1742
        %1809 = vrot.lane.b32.xlu0 %v1428, 96
        %v1810 = vpop.permute.xlu0 %1809
        %1811 = vrot.lane.b32.xlu0 %v1432, 96
        %v1812 = vpop.permute.xlu0 %1811
        %1813 = vrot.lane.b32.xlu0 %v1438, 96
        %v1814 = vpop.permute.xlu0 %1813
        %1815 = vrot.lane.b32.xlu0 %v1442, 96
        %v1816 = vpop.permute.xlu0 %1815
        %1817 = vrot.lane.b32.xlu0 %v1448, 96
        %v1818 = vpop.permute.xlu0 %1817
        %1819 = vrot.lane.b32.xlu0 %v1452, 96
        %v1820 = vpop.permute.xlu0 %1819
        %1821 = vrot.lane.b32.xlu0 %v1458, 96
        %v1822 = vpop.permute.xlu0 %1821
        %1823 = vrot.lane.b32.xlu0 %v1462, 96
        %v1824 = vpop.permute.xlu0 %1823
        %1825 = vrot.lane.b32.xlu0 %v1468, 96
        %v1826 = vpop.permute.xlu0 %1825
        %1827 = vrot.lane.b32.xlu0 %v1472, 96
        %v1828 = vpop.permute.xlu0 %1827
        %1829 = vrot.lane.b32.xlu0 %v1478, 96
        %v1830 = vpop.permute.xlu0 %1829
        %1831 = vrot.lane.b32.xlu0 %v1482, 96
        %v1832 = vpop.permute.xlu0 %1831
        %1833 = vrot.lane.b32.xlu0 %v1488, 96
        %v1834 = vpop.permute.xlu0 %1833
        %1835 = vrot.lane.b32.xlu0 %v1492, 96
        %v1836 = vpop.permute.xlu0 %1835
        %1837 = vrot.lane.b32.xlu0 %v1498, 96
        %v1838 = vpop.permute.xlu0 %1837
        %1839 = vrot.lane.b32.xlu0 %v1502, 96
        %v1840 = vpop.permute.xlu0 %1839
        %1857 = vrot.lane.b32.xlu0 %v1428, 64
        %v1858 = vpop.permute.xlu0 %1857
        %1859 = vrot.lane.b32.xlu0 %v1432, 64
        %v1860 = vpop.permute.xlu0 %1859
        %1861 = vrot.lane.b32.xlu0 %v1438, 64
        %v1862 = vpop.permute.xlu0 %1861
        %1863 = vrot.lane.b32.xlu0 %v1442, 64
        %v1864 = vpop.permute.xlu0 %1863
        %1865 = vrot.lane.b32.xlu0 %v1448, 64
        %v1866 = vpop.permute.xlu0 %1865
        %1867 = vrot.lane.b32.xlu0 %v1452, 64
        %v1868 = vpop.permute.xlu0 %1867
        %1869 = vrot.lane.b32.xlu0 %v1458, 64
        %v1870 = vpop.permute.xlu0 %1869
        %1871 = vrot.lane.b32.xlu0 %v1462, 64
        %v1872 = vpop.permute.xlu0 %1871
        %1873 = vrot.lane.b32.xlu0 %v1468, 64
        %v1874 = vpop.permute.xlu0 %1873
        %1875 = vrot.lane.b32.xlu0 %v1472, 64
        %v1876 = vpop.permute.xlu0 %1875
        %1877 = vrot.lane.b32.xlu0 %v1478, 64
        %v1878 = vpop.permute.xlu0 %1877
        %1879 = vrot.lane.b32.xlu0 %v1482, 64
        %v1880 = vpop.permute.xlu0 %1879
        %1881 = vrot.lane.b32.xlu0 %v1488, 64
        %v1882 = vpop.permute.xlu0 %1881
        %1883 = vrot.lane.b32.xlu0 %v1492, 64
        %v1884 = vpop.permute.xlu0 %1883
        %1885 = vrot.lane.b32.xlu0 %v1498, 64
        %v1886 = vpop.permute.xlu0 %1885
        %1887 = vrot.lane.b32.xlu0 %v1502, 64
        %v1888 = vpop.permute.xlu0 %1887
        %1905 = vrot.lane.b32.xlu0 %v1428, 32
        %v1906 = vpop.permute.xlu0 %1905
        %1907 = vrot.lane.b32.xlu0 %v1432, 32
        %v1908 = vpop.permute.xlu0 %1907
        %1909 = vrot.lane.b32.xlu0 %v1438, 32
        %v1910 = vpop.permute.xlu0 %1909
        %1911 = vrot.lane.b32.xlu0 %v1442, 32
        %v1912 = vpop.permute.xlu0 %1911
        %1913 = vrot.lane.b32.xlu0 %v1448, 32
        %v1914 = vpop.permute.xlu0 %1913
        %1915 = vrot.lane.b32.xlu0 %v1452, 32
        %v1916 = vpop.permute.xlu0 %1915
        %1917 = vrot.lane.b32.xlu0 %v1458, 32
        %v1918 = vpop.permute.xlu0 %1917
        %1919 = vrot.lane.b32.xlu0 %v1462, 32
        %v1920 = vpop.permute.xlu0 %1919
        %1921 = vrot.lane.b32.xlu0 %v1468, 32
        %v1922 = vpop.permute.xlu0 %1921
        %1923 = vrot.lane.b32.xlu0 %v1472, 32
        %v1924 = vpop.permute.xlu0 %1923
        %1925 = vrot.lane.b32.xlu0 %v1478, 32
        %v1926 = vpop.permute.xlu0 %1925
        %1927 = vrot.lane.b32.xlu0 %v1482, 32
        %v1928 = vpop.permute.xlu0 %1927
        %1929 = vrot.lane.b32.xlu0 %v1488, 32
        %v1930 = vpop.permute.xlu0 %1929
        %1931 = vrot.lane.b32.xlu0 %v1492, 32
        %v1932 = vpop.permute.xlu0 %1931
        %1933 = vrot.lane.b32.xlu0 %v1498, 32
        %v1934 = vpop.permute.xlu0 %1933
        %1935 = vrot.lane.b32.xlu0 %v1502, 32
        %v1936 = vpop.permute.xlu0 %1935
        %v1953 = vpack.c.bf16 %v1432, %v1428
        %v1954 = vpack.c.bf16 %v1442, %v1438
        %v1955 = vpack.c.bf16 %v1452, %v1448
        %v1956 = vpack.c.bf16 %v1462, %v1458
        %v1957 = vpack.c.bf16 %v1472, %v1468
        %v1958 = vpack.c.bf16 %v1482, %v1478
        %v1959 = vpack.c.bf16 %v1492, %v1488
        %v1960 = vpack.c.bf16 %v1502, %v1498
        %v1961 = vpack.c.bf16 %v1812, %v1810
        %v1962 = vpack.c.bf16 %v1816, %v1814
        %v1963 = vpack.c.bf16 %v1820, %v1818
        %v1964 = vpack.c.bf16 %v1824, %v1822
        %v1965 = vpack.c.bf16 %v1828, %v1826
        %v1966 = vpack.c.bf16 %v1832, %v1830
        %v1967 = vpack.c.bf16 %v1836, %v1834
        %v1968 = vpack.c.bf16 %v1840, %v1838
        %v1969 = vpack.c.bf16 %v1860, %v1858
        %v1970 = vpack.c.bf16 %v1864, %v1862
        %v1971 = vpack.c.bf16 %v1868, %v1866
        %v1972 = vpack.c.bf16 %v1872, %v1870
        %v1973 = vpack.c.bf16 %v1876, %v1874
        %v1974 = vpack.c.bf16 %v1880, %v1878
        %v1975 = vpack.c.bf16 %v1884, %v1882
        %v1976 = vpack.c.bf16 %v1888, %v1886
        %v1977 = vpack.c.bf16 %v1908, %v1906
        %v1978 = vpack.c.bf16 %v1912, %v1910
        %v1979 = vpack.c.bf16 %v1916, %v1914
        %v1980 = vpack.c.bf16 %v1920, %v1918
        %v1981 = vpack.c.bf16 %v1924, %v1922
        %v1982 = vpack.c.bf16 %v1928, %v1926
        %v1983 = vpack.c.bf16 %v1932, %v1930
        %v1984 = vpack.c.bf16 %v1936, %v1934
        %2001 = vrot.lane.b32.xlu0 %v1539, 96
        %v2002 = vpop.permute.xlu0 %2001
        %2003 = vrot.lane.b32.xlu0 %v1542, 96
        %v2004 = vpop.permute.xlu0 %2003
        %2005 = vrot.lane.b32.xlu0 %v1547, 96
        %v2006 = vpop.permute.xlu0 %2005
        %2007 = vrot.lane.b32.xlu0 %v1550, 96
        %v2008 = vpop.permute.xlu0 %2007
        %2009 = vrot.lane.b32.xlu0 %v1555, 96
        %v2010 = vpop.permute.xlu0 %2009
        %2011 = vrot.lane.b32.xlu0 %v1558, 96
        %v2012 = vpop.permute.xlu0 %2011
        %2013 = vrot.lane.b32.xlu0 %v1563, 96
        %v2014 = vpop.permute.xlu0 %2013
        %2015 = vrot.lane.b32.xlu0 %v1566, 96
        %v2016 = vpop.permute.xlu0 %2015
        %2017 = vrot.lane.b32.xlu0 %v1571, 96
        %v2018 = vpop.permute.xlu0 %2017
        %2019 = vrot.lane.b32.xlu0 %v1574, 96
        %v2020 = vpop.permute.xlu0 %2019
        %2021 = vrot.lane.b32.xlu0 %v1579, 96
        %v2022 = vpop.permute.xlu0 %2021
        %2023 = vrot.lane.b32.xlu0 %v1582, 96
        %v2024 = vpop.permute.xlu0 %2023
        %2025 = vrot.lane.b32.xlu0 %v1587, 96
        %v2026 = vpop.permute.xlu0 %2025
        %2027 = vrot.lane.b32.xlu0 %v1590, 96
        %v2028 = vpop.permute.xlu0 %2027
        %2029 = vrot.lane.b32.xlu0 %v1595, 96
        %v2030 = vpop.permute.xlu0 %2029
        %2031 = vrot.lane.b32.xlu0 %v1598, 96
        %v2032 = vpop.permute.xlu0 %2031
        %2049 = vrot.lane.b32.xlu0 %v1539, 64
        %v2050 = vpop.permute.xlu0 %2049
        %2051 = vrot.lane.b32.xlu0 %v1542, 64
        %v2052 = vpop.permute.xlu0 %2051
        %2053 = vrot.lane.b32.xlu0 %v1547, 64
        %v2054 = vpop.permute.xlu0 %2053
        %2055 = vrot.lane.b32.xlu0 %v1550, 64
        %v2056 = vpop.permute.xlu0 %2055
        %2057 = vrot.lane.b32.xlu0 %v1555, 64
        %v2058 = vpop.permute.xlu0 %2057
        %2059 = vrot.lane.b32.xlu0 %v1558, 64
        %v2060 = vpop.permute.xlu0 %2059
        %2061 = vrot.lane.b32.xlu0 %v1563, 64
        %v2062 = vpop.permute.xlu0 %2061
        %2063 = vrot.lane.b32.xlu0 %v1566, 64
        %v2064 = vpop.permute.xlu0 %2063
        %2065 = vrot.lane.b32.xlu0 %v1571, 64
        %v2066 = vpop.permute.xlu0 %2065
        %2067 = vrot.lane.b32.xlu0 %v1574, 64
        %v2068 = vpop.permute.xlu0 %2067
        %2069 = vrot.lane.b32.xlu0 %v1579, 64
        %v2070 = vpop.permute.xlu0 %2069
        %2071 = vrot.lane.b32.xlu0 %v1582, 64
        %v2072 = vpop.permute.xlu0 %2071
        %2073 = vrot.lane.b32.xlu0 %v1587, 64
        %v2074 = vpop.permute.xlu0 %2073
        %2075 = vrot.lane.b32.xlu0 %v1590, 64
        %v2076 = vpop.permute.xlu0 %2075
        %2077 = vrot.lane.b32.xlu0 %v1595, 64
        %v2078 = vpop.permute.xlu0 %2077
        %2079 = vrot.lane.b32.xlu0 %v1598, 64
        %v2080 = vpop.permute.xlu0 %2079
        %2097 = vrot.lane.b32.xlu0 %v1539, 32
        %v2098 = vpop.permute.xlu0 %2097
        %2099 = vrot.lane.b32.xlu0 %v1542, 32
        %v2100 = vpop.permute.xlu0 %2099
        %2101 = vrot.lane.b32.xlu0 %v1547, 32
        %v2102 = vpop.permute.xlu0 %2101
        %2103 = vrot.lane.b32.xlu0 %v1550, 32
        %v2104 = vpop.permute.xlu0 %2103
        %2105 = vrot.lane.b32.xlu0 %v1555, 32
        %v2106 = vpop.permute.xlu0 %2105
        %2107 = vrot.lane.b32.xlu0 %v1558, 32
        %v2108 = vpop.permute.xlu0 %2107
        %2109 = vrot.lane.b32.xlu0 %v1563, 32
        %v2110 = vpop.permute.xlu0 %2109
        %2111 = vrot.lane.b32.xlu0 %v1566, 32
        %v2112 = vpop.permute.xlu0 %2111
        %2113 = vrot.lane.b32.xlu0 %v1571, 32
        %v2114 = vpop.permute.xlu0 %2113
        %2115 = vrot.lane.b32.xlu0 %v1574, 32
        %v2116 = vpop.permute.xlu0 %2115
        %2117 = vrot.lane.b32.xlu0 %v1579, 32
        %v2118 = vpop.permute.xlu0 %2117
        %2119 = vrot.lane.b32.xlu0 %v1582, 32
        %v2120 = vpop.permute.xlu0 %2119
        %2121 = vrot.lane.b32.xlu0 %v1587, 32
        %v2122 = vpop.permute.xlu0 %2121
        %2123 = vrot.lane.b32.xlu0 %v1590, 32
        %v2124 = vpop.permute.xlu0 %2123
        %2125 = vrot.lane.b32.xlu0 %v1595, 32
        %v2126 = vpop.permute.xlu0 %2125
        %2127 = vrot.lane.b32.xlu0 %v1598, 32
        %v2128 = vpop.permute.xlu0 %2127
        %v2145 = vpack.c.bf16 %v1542, %v1539
        %v2146 = vpack.c.bf16 %v1550, %v1547
        %v2147 = vpack.c.bf16 %v1558, %v1555
        %v2148 = vpack.c.bf16 %v1566, %v1563
        %v2149 = vpack.c.bf16 %v1574, %v1571
        %v2150 = vpack.c.bf16 %v1582, %v1579
        %v2151 = vpack.c.bf16 %v1590, %v1587
        %v2152 = vpack.c.bf16 %v1598, %v1595
        %v2153 = vpack.c.bf16 %v2004, %v2002
        %v2154 = vpack.c.bf16 %v2008, %v2006
        %v2155 = vpack.c.bf16 %v2012, %v2010
        %v2156 = vpack.c.bf16 %v2016, %v2014
        %v2157 = vpack.c.bf16 %v2020, %v2018
        %v2158 = vpack.c.bf16 %v2024, %v2022
        %v2159 = vpack.c.bf16 %v2028, %v2026
        %v2160 = vpack.c.bf16 %v2032, %v2030
        %v2161 = vpack.c.bf16 %v2052, %v2050
        %v2162 = vpack.c.bf16 %v2056, %v2054
        %v2163 = vpack.c.bf16 %v2060, %v2058
        %v2164 = vpack.c.bf16 %v2064, %v2062
        %v2165 = vpack.c.bf16 %v2068, %v2066
        %v2166 = vpack.c.bf16 %v2072, %v2070
        %v2167 = vpack.c.bf16 %v2076, %v2074
        %v2168 = vpack.c.bf16 %v2080, %v2078
        %v2169 = vpack.c.bf16 %v2100, %v2098
        %v2170 = vpack.c.bf16 %v2104, %v2102
        %v2171 = vpack.c.bf16 %v2108, %v2106
        %v2172 = vpack.c.bf16 %v2112, %v2110
        %v2173 = vpack.c.bf16 %v2116, %v2114
        %v2174 = vpack.c.bf16 %v2120, %v2118
        %v2175 = vpack.c.bf16 %v2124, %v2122
        %v2176 = vpack.c.bf16 %v2128, %v2126
        %vm2177 = vcmask 261120
        %v2179 = vsel %vm2177, %v1761, 0
        %v2182 = vsel %vm2177, %v1762, 0
        %v2185 = vsel %vm2177, %v1763, 0
        %v2188 = vsel %vm2177, %v1764, 0
        %v2191 = vsel %vm2177, %v1953, 0
        %v2194 = vsel %vm2177, %v1954, 0
        %v2197 = vsel %vm2177, %v1955, 0
        %v2200 = vsel %vm2177, %v1956, 0
        %2202 = vmatprep.subr.bf16.mxu0 0
        %2203 = vmatpush1.bf16.xpose.msra.mxu0 %v2191
        %2204 = vmatprep.subr.bf16.mxu0 0
        %2205 = vmatpush1.bf16.xpose.msra.mxu0 %v2194
        %2206 = vmatprep.subr.bf16.mxu0 0
        %2207 = vmatpush1.bf16.xpose.msra.mxu0 %v2197
        %2208 = vmatprep.subr.bf16.mxu0 0
        %2209 = vmatpush1.bf16.xpose.msra.mxu0 %v2200
        %2210 = vmatprep.subr.bf16.mxu0 0
        %2211 = vmatpush1.bf16.xpose.msra.mxu0 0
        %2212 = vmatprep.subr.bf16.mxu0 0
        %2213 = vmatpush1.bf16.xpose.msra.mxu0 0
        %2214 = vmatprep.subr.bf16.mxu0 0
        %2215 = vmatpush1.bf16.xpose.msra.mxu0 0
        %2216 = vmatprep.subr.bf16.mxu0 0
        %2217 = vmatpush1.bf16.xpose.msra.mxu0 0
        %2218 = vmatprep.subr.bf16.mxu0 0
        %2219 = vmatpush1.bf16.xpose.msra.mxu0 0
        %2220 = vmatprep.subr.bf16.mxu0 0
        %2221 = vmatpush1.bf16.xpose.msra.mxu0 0
        %2222 = vmatprep.subr.bf16.mxu0 0
        %2223 = vmatpush1.bf16.xpose.msra.mxu0 0
        %2224 = vmatprep.subr.bf16.mxu0 0
        %2225 = vmatpush1.bf16.xpose.msra.mxu0 0
        %2226 = vmatprep.subr.bf16.mxu0 0
        %2227 = vmatpush1.bf16.xpose.msra.mxu0 0
        %2228 = vmatprep.subr.bf16.mxu0 0
        %2229 = vmatpush1.bf16.xpose.msra.mxu0 0
        %2230 = vmatprep.subr.bf16.mxu0 0
        %2231 = vmatpush1.bf16.xpose.msra.mxu0 0
        %2232 = vmatprep.subr.bf16.mxu0 0
        %2233 = vmatpush1.bf16.xpose.msra.mxu0 0
        %2234 = vmatprep.mubr.bf16.mxu0 0
        %2235 = vmatmul.mubr.bf16.gmra.mrb[0].mxu0 %v2179
        %v2236 = vpop.f32.mrb[0].mxu0
        %v2237 = vadd.f32 0.0, %v2236
        %v2238 = vpop.f32.mrb[0].mxu0
        %v2239 = vpop.f32.mrb[0].mxu0
        %v2240 = vadd.f32 0.0, %v2239
        %v2241 = vpop.f32.mrb[0].mxu0
        %2242 = vmatprep.mubr.bf16.mxu0 0
        %2243 = vmatmul.mubr.bf16.gmra.mrb[0].mxu0 %v2182
        %v2244 = vpop.f32.mrb[0].mxu0
        %v2245 = vadd.f32 0.0, %v2244
        %v2246 = vpop.f32.mrb[0].mxu0
        %v2247 = vpop.f32.mrb[0].mxu0
        %v2248 = vadd.f32 0.0, %v2247
        %v2249 = vpop.f32.mrb[0].mxu0
        %2250 = vmatprep.mubr.bf16.mxu0 0
        %2251 = vmatmul.mubr.bf16.gmra.mrb[0].mxu0 %v2185
        %v2252 = vpop.f32.mrb[0].mxu0
        %v2253 = vadd.f32 0.0, %v2252
        %v2254 = vpop.f32.mrb[0].mxu0
        %v2255 = vpop.f32.mrb[0].mxu0
        %v2256 = vadd.f32 0.0, %v2255
        %v2257 = vpop.f32.mrb[0].mxu0
        %2258 = vmatprep.mubr.bf16.mxu0 0
        %2259 = vmatmul.mubr.bf16.gmra.mrb[0].mxu0 %v2188
        %v2260 = vpop.f32.mrb[0].mxu0
        %v2261 = vadd.f32 0.0, %v2260
        %v2262 = vpop.f32.mrb[0].mxu0
        %v2263 = vpop.f32.mrb[0].mxu0
        %v2264 = vadd.f32 0.0, %v2263
        %v2265 = vpop.f32.mrb[0].mxu0
        %2266 = vdwg.mxu0
        %v2268 = vsel %vm2177, %v1765, 0
        %v2271 = vsel %vm2177, %v1766, 0
        %v2274 = vsel %vm2177, %v1767, 0
        %v2277 = vsel %vm2177, %v1768, 0
        %v2280 = vsel %vm2177, %v1957, 0
        %v2283 = vsel %vm2177, %v1958, 0
        %v2286 = vsel %vm2177, %v1959, 0
        %v2289 = vsel %vm2177, %v1960, 0
        %2291 = vmatprep.subr.bf16.mxu0 0
        %2292 = vmatpush1.bf16.xpose.msra.mxu0 %v2280
        %2293 = vmatprep.subr.bf16.mxu0 0
        %2294 = vmatpush1.bf16.xpose.msra.mxu0 %v2283
        %2295 = vmatprep.subr.bf16.mxu0 0
        %2296 = vmatpush1.bf16.xpose.msra.mxu0 %v2286
        %2297 = vmatprep.subr.bf16.mxu0 0
        %2298 = vmatpush1.bf16.xpose.msra.mxu0 %v2289
        %2299 = vmatprep.subr.bf16.mxu0 0
        %2300 = vmatpush1.bf16.xpose.msra.mxu0 0
        %2301 = vmatprep.subr.bf16.mxu0 0
        %2302 = vmatpush1.bf16.xpose.msra.mxu0 0
        %2303 = vmatprep.subr.bf16.mxu0 0
        %2304 = vmatpush1.bf16.xpose.msra.mxu0 0
        %2305 = vmatprep.subr.bf16.mxu0 0
        %2306 = vmatpush1.bf16.xpose.msra.mxu0 0
        %2307 = vmatprep.subr.bf16.mxu0 0
        %2308 = vmatpush1.bf16.xpose.msra.mxu0 0
        %2309 = vmatprep.subr.bf16.mxu0 0
        %2310 = vmatpush1.bf16.xpose.msra.mxu0 0
        %2311 = vmatprep.subr.bf16.mxu0 0
        %2312 = vmatpush1.bf16.xpose.msra.mxu0 0
        %2313 = vmatprep.subr.bf16.mxu0 0
        %2314 = vmatpush1.bf16.xpose.msra.mxu0 0
        %2315 = vmatprep.subr.bf16.mxu0 0
        %2316 = vmatpush1.bf16.xpose.msra.mxu0 0
        %2317 = vmatprep.subr.bf16.mxu0 0
        %2318 = vmatpush1.bf16.xpose.msra.mxu0 0
        %2319 = vmatprep.subr.bf16.mxu0 0
        %2320 = vmatpush1.bf16.xpose.msra.mxu0 0
        %2321 = vmatprep.subr.bf16.mxu0 0
        %2322 = vmatpush1.bf16.xpose.msra.mxu0 0
        %2323 = vmatprep.mubr.bf16.mxu0 0
        %2324 = vmatmul.mubr.bf16.gmra.mrb[0].mxu0 %v2268
        %v2325 = vpop.f32.mrb[0].mxu0
        %v2326 = vadd.f32 0.0, %v2325
        %v2327 = vpop.f32.mrb[0].mxu0
        %v2328 = vpop.f32.mrb[0].mxu0
        %v2329 = vadd.f32 0.0, %v2328
        %v2330 = vpop.f32.mrb[0].mxu0
        %2331 = vmatprep.mubr.bf16.mxu0 0
        %2332 = vmatmul.mubr.bf16.gmra.mrb[0].mxu0 %v2271
        %v2333 = vpop.f32.mrb[0].mxu0
        %v2334 = vadd.f32 0.0, %v2333
        %v2335 = vpop.f32.mrb[0].mxu0
        %v2336 = vpop.f32.mrb[0].mxu0
        %v2337 = vadd.f32 0.0, %v2336
        %v2338 = vpop.f32.mrb[0].mxu0
        %2339 = vmatprep.mubr.bf16.mxu0 0
        %2340 = vmatmul.mubr.bf16.gmra.mrb[0].mxu0 %v2274
        %v2341 = vpop.f32.mrb[0].mxu0
        %v2342 = vadd.f32 0.0, %v2341
        %v2343 = vpop.f32.mrb[0].mxu0
        %v2344 = vpop.f32.mrb[0].mxu0
        %v2345 = vadd.f32 0.0, %v2344
        %v2346 = vpop.f32.mrb[0].mxu0
        %2347 = vmatprep.mubr.bf16.mxu0 0
        %2348 = vmatmul.mubr.bf16.gmra.mrb[0].mxu0 %v2277
        %v2349 = vpop.f32.mrb[0].mxu0
        %v2350 = vadd.f32 0.0, %v2349
        %v2351 = vpop.f32.mrb[0].mxu0
        %v2352 = vpop.f32.mrb[0].mxu0
        %v2353 = vadd.f32 0.0, %v2352
        %v2354 = vpop.f32.mrb[0].mxu0
        %2355 = vdwg.mxu0
        %v2357 = vsel %vm2177, %v1769, 0
        %v2360 = vsel %vm2177, %v1770, 0
        %v2363 = vsel %vm2177, %v1771, 0
        %v2366 = vsel %vm2177, %v1772, 0
        %v2369 = vsel %vm2177, %v1961, 0
        %v2372 = vsel %vm2177, %v1962, 0
        %v2375 = vsel %vm2177, %v1963, 0
        %v2378 = vsel %vm2177, %v1964, 0
        %2380 = vmatprep.subr.bf16.mxu0 0
        %2381 = vmatpush1.bf16.xpose.msra.mxu0 %v2369
        %2382 = vmatprep.subr.bf16.mxu0 0
        %2383 = vmatpush1.bf16.xpose.msra.mxu0 %v2372
        %2384 = vmatprep.subr.bf16.mxu0 0
        %2385 = vmatpush1.bf16.xpose.msra.mxu0 %v2375
        %2386 = vmatprep.subr.bf16.mxu0 0
        %2387 = vmatpush1.bf16.xpose.msra.mxu0 %v2378
        %2388 = vmatprep.subr.bf16.mxu0 0
        %2389 = vmatpush1.bf16.xpose.msra.mxu0 0
        %2390 = vmatprep.subr.bf16.mxu0 0
        %2391 = vmatpush1.bf16.xpose.msra.mxu0 0
        %2392 = vmatprep.subr.bf16.mxu0 0
        %2393 = vmatpush1.bf16.xpose.msra.mxu0 0
        %2394 = vmatprep.subr.bf16.mxu0 0
        %2395 = vmatpush1.bf16.xpose.msra.mxu0 0
        %2396 = vmatprep.subr.bf16.mxu0 0
        %2397 = vmatpush1.bf16.xpose.msra.mxu0 0
        %2398 = vmatprep.subr.bf16.mxu0 0
        %2399 = vmatpush1.bf16.xpose.msra.mxu0 0
        %2400 = vmatprep.subr.bf16.mxu0 0
        %2401 = vmatpush1.bf16.xpose.msra.mxu0 0
        %2402 = vmatprep.subr.bf16.mxu0 0
        %2403 = vmatpush1.bf16.xpose.msra.mxu0 0
        %2404 = vmatprep.subr.bf16.mxu0 0
        %2405 = vmatpush1.bf16.xpose.msra.mxu0 0
        %2406 = vmatprep.subr.bf16.mxu0 0
        %2407 = vmatpush1.bf16.xpose.msra.mxu0 0
        %2408 = vmatprep.subr.bf16.mxu0 0
        %2409 = vmatpush1.bf16.xpose.msra.mxu0 0
        %2410 = vmatprep.subr.bf16.mxu0 0
        %2411 = vmatpush1.bf16.xpose.msra.mxu0 0
        %2412 = vmatprep.mubr.bf16.mxu0 0
        %2413 = vmatmul.mubr.bf16.gmra.mrb[0].mxu0 %v2357
        %v2414 = vpop.f32.mrb[0].mxu0
        %v2415 = vadd.f32 0.0, %v2414
        %v2416 = vpop.f32.mrb[0].mxu0
        %v2417 = vpop.f32.mrb[0].mxu0
        %v2418 = vadd.f32 0.0, %v2417
        %v2419 = vpop.f32.mrb[0].mxu0
        %2420 = vmatprep.mubr.bf16.mxu0 0
        %2421 = vmatmul.mubr.bf16.gmra.mrb[0].mxu0 %v2360
        %v2422 = vpop.f32.mrb[0].mxu0
        %v2423 = vadd.f32 0.0, %v2422
        %v2424 = vpop.f32.mrb[0].mxu0
        %v2425 = vpop.f32.mrb[0].mxu0
        %v2426 = vadd.f32 0.0, %v2425
        %v2427 = vpop.f32.mrb[0].mxu0
        %2428 = vmatprep.mubr.bf16.mxu0 0
        %2429 = vmatmul.mubr.bf16.gmra.mrb[0].mxu0 %v2363
        %v2430 = vpop.f32.mrb[0].mxu0
        %v2431 = vadd.f32 0.0, %v2430
        %v2432 = vpop.f32.mrb[0].mxu0
        %v2433 = vpop.f32.mrb[0].mxu0
        %v2434 = vadd.f32 0.0, %v2433
        %v2435 = vpop.f32.mrb[0].mxu0
        %2436 = vmatprep.mubr.bf16.mxu0 0
        %2437 = vmatmul.mubr.bf16.gmra.mrb[0].mxu0 %v2366
        %v2438 = vpop.f32.mrb[0].mxu0
        %v2439 = vadd.f32 0.0, %v2438
        %v2440 = vpop.f32.mrb[0].mxu0
        %v2441 = vpop.f32.mrb[0].mxu0
        %v2442 = vadd.f32 0.0, %v2441
        %v2443 = vpop.f32.mrb[0].mxu0
        %2444 = vdwg.mxu0
        %v2446 = vsel %vm2177, %v1773, 0
        %v2449 = vsel %vm2177, %v1774, 0
        %v2452 = vsel %vm2177, %v1775, 0
        %v2455 = vsel %vm2177, %v1776, 0
        %v2458 = vsel %vm2177, %v1965, 0
        %v2461 = vsel %vm2177, %v1966, 0
        %v2464 = vsel %vm2177, %v1967, 0
        %v2467 = vsel %vm2177, %v1968, 0
        %2469 = vmatprep.subr.bf16.mxu0 0
        %2470 = vmatpush1.bf16.xpose.msra.mxu0 %v2458
        %2471 = vmatprep.subr.bf16.mxu0 0
        %2472 = vmatpush1.bf16.xpose.msra.mxu0 %v2461
        %2473 = vmatprep.subr.bf16.mxu0 0
        %2474 = vmatpush1.bf16.xpose.msra.mxu0 %v2464
        %2475 = vmatprep.subr.bf16.mxu0 0
        %2476 = vmatpush1.bf16.xpose.msra.mxu0 %v2467
        %2477 = vmatprep.subr.bf16.mxu0 0
        %2478 = vmatpush1.bf16.xpose.msra.mxu0 0
        %2479 = vmatprep.subr.bf16.mxu0 0
        %2480 = vmatpush1.bf16.xpose.msra.mxu0 0
        %2481 = vmatprep.subr.bf16.mxu0 0
        %2482 = vmatpush1.bf16.xpose.msra.mxu0 0
        %2483 = vmatprep.subr.bf16.mxu0 0
        %2484 = vmatpush1.bf16.xpose.msra.mxu0 0
        %2485 = vmatprep.subr.bf16.mxu0 0
        %2486 = vmatpush1.bf16.xpose.msra.mxu0 0
        %2487 = vmatprep.subr.bf16.mxu0 0
        %2488 = vmatpush1.bf16.xpose.msra.mxu0 0
        %2489 = vmatprep.subr.bf16.mxu0 0
        %2490 = vmatpush1.bf16.xpose.msra.mxu0 0
        %2491 = vmatprep.subr.bf16.mxu0 0
        %2492 = vmatpush1.bf16.xpose.msra.mxu0 0
        %2493 = vmatprep.subr.bf16.mxu0 0
        %2494 = vmatpush1.bf16.xpose.msra.mxu0 0
        %2495 = vmatprep.subr.bf16.mxu0 0
        %2496 = vmatpush1.bf16.xpose.msra.mxu0 0
        %2497 = vmatprep.subr.bf16.mxu0 0
        %2498 = vmatpush1.bf16.xpose.msra.mxu0 0
        %2499 = vmatprep.subr.bf16.mxu0 0
        %2500 = vmatpush1.bf16.xpose.msra.mxu0 0
        %2501 = vmatprep.mubr.bf16.mxu0 0
        %2502 = vmatmul.mubr.bf16.gmra.mrb[0].mxu0 %v2446
        %v2503 = vpop.f32.mrb[0].mxu0
        %v2504 = vadd.f32 0.0, %v2503
        %v2505 = vpop.f32.mrb[0].mxu0
        %v2506 = vpop.f32.mrb[0].mxu0
        %v2507 = vadd.f32 0.0, %v2506
        %v2508 = vpop.f32.mrb[0].mxu0
        %2509 = vmatprep.mubr.bf16.mxu0 0
        %2510 = vmatmul.mubr.bf16.gmra.mrb[0].mxu0 %v2449
        %v2511 = vpop.f32.mrb[0].mxu0
        %v2512 = vadd.f32 0.0, %v2511
        %v2513 = vpop.f32.mrb[0].mxu0
        %v2514 = vpop.f32.mrb[0].mxu0
        %v2515 = vadd.f32 0.0, %v2514
        %v2516 = vpop.f32.mrb[0].mxu0
        %2517 = vmatprep.mubr.bf16.mxu0 0
        %2518 = vmatmul.mubr.bf16.gmra.mrb[0].mxu0 %v2452
        %v2519 = vpop.f32.mrb[0].mxu0
        %v2520 = vadd.f32 0.0, %v2519
        %v2521 = vpop.f32.mrb[0].mxu0
        %v2522 = vpop.f32.mrb[0].mxu0
        %v2523 = vadd.f32 0.0, %v2522
        %v2524 = vpop.f32.mrb[0].mxu0
        %2525 = vmatprep.mubr.bf16.mxu0 0
        %2526 = vmatmul.mubr.bf16.gmra.mrb[0].mxu0 %v2455
        %v2527 = vpop.f32.mrb[0].mxu0
        %v2528 = vadd.f32 0.0, %v2527
        %v2529 = vpop.f32.mrb[0].mxu0
        %v2530 = vpop.f32.mrb[0].mxu0
        %v2531 = vadd.f32 0.0, %v2530
        %v2532 = vpop.f32.mrb[0].mxu0
        %2533 = vdwg.mxu0
        %v2535 = vsel %vm2177, %v1777, 0
        %v2538 = vsel %vm2177, %v1778, 0
        %v2541 = vsel %vm2177, %v1779, 0
        %v2544 = vsel %vm2177, %v1780, 0
        %v2547 = vsel %vm2177, %v1969, 0
        %v2550 = vsel %vm2177, %v1970, 0
        %v2553 = vsel %vm2177, %v1971, 0
        %v2556 = vsel %vm2177, %v1972, 0
        %2558 = vmatprep.subr.bf16.mxu0 0
        %2559 = vmatpush1.bf16.xpose.msra.mxu0 %v2547
        %2560 = vmatprep.subr.bf16.mxu0 0
        %2561 = vmatpush1.bf16.xpose.msra.mxu0 %v2550
        %2562 = vmatprep.subr.bf16.mxu0 0
        %2563 = vmatpush1.bf16.xpose.msra.mxu0 %v2553
        %2564 = vmatprep.subr.bf16.mxu0 0
        %2565 = vmatpush1.bf16.xpose.msra.mxu0 %v2556
        %2566 = vmatprep.subr.bf16.mxu0 0
        %2567 = vmatpush1.bf16.xpose.msra.mxu0 0
        %2568 = vmatprep.subr.bf16.mxu0 0
        %2569 = vmatpush1.bf16.xpose.msra.mxu0 0
        %2570 = vmatprep.subr.bf16.mxu0 0
        %2571 = vmatpush1.bf16.xpose.msra.mxu0 0
        %2572 = vmatprep.subr.bf16.mxu0 0
        %2573 = vmatpush1.bf16.xpose.msra.mxu0 0
        %2574 = vmatprep.subr.bf16.mxu0 0
        %2575 = vmatpush1.bf16.xpose.msra.mxu0 0
        %2576 = vmatprep.subr.bf16.mxu0 0
        %2577 = vmatpush1.bf16.xpose.msra.mxu0 0
        %2578 = vmatprep.subr.bf16.mxu0 0
        %2579 = vmatpush1.bf16.xpose.msra.mxu0 0
        %2580 = vmatprep.subr.bf16.mxu0 0
        %2581 = vmatpush1.bf16.xpose.msra.mxu0 0
        %2582 = vmatprep.subr.bf16.mxu0 0
        %2583 = vmatpush1.bf16.xpose.msra.mxu0 0
        %2584 = vmatprep.subr.bf16.mxu0 0
        %2585 = vmatpush1.bf16.xpose.msra.mxu0 0
        %2586 = vmatprep.subr.bf16.mxu0 0
        %2587 = vmatpush1.bf16.xpose.msra.mxu0 0
        %2588 = vmatprep.subr.bf16.mxu0 0
        %2589 = vmatpush1.bf16.xpose.msra.mxu0 0
        %2590 = vmatprep.mubr.bf16.mxu0 0
        %2591 = vmatmul.mubr.bf16.gmra.mrb[0].mxu0 %v2535
        %v2592 = vpop.f32.mrb[0].mxu0
        %v2593 = vadd.f32 0.0, %v2592
        %v2594 = vpop.f32.mrb[0].mxu0
        %v2595 = vpop.f32.mrb[0].mxu0
        %v2596 = vadd.f32 0.0, %v2595
        %v2597 = vpop.f32.mrb[0].mxu0
        %2598 = vmatprep.mubr.bf16.mxu0 0
        %2599 = vmatmul.mubr.bf16.gmra.mrb[0].mxu0 %v2538
        %v2600 = vpop.f32.mrb[0].mxu0
        %v2601 = vadd.f32 0.0, %v2600
        %v2602 = vpop.f32.mrb[0].mxu0
        %v2603 = vpop.f32.mrb[0].mxu0
        %v2604 = vadd.f32 0.0, %v2603
        %v2605 = vpop.f32.mrb[0].mxu0
        %2606 = vmatprep.mubr.bf16.mxu0 0
        %2607 = vmatmul.mubr.bf16.gmra.mrb[0].mxu0 %v2541
        %v2608 = vpop.f32.mrb[0].mxu0
        %v2609 = vadd.f32 0.0, %v2608
        %v2610 = vpop.f32.mrb[0].mxu0
        %v2611 = vpop.f32.mrb[0].mxu0
        %v2612 = vadd.f32 0.0, %v2611
        %v2613 = vpop.f32.mrb[0].mxu0
        %2614 = vmatprep.mubr.bf16.mxu0 0
        %2615 = vmatmul.mubr.bf16.gmra.mrb[0].mxu0 %v2544
        %v2616 = vpop.f32.mrb[0].mxu0
        %v2617 = vadd.f32 0.0, %v2616
        %v2618 = vpop.f32.mrb[0].mxu0
        %v2619 = vpop.f32.mrb[0].mxu0
        %v2620 = vadd.f32 0.0, %v2619
        %v2621 = vpop.f32.mrb[0].mxu0
        %2622 = vdwg.mxu0
        %v2624 = vsel %vm2177, %v1781, 0
        %v2627 = vsel %vm2177, %v1782, 0
        %v2630 = vsel %vm2177, %v1783, 0
        %v2633 = vsel %vm2177, %v1784, 0
        %v2636 = vsel %vm2177, %v1973, 0
        %v2639 = vsel %vm2177, %v1974, 0
        %v2642 = vsel %vm2177, %v1975, 0
        %v2645 = vsel %vm2177, %v1976, 0
        %2647 = vmatprep.subr.bf16.mxu0 0
        %2648 = vmatpush1.bf16.xpose.msra.mxu0 %v2636
        %2649 = vmatprep.subr.bf16.mxu0 0
        %2650 = vmatpush1.bf16.xpose.msra.mxu0 %v2639
        %2651 = vmatprep.subr.bf16.mxu0 0
        %2652 = vmatpush1.bf16.xpose.msra.mxu0 %v2642
        %2653 = vmatprep.subr.bf16.mxu0 0
        %2654 = vmatpush1.bf16.xpose.msra.mxu0 %v2645
        %2655 = vmatprep.subr.bf16.mxu0 0
        %2656 = vmatpush1.bf16.xpose.msra.mxu0 0
        %2657 = vmatprep.subr.bf16.mxu0 0
        %2658 = vmatpush1.bf16.xpose.msra.mxu0 0
        %2659 = vmatprep.subr.bf16.mxu0 0
        %2660 = vmatpush1.bf16.xpose.msra.mxu0 0
        %2661 = vmatprep.subr.bf16.mxu0 0
        %2662 = vmatpush1.bf16.xpose.msra.mxu0 0
        %2663 = vmatprep.subr.bf16.mxu0 0
        %2664 = vmatpush1.bf16.xpose.msra.mxu0 0
        %2665 = vmatprep.subr.bf16.mxu0 0
        %2666 = vmatpush1.bf16.xpose.msra.mxu0 0
        %2667 = vmatprep.subr.bf16.mxu0 0
        %2668 = vmatpush1.bf16.xpose.msra.mxu0 0
        %2669 = vmatprep.subr.bf16.mxu0 0
        %2670 = vmatpush1.bf16.xpose.msra.mxu0 0
        %2671 = vmatprep.subr.bf16.mxu0 0
        %2672 = vmatpush1.bf16.xpose.msra.mxu0 0
        %2673 = vmatprep.subr.bf16.mxu0 0
        %2674 = vmatpush1.bf16.xpose.msra.mxu0 0
        %2675 = vmatprep.subr.bf16.mxu0 0
        %2676 = vmatpush1.bf16.xpose.msra.mxu0 0
        %2677 = vmatprep.subr.bf16.mxu0 0
        %2678 = vmatpush1.bf16.xpose.msra.mxu0 0
        %2679 = vmatprep.mubr.bf16.mxu0 0
        %2680 = vmatmul.mubr.bf16.gmra.mrb[0].mxu0 %v2624
        %v2681 = vpop.f32.mrb[0].mxu0
        %v2682 = vadd.f32 0.0, %v2681
        %v2683 = vpop.f32.mrb[0].mxu0
        %v2684 = vpop.f32.mrb[0].mxu0
        %v2685 = vadd.f32 0.0, %v2684
        %v2686 = vpop.f32.mrb[0].mxu0
        %2687 = vmatprep.mubr.bf16.mxu0 0
        %2688 = vmatmul.mubr.bf16.gmra.mrb[0].mxu0 %v2627
        %v2689 = vpop.f32.mrb[0].mxu0
        %v2690 = vadd.f32 0.0, %v2689
        %v2691 = vpop.f32.mrb[0].mxu0
        %v2692 = vpop.f32.mrb[0].mxu0
        %v2693 = vadd.f32 0.0, %v2692
        %v2694 = vpop.f32.mrb[0].mxu0
        %2695 = vmatprep.mubr.bf16.mxu0 0
        %2696 = vmatmul.mubr.bf16.gmra.mrb[0].mxu0 %v2630
        %v2697 = vpop.f32.mrb[0].mxu0
        %v2698 = vadd.f32 0.0, %v2697
        %v2699 = vpop.f32.mrb[0].mxu0
        %v2700 = vpop.f32.mrb[0].mxu0
        %v2701 = vadd.f32 0.0, %v2700
        %v2702 = vpop.f32.mrb[0].mxu0
        %2703 = vmatprep.mubr.bf16.mxu0 0
        %2704 = vmatmul.mubr.bf16.gmra.mrb[0].mxu0 %v2633
        %v2705 = vpop.f32.mrb[0].mxu0
        %v2706 = vadd.f32 0.0, %v2705
        %v2707 = vpop.f32.mrb[0].mxu0
        %v2708 = vpop.f32.mrb[0].mxu0
        %v2709 = vadd.f32 0.0, %v2708
        %v2710 = vpop.f32.mrb[0].mxu0
        %2711 = vdwg.mxu0
        %v2713 = vsel %vm2177, %v1785, 0
        %v2716 = vsel %vm2177, %v1786, 0
        %v2719 = vsel %vm2177, %v1787, 0
        %v2722 = vsel %vm2177, %v1788, 0
        %v2725 = vsel %vm2177, %v1977, 0
        %v2728 = vsel %vm2177, %v1978, 0
        %v2731 = vsel %vm2177, %v1979, 0
        %v2734 = vsel %vm2177, %v1980, 0
        %2736 = vmatprep.subr.bf16.mxu0 0
        %2737 = vmatpush1.bf16.xpose.msra.mxu0 %v2725
        %2738 = vmatprep.subr.bf16.mxu0 0
        %2739 = vmatpush1.bf16.xpose.msra.mxu0 %v2728
        %2740 = vmatprep.subr.bf16.mxu0 0
        %2741 = vmatpush1.bf16.xpose.msra.mxu0 %v2731
        %2742 = vmatprep.subr.bf16.mxu0 0
        %2743 = vmatpush1.bf16.xpose.msra.mxu0 %v2734
        %2744 = vmatprep.subr.bf16.mxu0 0
        %2745 = vmatpush1.bf16.xpose.msra.mxu0 0
        %2746 = vmatprep.subr.bf16.mxu0 0
        %2747 = vmatpush1.bf16.xpose.msra.mxu0 0
        %2748 = vmatprep.subr.bf16.mxu0 0
        %2749 = vmatpush1.bf16.xpose.msra.mxu0 0
        %2750 = vmatprep.subr.bf16.mxu0 0
        %2751 = vmatpush1.bf16.xpose.msra.mxu0 0
        %2752 = vmatprep.subr.bf16.mxu0 0
        %2753 = vmatpush1.bf16.xpose.msra.mxu0 0
        %2754 = vmatprep.subr.bf16.mxu0 0
        %2755 = vmatpush1.bf16.xpose.msra.mxu0 0
        %2756 = vmatprep.subr.bf16.mxu0 0
        %2757 = vmatpush1.bf16.xpose.msra.mxu0 0
        %2758 = vmatprep.subr.bf16.mxu0 0
        %2759 = vmatpush1.bf16.xpose.msra.mxu0 0
        %2760 = vmatprep.subr.bf16.mxu0 0
        %2761 = vmatpush1.bf16.xpose.msra.mxu0 0
        %2762 = vmatprep.subr.bf16.mxu0 0
        %2763 = vmatpush1.bf16.xpose.msra.mxu0 0
        %2764 = vmatprep.subr.bf16.mxu0 0
        %2765 = vmatpush1.bf16.xpose.msra.mxu0 0
        %2766 = vmatprep.subr.bf16.mxu0 0
        %2767 = vmatpush1.bf16.xpose.msra.mxu0 0
        %2768 = vmatprep.mubr.bf16.mxu0 0
        %2769 = vmatmul.mubr.bf16.gmra.mrb[0].mxu0 %v2713
        %v2770 = vpop.f32.mrb[0].mxu0
        %v2771 = vadd.f32 0.0, %v2770
        %v2772 = vpop.f32.mrb[0].mxu0
        %v2773 = vpop.f32.mrb[0].mxu0
        %v2774 = vadd.f32 0.0, %v2773
        %v2775 = vpop.f32.mrb[0].mxu0
        %2776 = vmatprep.mubr.bf16.mxu0 0
        %2777 = vmatmul.mubr.bf16.gmra.mrb[0].mxu0 %v2716
        %v2778 = vpop.f32.mrb[0].mxu0
        %v2779 = vadd.f32 0.0, %v2778
        %v2780 = vpop.f32.mrb[0].mxu0
        %v2781 = vpop.f32.mrb[0].mxu0
        %v2782 = vadd.f32 0.0, %v2781
        %v2783 = vpop.f32.mrb[0].mxu0
        %2784 = vmatprep.mubr.bf16.mxu0 0
        %2785 = vmatmul.mubr.bf16.gmra.mrb[0].mxu0 %v2719
        %v2786 = vpop.f32.mrb[0].mxu0
        %v2787 = vadd.f32 0.0, %v2786
        %v2788 = vpop.f32.mrb[0].mxu0
        %v2789 = vpop.f32.mrb[0].mxu0
        %v2790 = vadd.f32 0.0, %v2789
        %v2791 = vpop.f32.mrb[0].mxu0
        %2792 = vmatprep.mubr.bf16.mxu0 0
        %2793 = vmatmul.mubr.bf16.gmra.mrb[0].mxu0 %v2722
        %v2794 = vpop.f32.mrb[0].mxu0
        %v2795 = vadd.f32 0.0, %v2794
        %v2796 = vpop.f32.mrb[0].mxu0
        %v2797 = vpop.f32.mrb[0].mxu0
        %v2798 = vadd.f32 0.0, %v2797
        %v2799 = vpop.f32.mrb[0].mxu0
        %2800 = vdwg.mxu0
        %v2802 = vsel %vm2177, %v1789, 0
        %v2805 = vsel %vm2177, %v1790, 0
        %v2808 = vsel %vm2177, %v1791, 0
        %v2811 = vsel %vm2177, %v1792, 0
        %v2814 = vsel %vm2177, %v1981, 0
        %v2817 = vsel %vm2177, %v1982, 0
        %v2820 = vsel %vm2177, %v1983, 0
        %v2823 = vsel %vm2177, %v1984, 0
        %2825 = vmatprep.subr.bf16.mxu0 0
        %2826 = vmatpush1.bf16.xpose.msra.mxu0 %v2814
        %2827 = vmatprep.subr.bf16.mxu0 0
        %2828 = vmatpush1.bf16.xpose.msra.mxu0 %v2817
        %2829 = vmatprep.subr.bf16.mxu0 0
        %2830 = vmatpush1.bf16.xpose.msra.mxu0 %v2820
        %2831 = vmatprep.subr.bf16.mxu0 0
        %2832 = vmatpush1.bf16.xpose.msra.mxu0 %v2823
        %2833 = vmatprep.subr.bf16.mxu0 0
        %2834 = vmatpush1.bf16.xpose.msra.mxu0 0
        %2835 = vmatprep.subr.bf16.mxu0 0
        %2836 = vmatpush1.bf16.xpose.msra.mxu0 0
        %2837 = vmatprep.subr.bf16.mxu0 0
        %2838 = vmatpush1.bf16.xpose.msra.mxu0 0
        %2839 = vmatprep.subr.bf16.mxu0 0
        %2840 = vmatpush1.bf16.xpose.msra.mxu0 0
        %2841 = vmatprep.subr.bf16.mxu0 0
        %2842 = vmatpush1.bf16.xpose.msra.mxu0 0
        %2843 = vmatprep.subr.bf16.mxu0 0
        %2844 = vmatpush1.bf16.xpose.msra.mxu0 0
        %2845 = vmatprep.subr.bf16.mxu0 0
        %2846 = vmatpush1.bf16.xpose.msra.mxu0 0
        %2847 = vmatprep.subr.bf16.mxu0 0
        %2848 = vmatpush1.bf16.xpose.msra.mxu0 0
        %2849 = vmatprep.subr.bf16.mxu0 0
        %2850 = vmatpush1.bf16.xpose.msra.mxu0 0
        %2851 = vmatprep.subr.bf16.mxu0 0
        %2852 = vmatpush1.bf16.xpose.msra.mxu0 0
        %2853 = vmatprep.subr.bf16.mxu0 0
        %2854 = vmatpush1.bf16.xpose.msra.mxu0 0
        %2855 = vmatprep.subr.bf16.mxu0 0
        %2856 = vmatpush1.bf16.xpose.msra.mxu0 0
        %2857 = vmatprep.mubr.bf16.mxu0 0
        %2858 = vmatmul.mubr.bf16.gmra.mrb[0].mxu0 %v2802
        %v2859 = vpop.f32.mrb[0].mxu0
        %v2860 = vadd.f32 0.0, %v2859
        %v2861 = vpop.f32.mrb[0].mxu0
        %v2862 = vpop.f32.mrb[0].mxu0
        %v2863 = vadd.f32 0.0, %v2862
        %v2864 = vpop.f32.mrb[0].mxu0
        %2865 = vmatprep.mubr.bf16.mxu0 0
        %2866 = vmatmul.mubr.bf16.gmra.mrb[0].mxu0 %v2805
        %v2867 = vpop.f32.mrb[0].mxu0
        %v2868 = vadd.f32 0.0, %v2867
        %v2869 = vpop.f32.mrb[0].mxu0
        %v2870 = vpop.f32.mrb[0].mxu0
        %v2871 = vadd.f32 0.0, %v2870
        %v2872 = vpop.f32.mrb[0].mxu0
        %2873 = vmatprep.mubr.bf16.mxu0 0
        %2874 = vmatmul.mubr.bf16.gmra.mrb[0].mxu0 %v2808
        %v2875 = vpop.f32.mrb[0].mxu0
        %v2876 = vadd.f32 0.0, %v2875
        %v2877 = vpop.f32.mrb[0].mxu0
        %v2878 = vpop.f32.mrb[0].mxu0
        %v2879 = vadd.f32 0.0, %v2878
        %v2880 = vpop.f32.mrb[0].mxu0
        %2881 = vmatprep.mubr.bf16.mxu0 0
        %2882 = vmatmul.mubr.bf16.gmra.mrb[0].mxu0 %v2811
        %v2883 = vpop.f32.mrb[0].mxu0
        %v2884 = vadd.f32 0.0, %v2883
        %v2885 = vpop.f32.mrb[0].mxu0
        %v2886 = vpop.f32.mrb[0].mxu0
        %v2887 = vadd.f32 0.0, %v2886
        %v2888 = vpop.f32.mrb[0].mxu0
        %2889 = vdwg.mxu0
        %v2890 = vmul.f32 %v2237, 0.17677669
        %v2891 = vmul.f32 %v2240, 0.17677669
        %v2892 = vmul.f32 %v2245, 0.17677669
        %v2893 = vmul.f32 %v2248, 0.17677669
        %v2894 = vmul.f32 %v2253, 0.17677669
        %v2895 = vmul.f32 %v2256, 0.17677669
        %v2896 = vmul.f32 %v2261, 0.17677669
        %v2897 = vmul.f32 %v2264, 0.17677669
        %v2898 = vmul.f32 %v2326, 0.17677669
        %v2899 = vmul.f32 %v2329, 0.17677669
        %v2900 = vmul.f32 %v2334, 0.17677669
        %v2901 = vmul.f32 %v2337, 0.17677669
        %v2902 = vmul.f32 %v2342, 0.17677669
        %v2903 = vmul.f32 %v2345, 0.17677669
        %v2904 = vmul.f32 %v2350, 0.17677669
        %v2905 = vmul.f32 %v2353, 0.17677669
        %v2906 = vmul.f32 %v2415, 0.17677669
        %v2907 = vmul.f32 %v2418, 0.17677669
        %v2908 = vmul.f32 %v2423, 0.17677669
        %v2909 = vmul.f32 %v2426, 0.17677669
        %v2910 = vmul.f32 %v2431, 0.17677669
        %v2911 = vmul.f32 %v2434, 0.17677669
        %v2912 = vmul.f32 %v2439, 0.17677669
        %v2913 = vmul.f32 %v2442, 0.17677669
        %v2914 = vmul.f32 %v2504, 0.17677669
        %v2915 = vmul.f32 %v2507, 0.17677669
        %v2916 = vmul.f32 %v2512, 0.17677669
        %v2917 = vmul.f32 %v2515, 0.17677669
        %v2918 = vmul.f32 %v2520, 0.17677669
        %v2919 = vmul.f32 %v2523, 0.17677669
        %v2920 = vmul.f32 %v2528, 0.17677669
        %v2921 = vmul.f32 %v2531, 0.17677669
        %v2922 = vmul.f32 %v2593, 0.17677669
        %v2923 = vmul.f32 %v2596, 0.17677669
        %v2924 = vmul.f32 %v2601, 0.17677669
        %v2925 = vmul.f32 %v2604, 0.17677669
        %v2926 = vmul.f32 %v2609, 0.17677669
        %v2927 = vmul.f32 %v2612, 0.17677669
        %v2928 = vmul.f32 %v2617, 0.17677669
        %v2929 = vmul.f32 %v2620, 0.17677669
        %v2930 = vmul.f32 %v2682, 0.17677669
        %v2931 = vmul.f32 %v2685, 0.17677669
        %v2932 = vmul.f32 %v2690, 0.17677669
        %v2933 = vmul.f32 %v2693, 0.17677669
        %v2934 = vmul.f32 %v2698, 0.17677669
        %v2935 = vmul.f32 %v2701, 0.17677669
        %v2936 = vmul.f32 %v2706, 0.17677669
        %v2937 = vmul.f32 %v2709, 0.17677669
        %v2938 = vmul.f32 %v2771, 0.17677669
        %v2939 = vmul.f32 %v2774, 0.17677669
        %v2940 = vmul.f32 %v2779, 0.17677669
        %v2941 = vmul.f32 %v2782, 0.17677669
        %v2942 = vmul.f32 %v2787, 0.17677669
        %v2943 = vmul.f32 %v2790, 0.17677669
        %v2944 = vmul.f32 %v2795, 0.17677669
        %v2945 = vmul.f32 %v2798, 0.17677669
        %v2946 = vmul.f32 %v2860, 0.17677669
        %v2947 = vmul.f32 %v2863, 0.17677669
        %v2948 = vmul.f32 %v2868, 0.17677669
        %v2949 = vmul.f32 %v2871, 0.17677669
        %v2950 = vmul.f32 %v2876, 0.17677669
        %v2951 = vmul.f32 %v2879, 0.17677669
        %v2952 = vmul.f32 %v2884, 0.17677669
        %v2953 = vmul.f32 %v2887, 0.17677669
        %v2954 = vld [vmem:[%s877] sm:$0x1]
        %v2955 = vld [vmem:[%s877 + $0x1] sm:$0x1]
        %v2958 = vlaneseq
        %v2959 = vshrl.u32 %v2958, 7
        %v2960 = vsub.s32 0, %v2959
        %v2961 = vrot.slane %v2954, %v2960
        %v2962 = vlaneseq
        %v2963 = vshrl.u32 %v2962, 7
        %v2964 = vsub.s32 0, %v2963
        %v2965 = vrot.slane %v2955, %v2964
        %v2968 = vadd.f32 %v2890, %v2961
        %v2969 = vadd.f32 %v2891, %v2961
        %v2970 = vadd.f32 %v2892, %v2961
        %v2971 = vadd.f32 %v2893, %v2961
        %v2972 = vadd.f32 %v2894, %v2961
        %v2973 = vadd.f32 %v2895, %v2961
        %v2974 = vadd.f32 %v2896, %v2961
        %v2975 = vadd.f32 %v2897, %v2961
        %v2976 = vadd.f32 %v2898, %v2965
        %v2977 = vadd.f32 %v2899, %v2965
        %v2978 = vadd.f32 %v2900, %v2965
        %v2979 = vadd.f32 %v2901, %v2965
        %v2980 = vadd.f32 %v2902, %v2965
        %v2981 = vadd.f32 %v2903, %v2965
        %v2982 = vadd.f32 %v2904, %v2965
        %v2983 = vadd.f32 %v2905, %v2965
        %v2984 = vadd.f32 %v2906, %v2961
        %v2985 = vadd.f32 %v2907, %v2961
        %v2986 = vadd.f32 %v2908, %v2961
        %v2987 = vadd.f32 %v2909, %v2961
        %v2988 = vadd.f32 %v2910, %v2961
        %v2989 = vadd.f32 %v2911, %v2961
        %v2990 = vadd.f32 %v2912, %v2961
        %v2991 = vadd.f32 %v2913, %v2961
        %v2992 = vadd.f32 %v2914, %v2965
        %v2993 = vadd.f32 %v2915, %v2965
        %v2994 = vadd.f32 %v2916, %v2965
        %v2995 = vadd.f32 %v2917, %v2965
        %v2996 = vadd.f32 %v2918, %v2965
        %v2997 = vadd.f32 %v2919, %v2965
        %v2998 = vadd.f32 %v2920, %v2965
        %v2999 = vadd.f32 %v2921, %v2965
        %v3000 = vadd.f32 %v2922, %v2961
        %v3001 = vadd.f32 %v2923, %v2961
        %v3002 = vadd.f32 %v2924, %v2961
        %v3003 = vadd.f32 %v2925, %v2961
        %v3004 = vadd.f32 %v2926, %v2961
        %v3005 = vadd.f32 %v2927, %v2961
        %v3006 = vadd.f32 %v2928, %v2961
        %v3007 = vadd.f32 %v2929, %v2961
        %v3008 = vadd.f32 %v2930, %v2965
        %v3009 = vadd.f32 %v2931, %v2965
        %v3010 = vadd.f32 %v2932, %v2965
        %v3011 = vadd.f32 %v2933, %v2965
        %v3012 = vadd.f32 %v2934, %v2965
        %v3013 = vadd.f32 %v2935, %v2965
        %v3014 = vadd.f32 %v2936, %v2965
        %v3015 = vadd.f32 %v2937, %v2965
        %v3016 = vadd.f32 %v2938, %v2961
        %v3017 = vadd.f32 %v2939, %v2961
        %v3018 = vadd.f32 %v2940, %v2961
        %v3019 = vadd.f32 %v2941, %v2961
        %v3020 = vadd.f32 %v2942, %v2961
        %v3021 = vadd.f32 %v2943, %v2961
        %v3022 = vadd.f32 %v2944, %v2961
        %v3023 = vadd.f32 %v2945, %v2961
        %v3024 = vadd.f32 %v2946, %v2965
        %v3025 = vadd.f32 %v2947, %v2965
        %v3026 = vadd.f32 %v2948, %v2965
        %v3027 = vadd.f32 %v2949, %v2965
        %v3028 = vadd.f32 %v2950, %v2965
        %v3029 = vadd.f32 %v2951, %v2965
        %v3030 = vadd.f32 %v2952, %v2965
        %v3031 = vadd.f32 %v2953, %v2965
        %vm3032 = vcmask 523264
        %v3033 = vsel %vm3032, %v2968, -inf
        %3034 = vmax.xlane.f32.xlu0 %v3033
        %v3035 = vpop.xlane.xlu0 %3034
        %v3036 = vsel %vm3032, %v2969, -inf
        %3037 = vmax.xlane.f32.xlu0 %v3036
        %v3038 = vpop.xlane.xlu0 %3037
        %v3039 = vsel %vm3032, %v2970, -inf
        %3040 = vmax.xlane.f32.xlu0 %v3039
        %v3041 = vpop.xlane.xlu0 %3040
        %v3042 = vsel %vm3032, %v2971, -inf
        %3043 = vmax.xlane.f32.xlu0 %v3042
        %v3044 = vpop.xlane.xlu0 %3043
        %v3045 = vsel %vm3032, %v2972, -inf
        %3046 = vmax.xlane.f32.xlu0 %v3045
        %v3047 = vpop.xlane.xlu0 %3046
        %v3048 = vsel %vm3032, %v2973, -inf
        %3049 = vmax.xlane.f32.xlu0 %v3048
        %v3050 = vpop.xlane.xlu0 %3049
        %v3051 = vsel %vm3032, %v2974, -inf
        %3052 = vmax.xlane.f32.xlu0 %v3051
        %v3053 = vpop.xlane.xlu0 %3052
        %v3054 = vsel %vm3032, %v2975, -inf
        %3055 = vmax.xlane.f32.xlu0 %v3054
        %v3056 = vpop.xlane.xlu0 %3055
        %v3057 = vsel %vm3032, %v2976, -inf
        %3058 = vmax.xlane.f32.xlu0 %v3057
        %v3059 = vpop.xlane.xlu0 %3058
        %v3060 = vsel %vm3032, %v2977, -inf
        %3061 = vmax.xlane.f32.xlu0 %v3060
        %v3062 = vpop.xlane.xlu0 %3061
        %v3063 = vsel %vm3032, %v2978, -inf
        %3064 = vmax.xlane.f32.xlu0 %v3063
        %v3065 = vpop.xlane.xlu0 %3064
        %v3066 = vsel %vm3032, %v2979, -inf
        %3067 = vmax.xlane.f32.xlu0 %v3066
        %v3068 = vpop.xlane.xlu0 %3067
        %v3069 = vsel %vm3032, %v2980, -inf
        %3070 = vmax.xlane.f32.xlu0 %v3069
        %v3071 = vpop.xlane.xlu0 %3070
        %v3072 = vsel %vm3032, %v2981, -inf
        %3073 = vmax.xlane.f32.xlu0 %v3072
        %v3074 = vpop.xlane.xlu0 %3073
        %v3075 = vsel %vm3032, %v2982, -inf
        %3076 = vmax.xlane.f32.xlu0 %v3075
        %v3077 = vpop.xlane.xlu0 %3076
        %v3078 = vsel %vm3032, %v2983, -inf
        %3079 = vmax.xlane.f32.xlu0 %v3078
        %v3080 = vpop.xlane.xlu0 %3079
        %v3081 = vsel %vm3032, %v2984, -inf
        %3082 = vmax.xlane.f32.xlu0 %v3081
        %v3083 = vpop.xlane.xlu0 %3082
        %v3084 = vsel %vm3032, %v2985, -inf
        %3085 = vmax.xlane.f32.xlu0 %v3084
        %v3086 = vpop.xlane.xlu0 %3085
        %v3087 = vsel %vm3032, %v2986, -inf
        %3088 = vmax.xlane.f32.xlu0 %v3087
        %v3089 = vpop.xlane.xlu0 %3088
        %v3090 = vsel %vm3032, %v2987, -inf
        %3091 = vmax.xlane.f32.xlu0 %v3090
        %v3092 = vpop.xlane.xlu0 %3091
        %v3093 = vsel %vm3032, %v2988, -inf
        %3094 = vmax.xlane.f32.xlu0 %v3093
        %v3095 = vpop.xlane.xlu0 %3094
        %v3096 = vsel %vm3032, %v2989, -inf
        %3097 = vmax.xlane.f32.xlu0 %v3096
        %v3098 = vpop.xlane.xlu0 %3097
        %v3099 = vsel %vm3032, %v2990, -inf
        %3100 = vmax.xlane.f32.xlu0 %v3099
        %v3101 = vpop.xlane.xlu0 %3100
        %v3102 = vsel %vm3032, %v2991, -inf
        %3103 = vmax.xlane.f32.xlu0 %v3102
        %v3104 = vpop.xlane.xlu0 %3103
        %v3105 = vsel %vm3032, %v2992, -inf
        %3106 = vmax.xlane.f32.xlu0 %v3105
        %v3107 = vpop.xlane.xlu0 %3106
        %v3108 = vsel %vm3032, %v2993, -inf
        %3109 = vmax.xlane.f32.xlu0 %v3108
        %v3110 = vpop.xlane.xlu0 %3109
        %v3111 = vsel %vm3032, %v2994, -inf
        %3112 = vmax.xlane.f32.xlu0 %v3111
        %v3113 = vpop.xlane.xlu0 %3112
        %v3114 = vsel %vm3032, %v2995, -inf
        %3115 = vmax.xlane.f32.xlu0 %v3114
        %v3116 = vpop.xlane.xlu0 %3115
        %v3117 = vsel %vm3032, %v2996, -inf
        %3118 = vmax.xlane.f32.xlu0 %v3117
        %v3119 = vpop.xlane.xlu0 %3118
        %v3120 = vsel %vm3032, %v2997, -inf
        %3121 = vmax.xlane.f32.xlu0 %v3120
        %v3122 = vpop.xlane.xlu0 %3121
        %v3123 = vsel %vm3032, %v2998, -inf
        %3124 = vmax.xlane.f32.xlu0 %v3123
        %v3125 = vpop.xlane.xlu0 %3124
        %v3126 = vsel %vm3032, %v2999, -inf
        %3127 = vmax.xlane.f32.xlu0 %v3126
        %v3128 = vpop.xlane.xlu0 %3127
        %v3129 = vsel %vm3032, %v3000, -inf
        %3130 = vmax.xlane.f32.xlu0 %v3129
        %v3131 = vpop.xlane.xlu0 %3130
        %v3132 = vsel %vm3032, %v3001, -inf
        %3133 = vmax.xlane.f32.xlu0 %v3132
        %v3134 = vpop.xlane.xlu0 %3133
        %v3135 = vsel %vm3032, %v3002, -inf
        %3136 = vmax.xlane.f32.xlu0 %v3135
        %v3137 = vpop.xlane.xlu0 %3136
        %v3138 = vsel %vm3032, %v3003, -inf
        %3139 = vmax.xlane.f32.xlu0 %v3138
        %v3140 = vpop.xlane.xlu0 %3139
        %v3141 = vsel %vm3032, %v3004, -inf
        %3142 = vmax.xlane.f32.xlu0 %v3141
        %v3143 = vpop.xlane.xlu0 %3142
        %v3144 = vsel %vm3032, %v3005, -inf
        %3145 = vmax.xlane.f32.xlu0 %v3144
        %v3146 = vpop.xlane.xlu0 %3145
        %v3147 = vsel %vm3032, %v3006, -inf
        %3148 = vmax.xlane.f32.xlu0 %v3147
        %v3149 = vpop.xlane.xlu0 %3148
        %v3150 = vsel %vm3032, %v3007, -inf
        %3151 = vmax.xlane.f32.xlu0 %v3150
        %v3152 = vpop.xlane.xlu0 %3151
        %v3153 = vsel %vm3032, %v3008, -inf
        %3154 = vmax.xlane.f32.xlu0 %v3153
        %v3155 = vpop.xlane.xlu0 %3154
        %v3156 = vsel %vm3032, %v3009, -inf
        %3157 = vmax.xlane.f32.xlu0 %v3156
        %v3158 = vpop.xlane.xlu0 %3157
        %v3159 = vsel %vm3032, %v3010, -inf
        %3160 = vmax.xlane.f32.xlu0 %v3159
        %v3161 = vpop.xlane.xlu0 %3160
        %v3162 = vsel %vm3032, %v3011, -inf
        %3163 = vmax.xlane.f32.xlu0 %v3162
        %v3164 = vpop.xlane.xlu0 %3163
        %v3165 = vsel %vm3032, %v3012, -inf
        %3166 = vmax.xlane.f32.xlu0 %v3165
        %v3167 = vpop.xlane.xlu0 %3166
        %v3168 = vsel %vm3032, %v3013, -inf
        %3169 = vmax.xlane.f32.xlu0 %v3168
        %v3170 = vpop.xlane.xlu0 %3169
        %v3171 = vsel %vm3032, %v3014, -inf
        %3172 = vmax.xlane.f32.xlu0 %v3171
        %v3173 = vpop.xlane.xlu0 %3172
        %v3174 = vsel %vm3032, %v3015, -inf
        %3175 = vmax.xlane.f32.xlu0 %v3174
        %v3176 = vpop.xlane.xlu0 %3175
        %v3177 = vsel %vm3032, %v3016, -inf
        %3178 = vmax.xlane.f32.xlu0 %v3177
        %v3179 = vpop.xlane.xlu0 %3178
        %v3180 = vsel %vm3032, %v3017, -inf
        %3181 = vmax.xlane.f32.xlu0 %v3180
        %v3182 = vpop.xlane.xlu0 %3181
        %v3183 = vsel %vm3032, %v3018, -inf
        %3184 = vmax.xlane.f32.xlu0 %v3183
        %v3185 = vpop.xlane.xlu0 %3184
        %v3186 = vsel %vm3032, %v3019, -inf
        %3187 = vmax.xlane.f32.xlu0 %v3186
        %v3188 = vpop.xlane.xlu0 %3187
        %v3189 = vsel %vm3032, %v3020, -inf
        %3190 = vmax.xlane.f32.xlu0 %v3189
        %v3191 = vpop.xlane.xlu0 %3190
        %v3192 = vsel %vm3032, %v3021, -inf
        %3193 = vmax.xlane.f32.xlu0 %v3192
        %v3194 = vpop.xlane.xlu0 %3193
        %v3195 = vsel %vm3032, %v3022, -inf
        %3196 = vmax.xlane.f32.xlu0 %v3195
        %v3197 = vpop.xlane.xlu0 %3196
        %v3198 = vsel %vm3032, %v3023, -inf
        %3199 = vmax.xlane.f32.xlu0 %v3198
        %v3200 = vpop.xlane.xlu0 %3199
        %v3201 = vsel %vm3032, %v3024, -inf
        %3202 = vmax.xlane.f32.xlu0 %v3201
        %v3203 = vpop.xlane.xlu0 %3202
        %v3204 = vsel %vm3032, %v3025, -inf
        %3205 = vmax.xlane.f32.xlu0 %v3204
        %v3206 = vpop.xlane.xlu0 %3205
        %v3207 = vsel %vm3032, %v3026, -inf
        %3208 = vmax.xlane.f32.xlu0 %v3207
        %v3209 = vpop.xlane.xlu0 %3208
        %v3210 = vsel %vm3032, %v3027, -inf
        %3211 = vmax.xlane.f32.xlu0 %v3210
        %v3212 = vpop.xlane.xlu0 %3211
        %v3213 = vsel %vm3032, %v3028, -inf
        %3214 = vmax.xlane.f32.xlu0 %v3213
        %v3215 = vpop.xlane.xlu0 %3214
        %v3216 = vsel %vm3032, %v3029, -inf
        %3217 = vmax.xlane.f32.xlu0 %v3216
        %v3218 = vpop.xlane.xlu0 %3217
        %v3219 = vsel %vm3032, %v3030, -inf
        %3220 = vmax.xlane.f32.xlu0 %v3219
        %v3221 = vpop.xlane.xlu0 %3220
        %v3222 = vsel %vm3032, %v3031, -inf
        %3223 = vmax.xlane.f32.xlu0 %v3222
        %v3224 = vpop.xlane.xlu0 %3223
        %v3225 = vsub.f32 %v2968, %v3035
        %v3226 = vsub.f32 %v2969, %v3038
        %v3227 = vsub.f32 %v2970, %v3041
        %v3228 = vsub.f32 %v2971, %v3044
        %v3229 = vsub.f32 %v2972, %v3047
        %v3230 = vsub.f32 %v2973, %v3050
        %v3231 = vsub.f32 %v2974, %v3053
        %v3232 = vsub.f32 %v2975, %v3056
        %v3233 = vsub.f32 %v2976, %v3059
        %v3234 = vsub.f32 %v2977, %v3062
        %v3235 = vsub.f32 %v2978, %v3065
        %v3236 = vsub.f32 %v2979, %v3068
        %v3237 = vsub.f32 %v2980, %v3071
        %v3238 = vsub.f32 %v2981, %v3074
        %v3239 = vsub.f32 %v2982, %v3077
        %v3240 = vsub.f32 %v2983, %v3080
        %v3241 = vsub.f32 %v2984, %v3083
        %v3242 = vsub.f32 %v2985, %v3086
        %v3243 = vsub.f32 %v2986, %v3089
        %v3244 = vsub.f32 %v2987, %v3092
        %v3245 = vsub.f32 %v2988, %v3095
        %v3246 = vsub.f32 %v2989, %v3098
        %v3247 = vsub.f32 %v2990, %v3101
        %v3248 = vsub.f32 %v2991, %v3104
        %v3249 = vsub.f32 %v2992, %v3107
        %v3250 = vsub.f32 %v2993, %v3110
        %v3251 = vsub.f32 %v2994, %v3113
        %v3252 = vsub.f32 %v2995, %v3116
        %v3253 = vsub.f32 %v2996, %v3119
        %v3254 = vsub.f32 %v2997, %v3122
        %v3255 = vsub.f32 %v2998, %v3125
        %v3256 = vsub.f32 %v2999, %v3128
        %v3257 = vsub.f32 %v3000, %v3131
        %v3258 = vsub.f32 %v3001, %v3134
        %v3259 = vsub.f32 %v3002, %v3137
        %v3260 = vsub.f32 %v3003, %v3140
        %v3261 = vsub.f32 %v3004, %v3143
        %v3262 = vsub.f32 %v3005, %v3146
        %v3263 = vsub.f32 %v3006, %v3149
        %v3264 = vsub.f32 %v3007, %v3152
        %v3265 = vsub.f32 %v3008, %v3155
        %v3266 = vsub.f32 %v3009, %v3158
        %v3267 = vsub.f32 %v3010, %v3161
        %v3268 = vsub.f32 %v3011, %v3164
        %v3269 = vsub.f32 %v3012, %v3167
        %v3270 = vsub.f32 %v3013, %v3170
        %v3271 = vsub.f32 %v3014, %v3173
        %v3272 = vsub.f32 %v3015, %v3176
        %v3273 = vsub.f32 %v3016, %v3179
        %v3274 = vsub.f32 %v3017, %v3182
        %v3275 = vsub.f32 %v3018, %v3185
        %v3276 = vsub.f32 %v3019, %v3188
        %v3277 = vsub.f32 %v3020, %v3191
        %v3278 = vsub.f32 %v3021, %v3194
        %v3279 = vsub.f32 %v3022, %v3197
        %v3280 = vsub.f32 %v3023, %v3200
        %v3281 = vsub.f32 %v3024, %v3203
        %v3282 = vsub.f32 %v3025, %v3206
        %v3283 = vsub.f32 %v3026, %v3209
        %v3284 = vsub.f32 %v3027, %v3212
        %v3285 = vsub.f32 %v3028, %v3215
        %v3286 = vsub.f32 %v3029, %v3218
        %v3287 = vsub.f32 %v3030, %v3221
        %v3288 = vsub.f32 %v3031, %v3224
        %v3289 = vmul.f32 %v3225, 1.442695
        %v3290 = vpow.pop %v3289
        %v3291 = vmul.f32 %v3226, 1.442695
        %v3292 = vpow.pop %v3291
        %v3293 = vmul.f32 %v3227, 1.442695
        %v3294 = vpow.pop %v3293
        %v3295 = vmul.f32 %v3228, 1.442695
        %v3296 = vpow.pop %v3295
        %v3297 = vmul.f32 %v3229, 1.442695
        %v3298 = vpow.pop %v3297
        %v3299 = vmul.f32 %v3230, 1.442695
        %v3300 = vpow.pop %v3299
        %v3301 = vmul.f32 %v3231, 1.442695
        %v3302 = vpow.pop %v3301
        %v3303 = vmul.f32 %v3232, 1.442695
        %v3304 = vpow.pop %v3303
        %v3305 = vmul.f32 %v3233, 1.442695
        %v3306 = vpow.pop %v3305
        %v3307 = vmul.f32 %v3234, 1.442695
        %v3308 = vpow.pop %v3307
        %v3309 = vmul.f32 %v3235, 1.442695
        %v3310 = vpow.pop %v3309
        %v3311 = vmul.f32 %v3236, 1.442695
        %v3312 = vpow.pop %v3311
        %v3313 = vmul.f32 %v3237, 1.442695
        %v3314 = vpow.pop %v3313
        %v3315 = vmul.f32 %v3238, 1.442695
        %v3316 = vpow.pop %v3315
        %v3317 = vmul.f32 %v3239, 1.442695
        %v3318 = vpow.pop %v3317
        %v3319 = vmul.f32 %v3240, 1.442695
        %v3320 = vpow.pop %v3319
        %v3321 = vmul.f32 %v3241, 1.442695
        %v3322 = vpow.pop %v3321
        %v3323 = vmul.f32 %v3242, 1.442695
        %v3324 = vpow.pop %v3323
        %v3325 = vmul.f32 %v3243, 1.442695
        %v3326 = vpow.pop %v3325
        %v3327 = vmul.f32 %v3244, 1.442695
        %v3328 = vpow.pop %v3327
        %v3329 = vmul.f32 %v3245, 1.442695
        %v3330 = vpow.pop %v3329
        %v3331 = vmul.f32 %v3246, 1.442695
        %v3332 = vpow.pop %v3331
        %v3333 = vmul.f32 %v3247, 1.442695
        %v3334 = vpow.pop %v3333
        %v3335 = vmul.f32 %v3248, 1.442695
        %v3336 = vpow.pop %v3335
        %v3337 = vmul.f32 %v3249, 1.442695
        %v3338 = vpow.pop %v3337
        %v3339 = vmul.f32 %v3250, 1.442695
        %v3340 = vpow.pop %v3339
        %v3341 = vmul.f32 %v3251, 1.442695
        %v3342 = vpow.pop %v3341
        %v3343 = vmul.f32 %v3252, 1.442695
        %v3344 = vpow.pop %v3343
        %v3345 = vmul.f32 %v3253, 1.442695
        %v3346 = vpow.pop %v3345
        %v3347 = vmul.f32 %v3254, 1.442695
        %v3348 = vpow.pop %v3347
        %v3349 = vmul.f32 %v3255, 1.442695
        %v3350 = vpow.pop %v3349
        %v3351 = vmul.f32 %v3256, 1.442695
        %v3352 = vpow.pop %v3351
        %v3353 = vmul.f32 %v3257, 1.442695
        %v3354 = vpow.pop %v3353
        %v3355 = vmul.f32 %v3258, 1.442695
        %v3356 = vpow.pop %v3355
        %v3357 = vmul.f32 %v3259, 1.442695
        %v3358 = vpow.pop %v3357
        %v3359 = vmul.f32 %v3260, 1.442695
        %v3360 = vpow.pop %v3359
        %v3361 = vmul.f32 %v3261, 1.442695
        %v3362 = vpow.pop %v3361
        %v3363 = vmul.f32 %v3262, 1.442695
        %v3364 = vpow.pop %v3363
        %v3365 = vmul.f32 %v3263, 1.442695
        %v3366 = vpow.pop %v3365
        %v3367 = vmul.f32 %v3264, 1.442695
        %v3368 = vpow.pop %v3367
        %v3369 = vmul.f32 %v3265, 1.442695
        %v3370 = vpow.pop %v3369
        %v3371 = vmul.f32 %v3266, 1.442695
        %v3372 = vpow.pop %v3371
        %v3373 = vmul.f32 %v3267, 1.442695
        %v3374 = vpow.pop %v3373
        %v3375 = vmul.f32 %v3268, 1.442695
        %v3376 = vpow.pop %v3375
        %v3377 = vmul.f32 %v3269, 1.442695
        %v3378 = vpow.pop %v3377
        %v3379 = vmul.f32 %v3270, 1.442695
        %v3380 = vpow.pop %v3379
        %v3381 = vmul.f32 %v3271, 1.442695
        %v3382 = vpow.pop %v3381
        %v3383 = vmul.f32 %v3272, 1.442695
        %v3384 = vpow.pop %v3383
        %v3385 = vmul.f32 %v3273, 1.442695
        %v3386 = vpow.pop %v3385
        %v3387 = vmul.f32 %v3274, 1.442695
        %v3388 = vpow.pop %v3387
        %v3389 = vmul.f32 %v3275, 1.442695
        %v3390 = vpow.pop %v3389
        %v3391 = vmul.f32 %v3276, 1.442695
        %v3392 = vpow.pop %v3391
        %v3393 = vmul.f32 %v3277, 1.442695
        %v3394 = vpow.pop %v3393
        %v3395 = vmul.f32 %v3278, 1.442695
        %v3396 = vpow.pop %v3395
        %v3397 = vmul.f32 %v3279, 1.442695
        %v3398 = vpow.pop %v3397
        %v3399 = vmul.f32 %v3280, 1.442695
        %v3400 = vpow.pop %v3399
        %v3401 = vmul.f32 %v3281, 1.442695
        %v3402 = vpow.pop %v3401
        %v3403 = vmul.f32 %v3282, 1.442695
        %v3404 = vpow.pop %v3403
        %v3405 = vmul.f32 %v3283, 1.442695
        %v3406 = vpow.pop %v3405
        %v3407 = vmul.f32 %v3284, 1.442695
        %v3408 = vpow.pop %v3407
        %v3409 = vmul.f32 %v3285, 1.442695
        %v3410 = vpow.pop %v3409
        %v3411 = vmul.f32 %v3286, 1.442695
        %v3412 = vpow.pop %v3411
        %v3413 = vmul.f32 %v3287, 1.442695
        %v3414 = vpow.pop %v3413
        %v3415 = vmul.f32 %v3288, 1.442695
        %v3416 = vpow.pop %v3415
        %v3417 = vsel %vm3032, %v3290, 0.0
        %3418 = vadd.xlane.f32.xlu0 %v3417
        %v3419 = vpop.xlane.xlu0 %3418
        %v3420 = vsel %vm3032, %v3292, 0.0
        %3421 = vadd.xlane.f32.xlu0 %v3420
        %v3422 = vpop.xlane.xlu0 %3421
        %v3423 = vsel %vm3032, %v3294, 0.0
        %3424 = vadd.xlane.f32.xlu0 %v3423
        %v3425 = vpop.xlane.xlu0 %3424
        %v3426 = vsel %vm3032, %v3296, 0.0
        %3427 = vadd.xlane.f32.xlu0 %v3426
        %v3428 = vpop.xlane.xlu0 %3427
        %v3429 = vsel %vm3032, %v3298, 0.0
        %3430 = vadd.xlane.f32.xlu0 %v3429
        %v3431 = vpop.xlane.xlu0 %3430
        %v3432 = vsel %vm3032, %v3300, 0.0
        %3433 = vadd.xlane.f32.xlu0 %v3432
        %v3434 = vpop.xlane.xlu0 %3433
        %v3435 = vsel %vm3032, %v3302, 0.0
        %3436 = vadd.xlane.f32.xlu0 %v3435
        %v3437 = vpop.xlane.xlu0 %3436
        %v3438 = vsel %vm3032, %v3304, 0.0
        %3439 = vadd.xlane.f32.xlu0 %v3438
        %v3440 = vpop.xlane.xlu0 %3439
        %v3441 = vsel %vm3032, %v3306, 0.0
        %3442 = vadd.xlane.f32.xlu0 %v3441
        %v3443 = vpop.xlane.xlu0 %3442
        %v3444 = vsel %vm3032, %v3308, 0.0
        %3445 = vadd.xlane.f32.xlu0 %v3444
        %v3446 = vpop.xlane.xlu0 %3445
        %v3447 = vsel %vm3032, %v3310, 0.0
        %3448 = vadd.xlane.f32.xlu0 %v3447
        %v3449 = vpop.xlane.xlu0 %3448
        %v3450 = vsel %vm3032, %v3312, 0.0
        %3451 = vadd.xlane.f32.xlu0 %v3450
        %v3452 = vpop.xlane.xlu0 %3451
        %v3453 = vsel %vm3032, %v3314, 0.0
        %3454 = vadd.xlane.f32.xlu0 %v3453
        %v3455 = vpop.xlane.xlu0 %3454
        %v3456 = vsel %vm3032, %v3316, 0.0
        %3457 = vadd.xlane.f32.xlu0 %v3456
        %v3458 = vpop.xlane.xlu0 %3457
        %v3459 = vsel %vm3032, %v3318, 0.0
        %3460 = vadd.xlane.f32.xlu0 %v3459
        %v3461 = vpop.xlane.xlu0 %3460
        %v3462 = vsel %vm3032, %v3320, 0.0
        %3463 = vadd.xlane.f32.xlu0 %v3462
        %v3464 = vpop.xlane.xlu0 %3463
        %v3465 = vsel %vm3032, %v3322, 0.0
        %3466 = vadd.xlane.f32.xlu0 %v3465
        %v3467 = vpop.xlane.xlu0 %3466
        %v3468 = vsel %vm3032, %v3324, 0.0
        %3469 = vadd.xlane.f32.xlu0 %v3468
        %v3470 = vpop.xlane.xlu0 %3469
        %v3471 = vsel %vm3032, %v3326, 0.0
        %3472 = vadd.xlane.f32.xlu0 %v3471
        %v3473 = vpop.xlane.xlu0 %3472
        %v3474 = vsel %vm3032, %v3328, 0.0
        %3475 = vadd.xlane.f32.xlu0 %v3474
        %v3476 = vpop.xlane.xlu0 %3475
        %v3477 = vsel %vm3032, %v3330, 0.0
        %3478 = vadd.xlane.f32.xlu0 %v3477
        %v3479 = vpop.xlane.xlu0 %3478
        %v3480 = vsel %vm3032, %v3332, 0.0
        %3481 = vadd.xlane.f32.xlu0 %v3480
        %v3482 = vpop.xlane.xlu0 %3481
        %v3483 = vsel %vm3032, %v3334, 0.0
        %3484 = vadd.xlane.f32.xlu0 %v3483
        %v3485 = vpop.xlane.xlu0 %3484
        %v3486 = vsel %vm3032, %v3336, 0.0
        %3487 = vadd.xlane.f32.xlu0 %v3486
        %v3488 = vpop.xlane.xlu0 %3487
        %v3489 = vsel %vm3032, %v3338, 0.0
        %3490 = vadd.xlane.f32.xlu0 %v3489
        %v3491 = vpop.xlane.xlu0 %3490
        %v3492 = vsel %vm3032, %v3340, 0.0
        %3493 = vadd.xlane.f32.xlu0 %v3492
        %v3494 = vpop.xlane.xlu0 %3493
        %v3495 = vsel %vm3032, %v3342, 0.0
        %3496 = vadd.xlane.f32.xlu0 %v3495
        %v3497 = vpop.xlane.xlu0 %3496
        %v3498 = vsel %vm3032, %v3344, 0.0
        %3499 = vadd.xlane.f32.xlu0 %v3498
        %v3500 = vpop.xlane.xlu0 %3499
        %v3501 = vsel %vm3032, %v3346, 0.0
        %3502 = vadd.xlane.f32.xlu0 %v3501
        %v3503 = vpop.xlane.xlu0 %3502
        %v3504 = vsel %vm3032, %v3348, 0.0
        %3505 = vadd.xlane.f32.xlu0 %v3504
        %v3506 = vpop.xlane.xlu0 %3505
        %v3507 = vsel %vm3032, %v3350, 0.0
        %3508 = vadd.xlane.f32.xlu0 %v3507
        %v3509 = vpop.xlane.xlu0 %3508
        %v3510 = vsel %vm3032, %v3352, 0.0
        %3511 = vadd.xlane.f32.xlu0 %v3510
        %v3512 = vpop.xlane.xlu0 %3511
        %v3513 = vsel %vm3032, %v3354, 0.0
        %3514 = vadd.xlane.f32.xlu0 %v3513
        %v3515 = vpop.xlane.xlu0 %3514
        %v3516 = vsel %vm3032, %v3356, 0.0
        %3517 = vadd.xlane.f32.xlu0 %v3516
        %v3518 = vpop.xlane.xlu0 %3517
        %v3519 = vsel %vm3032, %v3358, 0.0
        %3520 = vadd.xlane.f32.xlu0 %v3519
        %v3521 = vpop.xlane.xlu0 %3520
        %v3522 = vsel %vm3032, %v3360, 0.0
        %3523 = vadd.xlane.f32.xlu0 %v3522
        %v3524 = vpop.xlane.xlu0 %3523
        %v3525 = vsel %vm3032, %v3362, 0.0
        %3526 = vadd.xlane.f32.xlu0 %v3525
        %v3527 = vpop.xlane.xlu0 %3526
        %v3528 = vsel %vm3032, %v3364, 0.0
        %3529 = vadd.xlane.f32.xlu0 %v3528
        %v3530 = vpop.xlane.xlu0 %3529
        %v3531 = vsel %vm3032, %v3366, 0.0
        %3532 = vadd.xlane.f32.xlu0 %v3531
        %v3533 = vpop.xlane.xlu0 %3532
        %v3534 = vsel %vm3032, %v3368, 0.0
        %3535 = vadd.xlane.f32.xlu0 %v3534
        %v3536 = vpop.xlane.xlu0 %3535
        %v3537 = vsel %vm3032, %v3370, 0.0
        %3538 = vadd.xlane.f32.xlu0 %v3537
        %v3539 = vpop.xlane.xlu0 %3538
        %v3540 = vsel %vm3032, %v3372, 0.0
        %3541 = vadd.xlane.f32.xlu0 %v3540
        %v3542 = vpop.xlane.xlu0 %3541
        %v3543 = vsel %vm3032, %v3374, 0.0
        %3544 = vadd.xlane.f32.xlu0 %v3543
        %v3545 = vpop.xlane.xlu0 %3544
        %v3546 = vsel %vm3032, %v3376, 0.0
        %3547 = vadd.xlane.f32.xlu0 %v3546
        %v3548 = vpop.xlane.xlu0 %3547
        %v3549 = vsel %vm3032, %v3378, 0.0
        %3550 = vadd.xlane.f32.xlu0 %v3549
        %v3551 = vpop.xlane.xlu0 %3550
        %v3552 = vsel %vm3032, %v3380, 0.0
        %3553 = vadd.xlane.f32.xlu0 %v3552
        %v3554 = vpop.xlane.xlu0 %3553
        %v3555 = vsel %vm3032, %v3382, 0.0
        %3556 = vadd.xlane.f32.xlu0 %v3555
        %v3557 = vpop.xlane.xlu0 %3556
        %v3558 = vsel %vm3032, %v3384, 0.0
        %3559 = vadd.xlane.f32.xlu0 %v3558
        %v3560 = vpop.xlane.xlu0 %3559
        %v3561 = vsel %vm3032, %v3386, 0.0
        %3562 = vadd.xlane.f32.xlu0 %v3561
        %v3563 = vpop.xlane.xlu0 %3562
        %v3564 = vsel %vm3032, %v3388, 0.0
        %3565 = vadd.xlane.f32.xlu0 %v3564
        %v3566 = vpop.xlane.xlu0 %3565
        %v3567 = vsel %vm3032, %v3390, 0.0
        %3568 = vadd.xlane.f32.xlu0 %v3567
        %v3569 = vpop.xlane.xlu0 %3568
        %v3570 = vsel %vm3032, %v3392, 0.0
        %3571 = vadd.xlane.f32.xlu0 %v3570
        %v3572 = vpop.xlane.xlu0 %3571
        %v3573 = vsel %vm3032, %v3394, 0.0
        %3574 = vadd.xlane.f32.xlu0 %v3573
        %v3575 = vpop.xlane.xlu0 %3574
        %v3576 = vsel %vm3032, %v3396, 0.0
        %3577 = vadd.xlane.f32.xlu0 %v3576
        %v3578 = vpop.xlane.xlu0 %3577
        %v3579 = vsel %vm3032, %v3398, 0.0
        %3580 = vadd.xlane.f32.xlu0 %v3579
        %v3581 = vpop.xlane.xlu0 %3580
        %v3582 = vsel %vm3032, %v3400, 0.0
        %3583 = vadd.xlane.f32.xlu0 %v3582
        %v3584 = vpop.xlane.xlu0 %3583
        %v3585 = vsel %vm3032, %v3402, 0.0
        %3586 = vadd.xlane.f32.xlu0 %v3585
        %v3587 = vpop.xlane.xlu0 %3586
        %v3588 = vsel %vm3032, %v3404, 0.0
        %3589 = vadd.xlane.f32.xlu0 %v3588
        %v3590 = vpop.xlane.xlu0 %3589
        %v3591 = vsel %vm3032, %v3406, 0.0
        %3592 = vadd.xlane.f32.xlu0 %v3591
        %v3593 = vpop.xlane.xlu0 %3592
        %v3594 = vsel %vm3032, %v3408, 0.0
        %3595 = vadd.xlane.f32.xlu0 %v3594
        %v3596 = vpop.xlane.xlu0 %3595
        %v3597 = vsel %vm3032, %v3410, 0.0
        %3598 = vadd.xlane.f32.xlu0 %v3597
        %v3599 = vpop.xlane.xlu0 %3598
        %v3600 = vsel %vm3032, %v3412, 0.0
        %3601 = vadd.xlane.f32.xlu0 %v3600
        %v3602 = vpop.xlane.xlu0 %3601
        %v3603 = vsel %vm3032, %v3414, 0.0
        %3604 = vadd.xlane.f32.xlu0 %v3603
        %v3605 = vpop.xlane.xlu0 %3604
        %v3606 = vsel %vm3032, %v3416, 0.0
        %3607 = vadd.xlane.f32.xlu0 %v3606
        %v3608 = vpop.xlane.xlu0 %3607
        %v3609 = vrcp.pop %v3419
        %v3610 = vrcp.pop %v3422
        %v3611 = vrcp.pop %v3425
        %v3612 = vrcp.pop %v3428
        %v3613 = vrcp.pop %v3431
        %v3614 = vrcp.pop %v3434
        %v3615 = vrcp.pop %v3437
        %v3616 = vrcp.pop %v3440
        %v3617 = vrcp.pop %v3443
        %v3618 = vrcp.pop %v3446
        %v3619 = vrcp.pop %v3449
        %v3620 = vrcp.pop %v3452
        %v3621 = vrcp.pop %v3455
        %v3622 = vrcp.pop %v3458
        %v3623 = vrcp.pop %v3461
        %v3624 = vrcp.pop %v3464
        %v3625 = vrcp.pop %v3467
        %v3626 = vrcp.pop %v3470
        %v3627 = vrcp.pop %v3473
        %v3628 = vrcp.pop %v3476
        %v3629 = vrcp.pop %v3479
        %v3630 = vrcp.pop %v3482
        %v3631 = vrcp.pop %v3485
        %v3632 = vrcp.pop %v3488
        %v3633 = vrcp.pop %v3491
        %v3634 = vrcp.pop %v3494
        %v3635 = vrcp.pop %v3497
        %v3636 = vrcp.pop %v3500
        %v3637 = vrcp.pop %v3503
        %v3638 = vrcp.pop %v3506
        %v3639 = vrcp.pop %v3509
        %v3640 = vrcp.pop %v3512
        %v3641 = vrcp.pop %v3515
        %v3642 = vrcp.pop %v3518
        %v3643 = vrcp.pop %v3521
        %v3644 = vrcp.pop %v3524
        %v3645 = vrcp.pop %v3527
        %v3646 = vrcp.pop %v3530
        %v3647 = vrcp.pop %v3533
        %v3648 = vrcp.pop %v3536
        %v3649 = vrcp.pop %v3539
        %v3650 = vrcp.pop %v3542
        %v3651 = vrcp.pop %v3545
        %v3652 = vrcp.pop %v3548
        %v3653 = vrcp.pop %v3551
        %v3654 = vrcp.pop %v3554
        %v3655 = vrcp.pop %v3557
        %v3656 = vrcp.pop %v3560
        %v3657 = vrcp.pop %v3563
        %v3658 = vrcp.pop %v3566
        %v3659 = vrcp.pop %v3569
        %v3660 = vrcp.pop %v3572
        %v3661 = vrcp.pop %v3575
        %v3662 = vrcp.pop %v3578
        %v3663 = vrcp.pop %v3581
        %v3664 = vrcp.pop %v3584
        %v3665 = vrcp.pop %v3587
        %v3666 = vrcp.pop %v3590
        %v3667 = vrcp.pop %v3593
        %v3668 = vrcp.pop %v3596
        %v3669 = vrcp.pop %v3599
        %v3670 = vrcp.pop %v3602
        %v3671 = vrcp.pop %v3605
        %v3672 = vrcp.pop %v3608
        %v3673 = vmul.f32 %v3290, %v3609
        %v3674 = vmul.f32 %v3292, %v3610
        %v3675 = vmul.f32 %v3294, %v3611
        %v3676 = vmul.f32 %v3296, %v3612
        %v3677 = vmul.f32 %v3298, %v3613
        %v3678 = vmul.f32 %v3300, %v3614
        %v3679 = vmul.f32 %v3302, %v3615
        %v3680 = vmul.f32 %v3304, %v3616
        %v3681 = vmul.f32 %v3306, %v3617
        %v3682 = vmul.f32 %v3308, %v3618
        %v3683 = vmul.f32 %v3310, %v3619
        %v3684 = vmul.f32 %v3312, %v3620
        %v3685 = vmul.f32 %v3314, %v3621
        %v3686 = vmul.f32 %v3316, %v3622
        %v3687 = vmul.f32 %v3318, %v3623
        %v3688 = vmul.f32 %v3320, %v3624
        %v3689 = vmul.f32 %v3322, %v3625
        %v3690 = vmul.f32 %v3324, %v3626
        %v3691 = vmul.f32 %v3326, %v3627
        %v3692 = vmul.f32 %v3328, %v3628
        %v3693 = vmul.f32 %v3330, %v3629
        %v3694 = vmul.f32 %v3332, %v3630
        %v3695 = vmul.f32 %v3334, %v3631
        %v3696 = vmul.f32 %v3336, %v3632
        %v3697 = vmul.f32 %v3338, %v3633
        %v3698 = vmul.f32 %v3340, %v3634
        %v3699 = vmul.f32 %v3342, %v3635
        %v3700 = vmul.f32 %v3344, %v3636
        %v3701 = vmul.f32 %v3346, %v3637
        %v3702 = vmul.f32 %v3348, %v3638
        %v3703 = vmul.f32 %v3350, %v3639
        %v3704 = vmul.f32 %v3352, %v3640
        %v3705 = vmul.f32 %v3354, %v3641
        %v3706 = vmul.f32 %v3356, %v3642
        %v3707 = vmul.f32 %v3358, %v3643
        %v3708 = vmul.f32 %v3360, %v3644
        %v3709 = vmul.f32 %v3362, %v3645
        %v3710 = vmul.f32 %v3364, %v3646
        %v3711 = vmul.f32 %v3366, %v3647
        %v3712 = vmul.f32 %v3368, %v3648
        %v3713 = vmul.f32 %v3370, %v3649
        %v3714 = vmul.f32 %v3372, %v3650
        %v3715 = vmul.f32 %v3374, %v3651
        %v3716 = vmul.f32 %v3376, %v3652
        %v3717 = vmul.f32 %v3378, %v3653
        %v3718 = vmul.f32 %v3380, %v3654
        %v3719 = vmul.f32 %v3382, %v3655
        %v3720 = vmul.f32 %v3384, %v3656
        %v3721 = vmul.f32 %v3386, %v3657
        %v3722 = vmul.f32 %v3388, %v3658
        %v3723 = vmul.f32 %v3390, %v3659
        %v3724 = vmul.f32 %v3392, %v3660
        %v3725 = vmul.f32 %v3394, %v3661
        %v3726 = vmul.f32 %v3396, %v3662
        %v3727 = vmul.f32 %v3398, %v3663
        %v3728 = vmul.f32 %v3400, %v3664
        %v3729 = vmul.f32 %v3402, %v3665
        %v3730 = vmul.f32 %v3404, %v3666
        %v3731 = vmul.f32 %v3406, %v3667
        %v3732 = vmul.f32 %v3408, %v3668
        %v3733 = vmul.f32 %v3410, %v3669
        %v3734 = vmul.f32 %v3412, %v3670
        %v3735 = vmul.f32 %v3414, %v3671
        %v3736 = vmul.f32 %v3416, %v3672
        %v3737 = vpack.c.bf16 %v3674, %v3673
        %v3738 = vpack.c.bf16 %v3676, %v3675
        %v3739 = vpack.c.bf16 %v3678, %v3677
        %v3740 = vpack.c.bf16 %v3680, %v3679
        %v3741 = vpack.c.bf16 %v3682, %v3681
        %v3742 = vpack.c.bf16 %v3684, %v3683
        %v3743 = vpack.c.bf16 %v3686, %v3685
        %v3744 = vpack.c.bf16 %v3688, %v3687
        %v3745 = vpack.c.bf16 %v3690, %v3689
        %v3746 = vpack.c.bf16 %v3692, %v3691
        %v3747 = vpack.c.bf16 %v3694, %v3693
        %v3748 = vpack.c.bf16 %v3696, %v3695
        %v3749 = vpack.c.bf16 %v3698, %v3697
        %v3750 = vpack.c.bf16 %v3700, %v3699
        %v3751 = vpack.c.bf16 %v3702, %v3701
        %v3752 = vpack.c.bf16 %v3704, %v3703
        %v3753 = vpack.c.bf16 %v3706, %v3705
        %v3754 = vpack.c.bf16 %v3708, %v3707
        %v3755 = vpack.c.bf16 %v3710, %v3709
        %v3756 = vpack.c.bf16 %v3712, %v3711
        %v3757 = vpack.c.bf16 %v3714, %v3713
        %v3758 = vpack.c.bf16 %v3716, %v3715
        %v3759 = vpack.c.bf16 %v3718, %v3717
        %v3760 = vpack.c.bf16 %v3720, %v3719
        %v3761 = vpack.c.bf16 %v3722, %v3721
        %v3762 = vpack.c.bf16 %v3724, %v3723
        %v3763 = vpack.c.bf16 %v3726, %v3725
        %v3764 = vpack.c.bf16 %v3728, %v3727
        %v3765 = vpack.c.bf16 %v3730, %v3729
        %v3766 = vpack.c.bf16 %v3732, %v3731
        %v3767 = vpack.c.bf16 %v3734, %v3733
        %v3768 = vpack.c.bf16 %v3736, %v3735
        %v3770 = vsel %vm3032, %v3737, 0
        %v3773 = vsel %vm3032, %v3738, 0
        %v3776 = vsel %vm3032, %v3739, 0
        %v3779 = vsel %vm3032, %v3740, 0
        %3781 = vmatprep.subr.bf16.mxu0 0
        %3782 = vmatpush1.bf16.msra.mxu0 %v2145
        %3783 = vmatprep.subr.bf16.mxu0 0
        %3784 = vmatpush1.bf16.msra.mxu0 %v2146
        %3785 = vmatprep.subr.bf16.mxu0 0
        %3786 = vmatpush1.bf16.msra.mxu0 %v2147
        %3787 = vmatprep.subr.bf16.mxu0 0
        %3788 = vmatpush1.bf16.msra.mxu0 %v2148
        %3789 = vmatprep.subr.bf16.mxu0 0
        %3790 = vmatpush1.bf16.msra.mxu0 0
        %3791 = vmatprep.subr.bf16.mxu0 0
        %3792 = vmatpush1.bf16.msra.mxu0 0
        %3793 = vmatprep.subr.bf16.mxu0 0
        %3794 = vmatpush1.bf16.msra.mxu0 0
        %3795 = vmatprep.subr.bf16.mxu0 0
        %3796 = vmatpush1.bf16.msra.mxu0 0
        %3797 = vmatprep.subr.bf16.mxu0 0
        %3798 = vmatpush1.bf16.msra.mxu0 0
        %3799 = vmatprep.subr.bf16.mxu0 0
        %3800 = vmatpush1.bf16.msra.mxu0 0
        %3801 = vmatprep.subr.bf16.mxu0 0
        %3802 = vmatpush1.bf16.msra.mxu0 0
        %3803 = vmatprep.subr.bf16.mxu0 0
        %3804 = vmatpush1.bf16.msra.mxu0 0
        %3805 = vmatprep.subr.bf16.mxu0 0
        %3806 = vmatpush1.bf16.msra.mxu0 0
        %3807 = vmatprep.subr.bf16.mxu0 0
        %3808 = vmatpush1.bf16.msra.mxu0 0
        %3809 = vmatprep.subr.bf16.mxu0 0
        %3810 = vmatpush1.bf16.msra.mxu0 0
        %3811 = vmatprep.subr.bf16.mxu0 0
        %3812 = vmatpush1.bf16.msra.mxu0 0
        %3813 = vmatprep.mubr.bf16.mxu0 0
        %3814 = vmatmul.mubr.bf16.gmra.mrb[0].mxu0 %v3770
        %v3815 = vpop.f32.mrb[0].mxu0
        %v3816 = vadd.f32 0.0, %v3815
        %v3817 = vpop.f32.mrb[0].mxu0
        %v3818 = vpop.f32.mrb[0].mxu0
        %v3819 = vadd.f32 0.0, %v3818
        %v3820 = vpop.f32.mrb[0].mxu0
        %3821 = vmatprep.mubr.bf16.mxu0 0
        %3822 = vmatmul.mubr.bf16.gmra.mrb[0].mxu0 %v3773
        %v3823 = vpop.f32.mrb[0].mxu0
        %v3824 = vadd.f32 0.0, %v3823
        %v3825 = vpop.f32.mrb[0].mxu0
        %v3826 = vpop.f32.mrb[0].mxu0
        %v3827 = vadd.f32 0.0, %v3826
        %v3828 = vpop.f32.mrb[0].mxu0
        %3829 = vmatprep.mubr.bf16.mxu0 0
        %3830 = vmatmul.mubr.bf16.gmra.mrb[0].mxu0 %v3776
        %v3831 = vpop.f32.mrb[0].mxu0
        %v3832 = vadd.f32 0.0, %v3831
        %v3833 = vpop.f32.mrb[0].mxu0
        %v3834 = vpop.f32.mrb[0].mxu0
        %v3835 = vadd.f32 0.0, %v3834
        %v3836 = vpop.f32.mrb[0].mxu0
        %3837 = vmatprep.mubr.bf16.mxu0 0
        %3838 = vmatmul.mubr.bf16.gmra.mrb[0].mxu0 %v3779
        %v3839 = vpop.f32.mrb[0].mxu0
        %v3840 = vadd.f32 0.0, %v3839
        %v3841 = vpop.f32.mrb[0].mxu0
        %v3842 = vpop.f32.mrb[0].mxu0
        %v3843 = vadd.f32 0.0, %v3842
        %v3844 = vpop.f32.mrb[0].mxu0
        %3845 = vdwg.mxu0
        %v3847 = vsel %vm3032, %v3741, 0
        %v3850 = vsel %vm3032, %v3742, 0
        %v3853 = vsel %vm3032, %v3743, 0
        %v3856 = vsel %vm3032, %v3744, 0
        %3858 = vmatprep.subr.bf16.mxu0 0
        %3859 = vmatpush1.bf16.msra.mxu0 %v2149
        %3860 = vmatprep.subr.bf16.mxu0 0
        %3861 = vmatpush1.bf16.msra.mxu0 %v2150
        %3862 = vmatprep.subr.bf16.mxu0 0
        %3863 = vmatpush1.bf16.msra.mxu0 %v2151
        %3864 = vmatprep.subr.bf16.mxu0 0
        %3865 = vmatpush1.bf16.msra.mxu0 %v2152
        %3866 = vmatprep.subr.bf16.mxu0 0
        %3867 = vmatpush1.bf16.msra.mxu0 0
        %3868 = vmatprep.subr.bf16.mxu0 0
        %3869 = vmatpush1.bf16.msra.mxu0 0
        %3870 = vmatprep.subr.bf16.mxu0 0
        %3871 = vmatpush1.bf16.msra.mxu0 0
        %3872 = vmatprep.subr.bf16.mxu0 0
        %3873 = vmatpush1.bf16.msra.mxu0 0
        %3874 = vmatprep.subr.bf16.mxu0 0
        %3875 = vmatpush1.bf16.msra.mxu0 0
        %3876 = vmatprep.subr.bf16.mxu0 0
        %3877 = vmatpush1.bf16.msra.mxu0 0
        %3878 = vmatprep.subr.bf16.mxu0 0
        %3879 = vmatpush1.bf16.msra.mxu0 0
        %3880 = vmatprep.subr.bf16.mxu0 0
        %3881 = vmatpush1.bf16.msra.mxu0 0
        %3882 = vmatprep.subr.bf16.mxu0 0
        %3883 = vmatpush1.bf16.msra.mxu0 0
        %3884 = vmatprep.subr.bf16.mxu0 0
        %3885 = vmatpush1.bf16.msra.mxu0 0
        %3886 = vmatprep.subr.bf16.mxu0 0
        %3887 = vmatpush1.bf16.msra.mxu0 0
        %3888 = vmatprep.subr.bf16.mxu0 0
        %3889 = vmatpush1.bf16.msra.mxu0 0
        %3890 = vmatprep.mubr.bf16.mxu0 0
        %3891 = vmatmul.mubr.bf16.gmra.mrb[0].mxu0 %v3847
        %v3892 = vpop.f32.mrb[0].mxu0
        %v3893 = vadd.f32 0.0, %v3892
        %v3894 = vpop.f32.mrb[0].mxu0
        %v3895 = vpop.f32.mrb[0].mxu0
        %v3896 = vadd.f32 0.0, %v3895
        %v3897 = vpop.f32.mrb[0].mxu0
        %3898 = vmatprep.mubr.bf16.mxu0 0
        %3899 = vmatmul.mubr.bf16.gmra.mrb[0].mxu0 %v3850
        %v3900 = vpop.f32.mrb[0].mxu0
        %v3901 = vadd.f32 0.0, %v3900
        %v3902 = vpop.f32.mrb[0].mxu0
        %v3903 = vpop.f32.mrb[0].mxu0
        %v3904 = vadd.f32 0.0, %v3903
        %v3905 = vpop.f32.mrb[0].mxu0
        %3906 = vmatprep.mubr.bf16.mxu0 0
        %3907 = vmatmul.mubr.bf16.gmra.mrb[0].mxu0 %v3853
        %v3908 = vpop.f32.mrb[0].mxu0
        %v3909 = vadd.f32 0.0, %v3908
        %v3910 = vpop.f32.mrb[0].mxu0
        %v3911 = vpop.f32.mrb[0].mxu0
        %v3912 = vadd.f32 0.0, %v3911
        %v3913 = vpop.f32.mrb[0].mxu0
        %3914 = vmatprep.mubr.bf16.mxu0 0
        %3915 = vmatmul.mubr.bf16.gmra.mrb[0].mxu0 %v3856
        %v3916 = vpop.f32.mrb[0].mxu0
        %v3917 = vadd.f32 0.0, %v3916
        %v3918 = vpop.f32.mrb[0].mxu0
        %v3919 = vpop.f32.mrb[0].mxu0
        %v3920 = vadd.f32 0.0, %v3919
        %v3921 = vpop.f32.mrb[0].mxu0
        %3922 = vdwg.mxu0
        %v3924 = vsel %vm3032, %v3745, 0
        %v3927 = vsel %vm3032, %v3746, 0
        %v3930 = vsel %vm3032, %v3747, 0
        %v3933 = vsel %vm3032, %v3748, 0
        %3935 = vmatprep.subr.bf16.mxu0 0
        %3936 = vmatpush1.bf16.msra.mxu0 %v2153
        %3937 = vmatprep.subr.bf16.mxu0 0
        %3938 = vmatpush1.bf16.msra.mxu0 %v2154
        %3939 = vmatprep.subr.bf16.mxu0 0
        %3940 = vmatpush1.bf16.msra.mxu0 %v2155
        %3941 = vmatprep.subr.bf16.mxu0 0
        %3942 = vmatpush1.bf16.msra.mxu0 %v2156
        %3943 = vmatprep.subr.bf16.mxu0 0
        %3944 = vmatpush1.bf16.msra.mxu0 0
        %3945 = vmatprep.subr.bf16.mxu0 0
        %3946 = vmatpush1.bf16.msra.mxu0 0
        %3947 = vmatprep.subr.bf16.mxu0 0
        %3948 = vmatpush1.bf16.msra.mxu0 0
        %3949 = vmatprep.subr.bf16.mxu0 0
        %3950 = vmatpush1.bf16.msra.mxu0 0
        %3951 = vmatprep.subr.bf16.mxu0 0
        %3952 = vmatpush1.bf16.msra.mxu0 0
        %3953 = vmatprep.subr.bf16.mxu0 0
        %3954 = vmatpush1.bf16.msra.mxu0 0
        %3955 = vmatprep.subr.bf16.mxu0 0
        %3956 = vmatpush1.bf16.msra.mxu0 0
        %3957 = vmatprep.subr.bf16.mxu0 0
        %3958 = vmatpush1.bf16.msra.mxu0 0
        %3959 = vmatprep.subr.bf16.mxu0 0
        %3960 = vmatpush1.bf16.msra.mxu0 0
        %3961 = vmatprep.subr.bf16.mxu0 0
        %3962 = vmatpush1.bf16.msra.mxu0 0
        %3963 = vmatprep.subr.bf16.mxu0 0
        %3964 = vmatpush1.bf16.msra.mxu0 0
        %3965 = vmatprep.subr.bf16.mxu0 0
        %3966 = vmatpush1.bf16.msra.mxu0 0
        %3967 = vmatprep.mubr.bf16.mxu0 0
        %3968 = vmatmul.mubr.bf16.gmra.mrb[0].mxu0 %v3924
        %v3969 = vpop.f32.mrb[0].mxu0
        %v3970 = vadd.f32 0.0, %v3969
        %v3971 = vpop.f32.mrb[0].mxu0
        %v3972 = vpop.f32.mrb[0].mxu0
        %v3973 = vadd.f32 0.0, %v3972
        %v3974 = vpop.f32.mrb[0].mxu0
        %3975 = vmatprep.mubr.bf16.mxu0 0
        %3976 = vmatmul.mubr.bf16.gmra.mrb[0].mxu0 %v3927
        %v3977 = vpop.f32.mrb[0].mxu0
        %v3978 = vadd.f32 0.0, %v3977
        %v3979 = vpop.f32.mrb[0].mxu0
        %v3980 = vpop.f32.mrb[0].mxu0
        %v3981 = vadd.f32 0.0, %v3980
        %v3982 = vpop.f32.mrb[0].mxu0
        %3983 = vmatprep.mubr.bf16.mxu0 0
        %3984 = vmatmul.mubr.bf16.gmra.mrb[0].mxu0 %v3930
        %v3985 = vpop.f32.mrb[0].mxu0
        %v3986 = vadd.f32 0.0, %v3985
        %v3987 = vpop.f32.mrb[0].mxu0
        %v3988 = vpop.f32.mrb[0].mxu0
        %v3989 = vadd.f32 0.0, %v3988
        %v3990 = vpop.f32.mrb[0].mxu0
        %3991 = vmatprep.mubr.bf16.mxu0 0
        %3992 = vmatmul.mubr.bf16.gmra.mrb[0].mxu0 %v3933
        %v3993 = vpop.f32.mrb[0].mxu0
        %v3994 = vadd.f32 0.0, %v3993
        %v3995 = vpop.f32.mrb[0].mxu0
        %v3996 = vpop.f32.mrb[0].mxu0
        %v3997 = vadd.f32 0.0, %v3996
        %v3998 = vpop.f32.mrb[0].mxu0
        %3999 = vdwg.mxu0
        %v4001 = vsel %vm3032, %v3749, 0
        %v4004 = vsel %vm3032, %v3750, 0
        %v4007 = vsel %vm3032, %v3751, 0
        %v4010 = vsel %vm3032, %v3752, 0
        %4012 = vmatprep.subr.bf16.mxu0 0
        %4013 = vmatpush1.bf16.msra.mxu0 %v2157
        %4014 = vmatprep.subr.bf16.mxu0 0
        %4015 = vmatpush1.bf16.msra.mxu0 %v2158
        %4016 = vmatprep.subr.bf16.mxu0 0
        %4017 = vmatpush1.bf16.msra.mxu0 %v2159
        %4018 = vmatprep.subr.bf16.mxu0 0
        %4019 = vmatpush1.bf16.msra.mxu0 %v2160
        %4020 = vmatprep.subr.bf16.mxu0 0
        %4021 = vmatpush1.bf16.msra.mxu0 0
        %4022 = vmatprep.subr.bf16.mxu0 0
        %4023 = vmatpush1.bf16.msra.mxu0 0
        %4024 = vmatprep.subr.bf16.mxu0 0
        %4025 = vmatpush1.bf16.msra.mxu0 0
        %4026 = vmatprep.subr.bf16.mxu0 0
        %4027 = vmatpush1.bf16.msra.mxu0 0
        %4028 = vmatprep.subr.bf16.mxu0 0
        %4029 = vmatpush1.bf16.msra.mxu0 0
        %4030 = vmatprep.subr.bf16.mxu0 0
        %4031 = vmatpush1.bf16.msra.mxu0 0
        %4032 = vmatprep.subr.bf16.mxu0 0
        %4033 = vmatpush1.bf16.msra.mxu0 0
        %4034 = vmatprep.subr.bf16.mxu0 0
        %4035 = vmatpush1.bf16.msra.mxu0 0
        %4036 = vmatprep.subr.bf16.mxu0 0
        %4037 = vmatpush1.bf16.msra.mxu0 0
        %4038 = vmatprep.subr.bf16.mxu0 0
        %4039 = vmatpush1.bf16.msra.mxu0 0
        %4040 = vmatprep.subr.bf16.mxu0 0
        %4041 = vmatpush1.bf16.msra.mxu0 0
        %4042 = vmatprep.subr.bf16.mxu0 0
        %4043 = vmatpush1.bf16.msra.mxu0 0
        %4044 = vmatprep.mubr.bf16.mxu0 0
        %4045 = vmatmul.mubr.bf16.gmra.mrb[0].mxu0 %v4001
        %v4046 = vpop.f32.mrb[0].mxu0
        %v4047 = vadd.f32 0.0, %v4046
        %v4048 = vpop.f32.mrb[0].mxu0
        %v4049 = vpop.f32.mrb[0].mxu0
        %v4050 = vadd.f32 0.0, %v4049
        %v4051 = vpop.f32.mrb[0].mxu0
        %4052 = vmatprep.mubr.bf16.mxu0 0
        %4053 = vmatmul.mubr.bf16.gmra.mrb[0].mxu0 %v4004
        %v4054 = vpop.f32.mrb[0].mxu0
        %v4055 = vadd.f32 0.0, %v4054
        %v4056 = vpop.f32.mrb[0].mxu0
        %v4057 = vpop.f32.mrb[0].mxu0
        %v4058 = vadd.f32 0.0, %v4057
        %v4059 = vpop.f32.mrb[0].mxu0
        %4060 = vmatprep.mubr.bf16.mxu0 0
        %4061 = vmatmul.mubr.bf16.gmra.mrb[0].mxu0 %v4007
        %v4062 = vpop.f32.mrb[0].mxu0
        %v4063 = vadd.f32 0.0, %v4062
        %v4064 = vpop.f32.mrb[0].mxu0
        %v4065 = vpop.f32.mrb[0].mxu0
        %v4066 = vadd.f32 0.0, %v4065
        %v4067 = vpop.f32.mrb[0].mxu0
        %4068 = vmatprep.mubr.bf16.mxu0 0
        %4069 = vmatmul.mubr.bf16.gmra.mrb[0].mxu0 %v4010
        %v4070 = vpop.f32.mrb[0].mxu0
        %v4071 = vadd.f32 0.0, %v4070
        %v4072 = vpop.f32.mrb[0].mxu0
        %v4073 = vpop.f32.mrb[0].mxu0
        %v4074 = vadd.f32 0.0, %v4073
        %v4075 = vpop.f32.mrb[0].mxu0
        %4076 = vdwg.mxu0
        %v4078 = vsel %vm3032, %v3753, 0
        %v4081 = vsel %vm3032, %v3754, 0
        %v4084 = vsel %vm3032, %v3755, 0
        %v4087 = vsel %vm3032, %v3756, 0
        %4089 = vmatprep.subr.bf16.mxu0 0
        %4090 = vmatpush1.bf16.msra.mxu0 %v2161
        %4091 = vmatprep.subr.bf16.mxu0 0
        %4092 = vmatpush1.bf16.msra.mxu0 %v2162
        %4093 = vmatprep.subr.bf16.mxu0 0
        %4094 = vmatpush1.bf16.msra.mxu0 %v2163
        %4095 = vmatprep.subr.bf16.mxu0 0
        %4096 = vmatpush1.bf16.msra.mxu0 %v2164
        %4097 = vmatprep.subr.bf16.mxu0 0
        %4098 = vmatpush1.bf16.msra.mxu0 0
        %4099 = vmatprep.subr.bf16.mxu0 0
        %4100 = vmatpush1.bf16.msra.mxu0 0
        %4101 = vmatprep.subr.bf16.mxu0 0
        %4102 = vmatpush1.bf16.msra.mxu0 0
        %4103 = vmatprep.subr.bf16.mxu0 0
        %4104 = vmatpush1.bf16.msra.mxu0 0
        %4105 = vmatprep.subr.bf16.mxu0 0
        %4106 = vmatpush1.bf16.msra.mxu0 0
        %4107 = vmatprep.subr.bf16.mxu0 0
        %4108 = vmatpush1.bf16.msra.mxu0 0
        %4109 = vmatprep.subr.bf16.mxu0 0
        %4110 = vmatpush1.bf16.msra.mxu0 0
        %4111 = vmatprep.subr.bf16.mxu0 0
        %4112 = vmatpush1.bf16.msra.mxu0 0
        %4113 = vmatprep.subr.bf16.mxu0 0
        %4114 = vmatpush1.bf16.msra.mxu0 0
        %4115 = vmatprep.subr.bf16.mxu0 0
        %4116 = vmatpush1.bf16.msra.mxu0 0
        %4117 = vmatprep.subr.bf16.mxu0 0
        %4118 = vmatpush1.bf16.msra.mxu0 0
        %4119 = vmatprep.subr.bf16.mxu0 0
        %4120 = vmatpush1.bf16.msra.mxu0 0
        %4121 = vmatprep.mubr.bf16.mxu0 0
        %4122 = vmatmul.mubr.bf16.gmra.mrb[0].mxu0 %v4078
        %v4123 = vpop.f32.mrb[0].mxu0
        %v4124 = vadd.f32 0.0, %v4123
        %v4125 = vpop.f32.mrb[0].mxu0
        %v4126 = vpop.f32.mrb[0].mxu0
        %v4127 = vadd.f32 0.0, %v4126
        %v4128 = vpop.f32.mrb[0].mxu0
        %4129 = vmatprep.mubr.bf16.mxu0 0
        %4130 = vmatmul.mubr.bf16.gmra.mrb[0].mxu0 %v4081
        %v4131 = vpop.f32.mrb[0].mxu0
        %v4132 = vadd.f32 0.0, %v4131
        %v4133 = vpop.f32.mrb[0].mxu0
        %v4134 = vpop.f32.mrb[0].mxu0
        %v4135 = vadd.f32 0.0, %v4134
        %v4136 = vpop.f32.mrb[0].mxu0
        %4137 = vmatprep.mubr.bf16.mxu0 0
        %4138 = vmatmul.mubr.bf16.gmra.mrb[0].mxu0 %v4084
        %v4139 = vpop.f32.mrb[0].mxu0
        %v4140 = vadd.f32 0.0, %v4139
        %v4141 = vpop.f32.mrb[0].mxu0
        %v4142 = vpop.f32.mrb[0].mxu0
        %v4143 = vadd.f32 0.0, %v4142
        %v4144 = vpop.f32.mrb[0].mxu0
        %4145 = vmatprep.mubr.bf16.mxu0 0
        %4146 = vmatmul.mubr.bf16.gmra.mrb[0].mxu0 %v4087
        %v4147 = vpop.f32.mrb[0].mxu0
        %v4148 = vadd.f32 0.0, %v4147
        %v4149 = vpop.f32.mrb[0].mxu0
        %v4150 = vpop.f32.mrb[0].mxu0
        %v4151 = vadd.f32 0.0, %v4150
        %v4152 = vpop.f32.mrb[0].mxu0
        %4153 = vdwg.mxu0
        %v4155 = vsel %vm3032, %v3757, 0
        %v4158 = vsel %vm3032, %v3758, 0
        %v4161 = vsel %vm3032, %v3759, 0
        %v4164 = vsel %vm3032, %v3760, 0
        %4166 = vmatprep.subr.bf16.mxu0 0
        %4167 = vmatpush1.bf16.msra.mxu0 %v2165
        %4168 = vmatprep.subr.bf16.mxu0 0
        %4169 = vmatpush1.bf16.msra.mxu0 %v2166
        %4170 = vmatprep.subr.bf16.mxu0 0
        %4171 = vmatpush1.bf16.msra.mxu0 %v2167
        %4172 = vmatprep.subr.bf16.mxu0 0
        %4173 = vmatpush1.bf16.msra.mxu0 %v2168
        %4174 = vmatprep.subr.bf16.mxu0 0
        %4175 = vmatpush1.bf16.msra.mxu0 0
        %4176 = vmatprep.subr.bf16.mxu0 0
        %4177 = vmatpush1.bf16.msra.mxu0 0
        %4178 = vmatprep.subr.bf16.mxu0 0
        %4179 = vmatpush1.bf16.msra.mxu0 0
        %4180 = vmatprep.subr.bf16.mxu0 0
        %4181 = vmatpush1.bf16.msra.mxu0 0
        %4182 = vmatprep.subr.bf16.mxu0 0
        %4183 = vmatpush1.bf16.msra.mxu0 0
        %4184 = vmatprep.subr.bf16.mxu0 0
        %4185 = vmatpush1.bf16.msra.mxu0 0
        %4186 = vmatprep.subr.bf16.mxu0 0
        %4187 = vmatpush1.bf16.msra.mxu0 0
        %4188 = vmatprep.subr.bf16.mxu0 0
        %4189 = vmatpush1.bf16.msra.mxu0 0
        %4190 = vmatprep.subr.bf16.mxu0 0
        %4191 = vmatpush1.bf16.msra.mxu0 0
        %4192 = vmatprep.subr.bf16.mxu0 0
        %4193 = vmatpush1.bf16.msra.mxu0 0
        %4194 = vmatprep.subr.bf16.mxu0 0
        %4195 = vmatpush1.bf16.msra.mxu0 0
        %4196 = vmatprep.subr.bf16.mxu0 0
        %4197 = vmatpush1.bf16.msra.mxu0 0
        %4198 = vmatprep.mubr.bf16.mxu0 0
        %4199 = vmatmul.mubr.bf16.gmra.mrb[0].mxu0 %v4155
        %v4200 = vpop.f32.mrb[0].mxu0
        %v4201 = vadd.f32 0.0, %v4200
        %v4202 = vpop.f32.mrb[0].mxu0
        %v4203 = vpop.f32.mrb[0].mxu0
        %v4204 = vadd.f32 0.0, %v4203
        %v4205 = vpop.f32.mrb[0].mxu0
        %4206 = vmatprep.mubr.bf16.mxu0 0
        %4207 = vmatmul.mubr.bf16.gmra.mrb[0].mxu0 %v4158
        %v4208 = vpop.f32.mrb[0].mxu0
        %v4209 = vadd.f32 0.0, %v4208
        %v4210 = vpop.f32.mrb[0].mxu0
        %v4211 = vpop.f32.mrb[0].mxu0
        %v4212 = vadd.f32 0.0, %v4211
        %v4213 = vpop.f32.mrb[0].mxu0
        %4214 = vmatprep.mubr.bf16.mxu0 0
        %4215 = vmatmul.mubr.bf16.gmra.mrb[0].mxu0 %v4161
        %v4216 = vpop.f32.mrb[0].mxu0
        %v4217 = vadd.f32 0.0, %v4216
        %v4218 = vpop.f32.mrb[0].mxu0
        %v4219 = vpop.f32.mrb[0].mxu0
        %v4220 = vadd.f32 0.0, %v4219
        %v4221 = vpop.f32.mrb[0].mxu0
        %4222 = vmatprep.mubr.bf16.mxu0 0
        %4223 = vmatmul.mubr.bf16.gmra.mrb[0].mxu0 %v4164
        %v4224 = vpop.f32.mrb[0].mxu0
        %v4225 = vadd.f32 0.0, %v4224
        %v4226 = vpop.f32.mrb[0].mxu0
        %v4227 = vpop.f32.mrb[0].mxu0
        %v4228 = vadd.f32 0.0, %v4227
        %v4229 = vpop.f32.mrb[0].mxu0
        %4230 = vdwg.mxu0
        %v4232 = vsel %vm3032, %v3761, 0
        %v4235 = vsel %vm3032, %v3762, 0
        %v4238 = vsel %vm3032, %v3763, 0
        %v4241 = vsel %vm3032, %v3764, 0
        %4243 = vmatprep.subr.bf16.mxu0 0
        %4244 = vmatpush1.bf16.msra.mxu0 %v2169
        %4245 = vmatprep.subr.bf16.mxu0 0
        %4246 = vmatpush1.bf16.msra.mxu0 %v2170
        %4247 = vmatprep.subr.bf16.mxu0 0
        %4248 = vmatpush1.bf16.msra.mxu0 %v2171
        %4249 = vmatprep.subr.bf16.mxu0 0
        %4250 = vmatpush1.bf16.msra.mxu0 %v2172
        %4251 = vmatprep.subr.bf16.mxu0 0
        %4252 = vmatpush1.bf16.msra.mxu0 0
        %4253 = vmatprep.subr.bf16.mxu0 0
        %4254 = vmatpush1.bf16.msra.mxu0 0
        %4255 = vmatprep.subr.bf16.mxu0 0
        %4256 = vmatpush1.bf16.msra.mxu0 0
        %4257 = vmatprep.subr.bf16.mxu0 0
        %4258 = vmatpush1.bf16.msra.mxu0 0
        %4259 = vmatprep.subr.bf16.mxu0 0
        %4260 = vmatpush1.bf16.msra.mxu0 0
        %4261 = vmatprep.subr.bf16.mxu0 0
        %4262 = vmatpush1.bf16.msra.mxu0 0
        %4263 = vmatprep.subr.bf16.mxu0 0
        %4264 = vmatpush1.bf16.msra.mxu0 0
        %4265 = vmatprep.subr.bf16.mxu0 0
        %4266 = vmatpush1.bf16.msra.mxu0 0
        %4267 = vmatprep.subr.bf16.mxu0 0
        %4268 = vmatpush1.bf16.msra.mxu0 0
        %4269 = vmatprep.subr.bf16.mxu0 0
        %4270 = vmatpush1.bf16.msra.mxu0 0
        %4271 = vmatprep.subr.bf16.mxu0 0
        %4272 = vmatpush1.bf16.msra.mxu0 0
        %4273 = vmatprep.subr.bf16.mxu0 0
        %4274 = vmatpush1.bf16.msra.mxu0 0
        %4275 = vmatprep.mubr.bf16.mxu0 0
        %4276 = vmatmul.mubr.bf16.gmra.mrb[0].mxu0 %v4232
        %v4277 = vpop.f32.mrb[0].mxu0
        %v4278 = vadd.f32 0.0, %v4277
        %v4279 = vpop.f32.mrb[0].mxu0
        %v4280 = vpop.f32.mrb[0].mxu0
        %v4281 = vadd.f32 0.0, %v4280
        %v4282 = vpop.f32.mrb[0].mxu0
        %4283 = vmatprep.mubr.bf16.mxu0 0
        %4284 = vmatmul.mubr.bf16.gmra.mrb[0].mxu0 %v4235
        %v4285 = vpop.f32.mrb[0].mxu0
        %v4286 = vadd.f32 0.0, %v4285
        %v4287 = vpop.f32.mrb[0].mxu0
        %v4288 = vpop.f32.mrb[0].mxu0
        %v4289 = vadd.f32 0.0, %v4288
        %v4290 = vpop.f32.mrb[0].mxu0
        %4291 = vmatprep.mubr.bf16.mxu0 0
        %4292 = vmatmul.mubr.bf16.gmra.mrb[0].mxu0 %v4238
        %v4293 = vpop.f32.mrb[0].mxu0
        %v4294 = vadd.f32 0.0, %v4293
        %v4295 = vpop.f32.mrb[0].mxu0
        %v4296 = vpop.f32.mrb[0].mxu0
        %v4297 = vadd.f32 0.0, %v4296
        %v4298 = vpop.f32.mrb[0].mxu0
        %4299 = vmatprep.mubr.bf16.mxu0 0
        %4300 = vmatmul.mubr.bf16.gmra.mrb[0].mxu0 %v4241
        %v4301 = vpop.f32.mrb[0].mxu0
        %v4302 = vadd.f32 0.0, %v4301
        %v4303 = vpop.f32.mrb[0].mxu0
        %v4304 = vpop.f32.mrb[0].mxu0
        %v4305 = vadd.f32 0.0, %v4304
        %v4306 = vpop.f32.mrb[0].mxu0
        %4307 = vdwg.mxu0
        %v4309 = vsel %vm3032, %v3765, 0
        %v4312 = vsel %vm3032, %v3766, 0
        %v4315 = vsel %vm3032, %v3767, 0
        %v4318 = vsel %vm3032, %v3768, 0
        %4320 = vmatprep.subr.bf16.mxu0 0
        %4321 = vmatpush1.bf16.msra.mxu0 %v2173
        %4322 = vmatprep.subr.bf16.mxu0 0
        %4323 = vmatpush1.bf16.msra.mxu0 %v2174
        %4324 = vmatprep.subr.bf16.mxu0 0
        %4325 = vmatpush1.bf16.msra.mxu0 %v2175
        %4326 = vmatprep.subr.bf16.mxu0 0
        %4327 = vmatpush1.bf16.msra.mxu0 %v2176
        %4328 = vmatprep.subr.bf16.mxu0 0
        %4329 = vmatpush1.bf16.msra.mxu0 0
        %4330 = vmatprep.subr.bf16.mxu0 0
        %4331 = vmatpush1.bf16.msra.mxu0 0
        %4332 = vmatprep.subr.bf16.mxu0 0
        %4333 = vmatpush1.bf16.msra.mxu0 0
        %4334 = vmatprep.subr.bf16.mxu0 0
        %4335 = vmatpush1.bf16.msra.mxu0 0
        %4336 = vmatprep.subr.bf16.mxu0 0
        %4337 = vmatpush1.bf16.msra.mxu0 0
        %4338 = vmatprep.subr.bf16.mxu0 0
        %4339 = vmatpush1.bf16.msra.mxu0 0
        %4340 = vmatprep.subr.bf16.mxu0 0
        %4341 = vmatpush1.bf16.msra.mxu0 0
        %4342 = vmatprep.subr.bf16.mxu0 0
        %4343 = vmatpush1.bf16.msra.mxu0 0
        %4344 = vmatprep.subr.bf16.mxu0 0
        %4345 = vmatpush1.bf16.msra.mxu0 0
        %4346 = vmatprep.subr.bf16.mxu0 0
        %4347 = vmatpush1.bf16.msra.mxu0 0
        %4348 = vmatprep.subr.bf16.mxu0 0
        %4349 = vmatpush1.bf16.msra.mxu0 0
        %4350 = vmatprep.subr.bf16.mxu0 0
        %4351 = vmatpush1.bf16.msra.mxu0 0
        %4352 = vmatprep.mubr.bf16.mxu0 0
        %4353 = vmatmul.mubr.bf16.gmra.mrb[0].mxu0 %v4309
        %v4354 = vpop.f32.mrb[0].mxu0
        %v4355 = vadd.f32 0.0, %v4354
        %v4356 = vpop.f32.mrb[0].mxu0
        %v4357 = vpop.f32.mrb[0].mxu0
        %v4358 = vadd.f32 0.0, %v4357
        %v4359 = vpop.f32.mrb[0].mxu0
        %4360 = vmatprep.mubr.bf16.mxu0 0
        %4361 = vmatmul.mubr.bf16.gmra.mrb[0].mxu0 %v4312
        %v4362 = vpop.f32.mrb[0].mxu0
        %v4363 = vadd.f32 0.0, %v4362
        %v4364 = vpop.f32.mrb[0].mxu0
        %v4365 = vpop.f32.mrb[0].mxu0
        %v4366 = vadd.f32 0.0, %v4365
        %v4367 = vpop.f32.mrb[0].mxu0
        %4368 = vmatprep.mubr.bf16.mxu0 0
        %4369 = vmatmul.mubr.bf16.gmra.mrb[0].mxu0 %v4315
        %v4370 = vpop.f32.mrb[0].mxu0
        %v4371 = vadd.f32 0.0, %v4370
        %v4372 = vpop.f32.mrb[0].mxu0
        %v4373 = vpop.f32.mrb[0].mxu0
        %v4374 = vadd.f32 0.0, %v4373
        %v4375 = vpop.f32.mrb[0].mxu0
        %4376 = vmatprep.mubr.bf16.mxu0 0
        %4377 = vmatmul.mubr.bf16.gmra.mrb[0].mxu0 %v4318
        %v4378 = vpop.f32.mrb[0].mxu0
        %v4379 = vadd.f32 0.0, %v4378
        %v4380 = vpop.f32.mrb[0].mxu0
        %v4381 = vpop.f32.mrb[0].mxu0
        %v4382 = vadd.f32 0.0, %v4381
        %v4383 = vpop.f32.mrb[0].mxu0
        %4384 = vdwg.mxu0
        %4401 = vrot.lane.b32.xlu0 %v3970, 32
        %v4402 = vpop.permute.xlu0 %4401
        %4403 = vrot.lane.b32.xlu0 %v3973, 32
        %v4404 = vpop.permute.xlu0 %4403
        %4405 = vrot.lane.b32.xlu0 %v3978, 32
        %v4406 = vpop.permute.xlu0 %4405
        %4407 = vrot.lane.b32.xlu0 %v3981, 32
        %v4408 = vpop.permute.xlu0 %4407
        %4409 = vrot.lane.b32.xlu0 %v3986, 32
        %v4410 = vpop.permute.xlu0 %4409
        %4411 = vrot.lane.b32.xlu0 %v3989, 32
        %v4412 = vpop.permute.xlu0 %4411
        %4413 = vrot.lane.b32.xlu0 %v3994, 32
        %v4414 = vpop.permute.xlu0 %4413
        %4415 = vrot.lane.b32.xlu0 %v3997, 32
        %v4416 = vpop.permute.xlu0 %4415
        %4417 = vrot.lane.b32.xlu0 %v4047, 32
        %v4418 = vpop.permute.xlu0 %4417
        %4419 = vrot.lane.b32.xlu0 %v4050, 32
        %v4420 = vpop.permute.xlu0 %4419
        %4421 = vrot.lane.b32.xlu0 %v4055, 32
        %v4422 = vpop.permute.xlu0 %4421
        %4423 = vrot.lane.b32.xlu0 %v4058, 32
        %v4424 = vpop.permute.xlu0 %4423
        %4425 = vrot.lane.b32.xlu0 %v4063, 32
        %v4426 = vpop.permute.xlu0 %4425
        %4427 = vrot.lane.b32.xlu0 %v4066, 32
        %v4428 = vpop.permute.xlu0 %4427
        %4429 = vrot.lane.b32.xlu0 %v4071, 32
        %v4430 = vpop.permute.xlu0 %4429
        %4431 = vrot.lane.b32.xlu0 %v4074, 32
        %v4432 = vpop.permute.xlu0 %4431
        %4465 = vrot.lane.b32.xlu0 %v4124, 64
        %v4466 = vpop.permute.xlu0 %4465
        %4467 = vrot.lane.b32.xlu0 %v4127, 64
        %v4468 = vpop.permute.xlu0 %4467
        %4469 = vrot.lane.b32.xlu0 %v4132, 64
        %v4470 = vpop.permute.xlu0 %4469
        %4471 = vrot.lane.b32.xlu0 %v4135, 64
        %v4472 = vpop.permute.xlu0 %4471
        %4473 = vrot.lane.b32.xlu0 %v4140, 64
        %v4474 = vpop.permute.xlu0 %4473
        %4475 = vrot.lane.b32.xlu0 %v4143, 64
        %v4476 = vpop.permute.xlu0 %4475
        %4477 = vrot.lane.b32.xlu0 %v4148, 64
        %v4478 = vpop.permute.xlu0 %4477
        %4479 = vrot.lane.b32.xlu0 %v4151, 64
        %v4480 = vpop.permute.xlu0 %4479
        %4481 = vrot.lane.b32.xlu0 %v4201, 64
        %v4482 = vpop.permute.xlu0 %4481
        %4483 = vrot.lane.b32.xlu0 %v4204, 64
        %v4484 = vpop.permute.xlu0 %4483
        %4485 = vrot.lane.b32.xlu0 %v4209, 64
        %v4486 = vpop.permute.xlu0 %4485
        %4487 = vrot.lane.b32.xlu0 %v4212, 64
        %v4488 = vpop.permute.xlu0 %4487
        %4489 = vrot.lane.b32.xlu0 %v4217, 64
        %v4490 = vpop.permute.xlu0 %4489
        %4491 = vrot.lane.b32.xlu0 %v4220, 64
        %v4492 = vpop.permute.xlu0 %4491
        %4493 = vrot.lane.b32.xlu0 %v4225, 64
        %v4494 = vpop.permute.xlu0 %4493
        %4495 = vrot.lane.b32.xlu0 %v4228, 64
        %v4496 = vpop.permute.xlu0 %4495
        %4529 = vrot.lane.b32.xlu0 %v4278, 96
        %v4530 = vpop.permute.xlu0 %4529
        %4531 = vrot.lane.b32.xlu0 %v4281, 96
        %v4532 = vpop.permute.xlu0 %4531
        %4533 = vrot.lane.b32.xlu0 %v4286, 96
        %v4534 = vpop.permute.xlu0 %4533
        %4535 = vrot.lane.b32.xlu0 %v4289, 96
        %v4536 = vpop.permute.xlu0 %4535
        %4537 = vrot.lane.b32.xlu0 %v4294, 96
        %v4538 = vpop.permute.xlu0 %4537
        %4539 = vrot.lane.b32.xlu0 %v4297, 96
        %v4540 = vpop.permute.xlu0 %4539
        %4541 = vrot.lane.b32.xlu0 %v4302, 96
        %v4542 = vpop.permute.xlu0 %4541
        %4543 = vrot.lane.b32.xlu0 %v4305, 96
        %v4544 = vpop.permute.xlu0 %4543
        %4545 = vrot.lane.b32.xlu0 %v4355, 96
        %v4546 = vpop.permute.xlu0 %4545
        %4547 = vrot.lane.b32.xlu0 %v4358, 96
        %v4548 = vpop.permute.xlu0 %4547
        %4549 = vrot.lane.b32.xlu0 %v4363, 96
        %v4550 = vpop.permute.xlu0 %4549
        %4551 = vrot.lane.b32.xlu0 %v4366, 96
        %v4552 = vpop.permute.xlu0 %4551
        %4553 = vrot.lane.b32.xlu0 %v4371, 96
        %v4554 = vpop.permute.xlu0 %4553
        %4555 = vrot.lane.b32.xlu0 %v4374, 96
        %v4556 = vpop.permute.xlu0 %4555
        %4557 = vrot.lane.b32.xlu0 %v4379, 96
        %v4558 = vpop.permute.xlu0 %4557
        %4559 = vrot.lane.b32.xlu0 %v4382, 96
        %v4560 = vpop.permute.xlu0 %4559
        %v4577 = vsel %vm2177, %v3816, %v4402
        %v4578 = vsel %vm2177, %v3819, %v4404
        %v4579 = vsel %vm2177, %v3824, %v4406
        %v4580 = vsel %vm2177, %v3827, %v4408
        %v4581 = vsel %vm2177, %v3832, %v4410
        %v4582 = vsel %vm2177, %v3835, %v4412
        %v4583 = vsel %vm2177, %v3840, %v4414
        %v4584 = vsel %vm2177, %v3843, %v4416
        %v4585 = vsel %vm2177, %v3893, %v4418
        %v4586 = vsel %vm2177, %v3896, %v4420
        %v4587 = vsel %vm2177, %v3901, %v4422
        %v4588 = vsel %vm2177, %v3904, %v4424
        %v4589 = vsel %vm2177, %v3909, %v4426
        %v4590 = vsel %vm2177, %v3912, %v4428
        %v4591 = vsel %vm2177, %v3917, %v4430
        %v4592 = vsel %vm2177, %v3920, %v4432
        %v4593 = vsel %vm3032, %v4577, %v4466
        %v4594 = vsel %vm3032, %v4578, %v4468
        %v4595 = vsel %vm3032, %v4579, %v4470
        %v4596 = vsel %vm3032, %v4580, %v4472
        %v4597 = vsel %vm3032, %v4581, %v4474
        %v4598 = vsel %vm3032, %v4582, %v4476
        %v4599 = vsel %vm3032, %v4583, %v4478
        %v4600 = vsel %vm3032, %v4584, %v4480
        %v4601 = vsel %vm3032, %v4585, %v4482
        %v4602 = vsel %vm3032, %v4586, %v4484
        %v4603 = vsel %vm3032, %v4587, %v4486
        %v4604 = vsel %vm3032, %v4588, %v4488
        %v4605 = vsel %vm3032, %v4589, %v4490
        %v4606 = vsel %vm3032, %v4590, %v4492
        %v4607 = vsel %vm3032, %v4591, %v4494
        %v4608 = vsel %vm3032, %v4592, %v4496
        %vm4609 = vcmask 785408
        %v4610 = vsel %vm4609, %v4593, %v4530
        %v4611 = vsel %vm4609, %v4594, %v4532
        %v4612 = vsel %vm4609, %v4595, %v4534
        %v4613 = vsel %vm4609, %v4596, %v4536
        %v4614 = vsel %vm4609, %v4597, %v4538
        %v4615 = vsel %vm4609, %v4598, %v4540
        %v4616 = vsel %vm4609, %v4599, %v4542
        %v4617 = vsel %vm4609, %v4600, %v4544
        %v4618 = vsel %vm4609, %v4601, %v4546
        %v4619 = vsel %vm4609, %v4602, %v4548
        %v4620 = vsel %vm4609, %v4603, %v4550
        %v4621 = vsel %vm4609, %v4604, %v4552
        %v4622 = vsel %vm4609, %v4605, %v4554
        %v4623 = vsel %vm4609, %v4606, %v4556
        %v4624 = vsel %vm4609, %v4607, %v4558
        %v4625 = vsel %vm4609, %v4608, %v4560
        %v4626 = vpack.c.bf16 %v4611, %v4610
        %v4627 = vpack.c.bf16 %v4613, %v4612
        %v4628 = vpack.c.bf16 %v4615, %v4614
        %v4629 = vpack.c.bf16 %v4617, %v4616
        %v4630 = vpack.c.bf16 %v4619, %v4618
        %v4631 = vpack.c.bf16 %v4621, %v4620
        %v4632 = vpack.c.bf16 %v4623, %v4622
        %v4633 = vpack.c.bf16 %v4625, %v4624
        %v4634 = vld [vmem:[%s754] sm:$0xf]
        %v4635 = vld [vmem:[%s754 + $0x4] sm:$0xf]
        %v4636 = vld [vmem:[%s754 + $0x8] sm:$0xf]
        %v4637 = vld [vmem:[%s754 + $0xc] sm:$0xf]
        %v4638 = vld [vmem:[%s754 + $0x10] sm:$0xf]
        %v4639 = vld [vmem:[%s754 + $0x14] sm:$0xf]
        %v4640 = vld [vmem:[%s754 + $0x18] sm:$0xf]
        %v4641 = vld [vmem:[%s754 + $0x1c] sm:$0xf]
        %v4642 = vld [vmem:[%s754 + $0x20] sm:$0xf]
        %v4643 = vld [vmem:[%s754 + $0x24] sm:$0xf]
        %v4644 = vld [vmem:[%s754 + $0x28] sm:$0xf]
        %v4645 = vld [vmem:[%s754 + $0x2c] sm:$0xf]
        %v4646 = vld [vmem:[%s754 + $0x30] sm:$0xf]
        %v4647 = vld [vmem:[%s754 + $0x34] sm:$0xf]
        %v4648 = vld [vmem:[%s754 + $0x38] sm:$0xf]
        %v4649 = vld [vmem:[%s754 + $0x3c] sm:$0xf]
        %v4650 = vld [vmem:[%s885] sm:$0x1]
        %v4652 = vlaneseq
        %v4653 = vshrl.u32 %v4652, 7
        %v4654 = vsub.s32 0, %v4653
        %v4655 = vrot.slane %v4650, %v4654
        %v4673 = vunpack.c.l.b16 %v4634
        %v4674 = vunpack.c.l.b16 %v4635
        %v4675 = vunpack.c.l.b16 %v4636
        %v4676 = vunpack.c.l.b16 %v4637
        %v4677 = vunpack.c.l.b16 %v4638
        %v4678 = vunpack.c.l.b16 %v4639
        %v4679 = vunpack.c.l.b16 %v4640
        %v4680 = vunpack.c.l.b16 %v4641
        %v4681 = vunpack.c.l.b16 %v4642
        %v4682 = vunpack.c.l.b16 %v4643
        %v4683 = vunpack.c.l.b16 %v4644
        %v4684 = vunpack.c.l.b16 %v4645
        %v4685 = vunpack.c.l.b16 %v4646
        %v4686 = vunpack.c.l.b16 %v4647
        %v4687 = vunpack.c.l.b16 %v4648
        %v4688 = vunpack.c.l.b16 %v4649
        %v4689 = vpack.c.b16 %v4674, %v4673
        %v4690 = vpack.c.b16 %v4676, %v4675
        %v4691 = vpack.c.b16 %v4678, %v4677
        %v4692 = vpack.c.b16 %v4680, %v4679
        %v4693 = vpack.c.b16 %v4682, %v4681
        %v4694 = vpack.c.b16 %v4684, %v4683
        %v4695 = vpack.c.b16 %v4686, %v4685
        %v4696 = vpack.c.b16 %v4688, %v4687
        %4705 = vmatprep.subr.bf16.mxu0 0
        %4706 = vmatpush1.bf16.msra.mxu0 %v4689
        %4707 = vmatprep.subr.bf16.mxu0 0
        %4708 = vmatpush1.bf16.msra.mxu0 %v4690
        %4709 = vmatprep.subr.bf16.mxu0 0
        %4710 = vmatpush1.bf16.msra.mxu0 %v4691
        %4711 = vmatprep.subr.bf16.mxu0 0
        %4712 = vmatpush1.bf16.msra.mxu0 %v4692
        %4713 = vmatprep.subr.bf16.mxu0 0
        %4714 = vmatpush1.bf16.msra.mxu0 %v4693
        %4715 = vmatprep.subr.bf16.mxu0 0
        %4716 = vmatpush1.bf16.msra.mxu0 %v4694
        %4717 = vmatprep.subr.bf16.mxu0 0
        %4718 = vmatpush1.bf16.msra.mxu0 %v4695
        %4719 = vmatprep.subr.bf16.mxu0 0
        %4720 = vmatpush1.bf16.msra.mxu0 %v4696
        %4721 = vmatprep.subr.bf16.mxu0 0
        %4722 = vmatpush1.bf16.msra.mxu0 0
        %4723 = vmatprep.subr.bf16.mxu0 0
        %4724 = vmatpush1.bf16.msra.mxu0 0
        %4725 = vmatprep.subr.bf16.mxu0 0
        %4726 = vmatpush1.bf16.msra.mxu0 0
        %4727 = vmatprep.subr.bf16.mxu0 0
        %4728 = vmatpush1.bf16.msra.mxu0 0
        %4729 = vmatprep.subr.bf16.mxu0 0
        %4730 = vmatpush1.bf16.msra.mxu0 0
        %4731 = vmatprep.subr.bf16.mxu0 0
        %4732 = vmatpush1.bf16.msra.mxu0 0
        %4733 = vmatprep.subr.bf16.mxu0 0
        %4734 = vmatpush1.bf16.msra.mxu0 0
        %4735 = vmatprep.subr.bf16.mxu0 0
        %4736 = vmatpush1.bf16.msra.mxu0 0
        %4737 = vmatprep.mubr.bf16.mxu0 0
        %4738 = vmatmul.mubr.bf16.gmra.mrb[0].mxu0 %v4626
        %v4739 = vpop.f32.mrb[0].mxu0
        %v4740 = vadd.f32 %v4655, %v4739
        %v4741 = vpop.f32.mrb[0].mxu0
        %v4742 = vpop.f32.mrb[0].mxu0
        %v4743 = vadd.f32 %v4655, %v4742
        %v4744 = vpop.f32.mrb[0].mxu0
        %4745 = vmatprep.mubr.bf16.mxu0 0
        %4746 = vmatmul.mubr.bf16.gmra.mrb[0].mxu0 %v4627
        %v4747 = vpop.f32.mrb[0].mxu0
        %v4748 = vadd.f32 %v4655, %v4747
        %v4749 = vpop.f32.mrb[0].mxu0
        %v4750 = vpop.f32.mrb[0].mxu0
        %v4751 = vadd.f32 %v4655, %v4750
        %v4752 = vpop.f32.mrb[0].mxu0
        %4753 = vmatprep.mubr.bf16.mxu0 0
        %4754 = vmatmul.mubr.bf16.gmra.mrb[0].mxu0 %v4628
        %v4755 = vpop.f32.mrb[0].mxu0
        %v4756 = vadd.f32 %v4655, %v4755
        %v4757 = vpop.f32.mrb[0].mxu0
        %v4758 = vpop.f32.mrb[0].mxu0
        %v4759 = vadd.f32 %v4655, %v4758
        %v4760 = vpop.f32.mrb[0].mxu0
        %4761 = vmatprep.mubr.bf16.mxu0 0
        %4762 = vmatmul.mubr.bf16.gmra.mrb[0].mxu0 %v4629
        %v4763 = vpop.f32.mrb[0].mxu0
        %v4764 = vadd.f32 %v4655, %v4763
        %v4765 = vpop.f32.mrb[0].mxu0
        %v4766 = vpop.f32.mrb[0].mxu0
        %v4767 = vadd.f32 %v4655, %v4766
        %v4768 = vpop.f32.mrb[0].mxu0
        %4769 = vmatprep.mubr.bf16.mxu0 0
        %4770 = vmatmul.mubr.bf16.gmra.mrb[0].mxu0 %v4630
        %v4771 = vpop.f32.mrb[0].mxu0
        %v4772 = vadd.f32 %v4655, %v4771
        %v4773 = vpop.f32.mrb[0].mxu0
        %v4774 = vpop.f32.mrb[0].mxu0
        %v4775 = vadd.f32 %v4655, %v4774
        %v4776 = vpop.f32.mrb[0].mxu0
        %4777 = vmatprep.mubr.bf16.mxu0 0
        %4778 = vmatmul.mubr.bf16.gmra.mrb[0].mxu0 %v4631
        %v4779 = vpop.f32.mrb[0].mxu0
        %v4780 = vadd.f32 %v4655, %v4779
        %v4781 = vpop.f32.mrb[0].mxu0
        %v4782 = vpop.f32.mrb[0].mxu0
        %v4783 = vadd.f32 %v4655, %v4782
        %v4784 = vpop.f32.mrb[0].mxu0
        %4785 = vmatprep.mubr.bf16.mxu0 0
        %4786 = vmatmul.mubr.bf16.gmra.mrb[0].mxu0 %v4632
        %v4787 = vpop.f32.mrb[0].mxu0
        %v4788 = vadd.f32 %v4655, %v4787
        %v4789 = vpop.f32.mrb[0].mxu0
        %v4790 = vpop.f32.mrb[0].mxu0
        %v4791 = vadd.f32 %v4655, %v4790
        %v4792 = vpop.f32.mrb[0].mxu0
        %4793 = vmatprep.mubr.bf16.mxu0 0
        %4794 = vmatmul.mubr.bf16.gmra.mrb[0].mxu0 %v4633
        %v4795 = vpop.f32.mrb[0].mxu0
        %v4796 = vadd.f32 %v4655, %v4795
        %v4797 = vpop.f32.mrb[0].mxu0
        %v4798 = vpop.f32.mrb[0].mxu0
        %v4799 = vadd.f32 %v4655, %v4798
        %v4800 = vpop.f32.mrb[0].mxu0
        %4801 = vdwg.mxu0
        %v4802 = vadd.f32 %v1190, %v4740
        %v4803 = vadd.f32 %v1191, %v4743
        %v4804 = vadd.f32 %v1192, %v4748
        %v4805 = vadd.f32 %v1193, %v4751
        %v4806 = vadd.f32 %v1194, %v4756
        %v4807 = vadd.f32 %v1195, %v4759
        %v4808 = vadd.f32 %v1196, %v4764
        %v4809 = vadd.f32 %v1197, %v4767
        %v4810 = vadd.f32 %v1198, %v4772
        %v4811 = vadd.f32 %v1199, %v4775
        %v4812 = vadd.f32 %v1200, %v4780
        %v4813 = vadd.f32 %v1201, %v4783
        %v4814 = vadd.f32 %v1202, %v4788
        %v4815 = vadd.f32 %v1203, %v4791
        %v4816 = vadd.f32 %v1204, %v4796
        %v4817 = vadd.f32 %v1205, %v4799
        %v4818 = vld [vmem:[%s888] sm:$0x1]
        %v4819 = vld [vmem:[%s891] sm:$0x1]
        %4820 = vadd.xlane.f32.xlu0 %v4802
        %v4821 = vpop.xlane.xlu0 %4820
        %4822 = vadd.xlane.f32.xlu0 %v4803
        %v4823 = vpop.xlane.xlu0 %4822
        %4824 = vadd.xlane.f32.xlu0 %v4804
        %v4825 = vpop.xlane.xlu0 %4824
        %4826 = vadd.xlane.f32.xlu0 %v4805
        %v4827 = vpop.xlane.xlu0 %4826
        %4828 = vadd.xlane.f32.xlu0 %v4806
        %v4829 = vpop.xlane.xlu0 %4828
        %4830 = vadd.xlane.f32.xlu0 %v4807
        %v4831 = vpop.xlane.xlu0 %4830
        %4832 = vadd.xlane.f32.xlu0 %v4808
        %v4833 = vpop.xlane.xlu0 %4832
        %4834 = vadd.xlane.f32.xlu0 %v4809
        %v4835 = vpop.xlane.xlu0 %4834
        %4836 = vadd.xlane.f32.xlu0 %v4810
        %v4837 = vpop.xlane.xlu0 %4836
        %4838 = vadd.xlane.f32.xlu0 %v4811
        %v4839 = vpop.xlane.xlu0 %4838
        %4840 = vadd.xlane.f32.xlu0 %v4812
        %v4841 = vpop.xlane.xlu0 %4840
        %4842 = vadd.xlane.f32.xlu0 %v4813
        %v4843 = vpop.xlane.xlu0 %4842
        %4844 = vadd.xlane.f32.xlu0 %v4814
        %v4845 = vpop.xlane.xlu0 %4844
        %4846 = vadd.xlane.f32.xlu0 %v4815
        %v4847 = vpop.xlane.xlu0 %4846
        %4848 = vadd.xlane.f32.xlu0 %v4816
        %v4849 = vpop.xlane.xlu0 %4848
        %4850 = vadd.xlane.f32.xlu0 %v4817
        %v4851 = vpop.xlane.xlu0 %4850
        %v4852 = vrcp.pop 128.0
        %v4853 = vmul.f32 %v4821, %v4852
        %v4854 = vmul.f32 %v4823, %v4852
        %v4855 = vmul.f32 %v4825, %v4852
        %v4856 = vmul.f32 %v4827, %v4852
        %v4857 = vmul.f32 %v4829, %v4852
        %v4858 = vmul.f32 %v4831, %v4852
        %v4859 = vmul.f32 %v4833, %v4852
        %v4860 = vmul.f32 %v4835, %v4852
        %v4861 = vmul.f32 %v4837, %v4852
        %v4862 = vmul.f32 %v4839, %v4852
        %v4863 = vmul.f32 %v4841, %v4852
        %v4864 = vmul.f32 %v4843, %v4852
        %v4865 = vmul.f32 %v4845, %v4852
        %v4866 = vmul.f32 %v4847, %v4852
        %v4867 = vmul.f32 %v4849, %v4852
        %v4868 = vmul.f32 %v4851, %v4852
        %v4869 = vsub.f32 %v4802, %v4853
        %v4870 = vsub.f32 %v4803, %v4854
        %v4871 = vsub.f32 %v4804, %v4855
        %v4872 = vsub.f32 %v4805, %v4856
        %v4873 = vsub.f32 %v4806, %v4857
        %v4874 = vsub.f32 %v4807, %v4858
        %v4875 = vsub.f32 %v4808, %v4859
        %v4876 = vsub.f32 %v4809, %v4860
        %v4877 = vsub.f32 %v4810, %v4861
        %v4878 = vsub.f32 %v4811, %v4862
        %v4879 = vsub.f32 %v4812, %v4863
        %v4880 = vsub.f32 %v4813, %v4864
        %v4881 = vsub.f32 %v4814, %v4865
        %v4882 = vsub.f32 %v4815, %v4866
        %v4883 = vsub.f32 %v4816, %v4867
        %v4884 = vsub.f32 %v4817, %v4868
        %v4885 = vmul.f32 %v4869, %v4869
        %v4886 = vmul.f32 %v4870, %v4870
        %v4887 = vmul.f32 %v4871, %v4871
        %v4888 = vmul.f32 %v4872, %v4872
        %v4889 = vmul.f32 %v4873, %v4873
        %v4890 = vmul.f32 %v4874, %v4874
        %v4891 = vmul.f32 %v4875, %v4875
        %v4892 = vmul.f32 %v4876, %v4876
        %v4893 = vmul.f32 %v4877, %v4877
        %v4894 = vmul.f32 %v4878, %v4878
        %v4895 = vmul.f32 %v4879, %v4879
        %v4896 = vmul.f32 %v4880, %v4880
        %v4897 = vmul.f32 %v4881, %v4881
        %v4898 = vmul.f32 %v4882, %v4882
        %v4899 = vmul.f32 %v4883, %v4883
        %v4900 = vmul.f32 %v4884, %v4884
        %4901 = vadd.xlane.f32.xlu0 %v4885
        %v4902 = vpop.xlane.xlu0 %4901
        %4903 = vadd.xlane.f32.xlu0 %v4886
        %v4904 = vpop.xlane.xlu0 %4903
        %4905 = vadd.xlane.f32.xlu0 %v4887
        %v4906 = vpop.xlane.xlu0 %4905
        %4907 = vadd.xlane.f32.xlu0 %v4888
        %v4908 = vpop.xlane.xlu0 %4907
        %4909 = vadd.xlane.f32.xlu0 %v4889
        %v4910 = vpop.xlane.xlu0 %4909
        %4911 = vadd.xlane.f32.xlu0 %v4890
        %v4912 = vpop.xlane.xlu0 %4911
        %4913 = vadd.xlane.f32.xlu0 %v4891
        %v4914 = vpop.xlane.xlu0 %4913
        %4915 = vadd.xlane.f32.xlu0 %v4892
        %v4916 = vpop.xlane.xlu0 %4915
        %4917 = vadd.xlane.f32.xlu0 %v4893
        %v4918 = vpop.xlane.xlu0 %4917
        %4919 = vadd.xlane.f32.xlu0 %v4894
        %v4920 = vpop.xlane.xlu0 %4919
        %4921 = vadd.xlane.f32.xlu0 %v4895
        %v4922 = vpop.xlane.xlu0 %4921
        %4923 = vadd.xlane.f32.xlu0 %v4896
        %v4924 = vpop.xlane.xlu0 %4923
        %4925 = vadd.xlane.f32.xlu0 %v4897
        %v4926 = vpop.xlane.xlu0 %4925
        %4927 = vadd.xlane.f32.xlu0 %v4898
        %v4928 = vpop.xlane.xlu0 %4927
        %4929 = vadd.xlane.f32.xlu0 %v4899
        %v4930 = vpop.xlane.xlu0 %4929
        %4931 = vadd.xlane.f32.xlu0 %v4900
        %v4932 = vpop.xlane.xlu0 %4931
        %v4933 = vmul.f32 %v4902, %v4852
        %v4934 = vmul.f32 %v4904, %v4852
        %v4935 = vmul.f32 %v4906, %v4852
        %v4936 = vmul.f32 %v4908, %v4852
        %v4937 = vmul.f32 %v4910, %v4852
        %v4938 = vmul.f32 %v4912, %v4852
        %v4939 = vmul.f32 %v4914, %v4852
        %v4940 = vmul.f32 %v4916, %v4852
        %v4941 = vmul.f32 %v4918, %v4852
        %v4942 = vmul.f32 %v4920, %v4852
        %v4943 = vmul.f32 %v4922, %v4852
        %v4944 = vmul.f32 %v4924, %v4852
        %v4945 = vmul.f32 %v4926, %v4852
        %v4946 = vmul.f32 %v4928, %v4852
        %v4947 = vmul.f32 %v4930, %v4852
        %v4948 = vmul.f32 %v4932, %v4852
        %v4949 = vadd.f32 %v4933, 1e-06
        %v4950 = vadd.f32 %v4934, 1e-06
        %v4951 = vadd.f32 %v4935, 1e-06
        %v4952 = vadd.f32 %v4936, 1e-06
        %v4953 = vadd.f32 %v4937, 1e-06
        %v4954 = vadd.f32 %v4938, 1e-06
        %v4955 = vadd.f32 %v4939, 1e-06
        %v4956 = vadd.f32 %v4940, 1e-06
        %v4957 = vadd.f32 %v4941, 1e-06
        %v4958 = vadd.f32 %v4942, 1e-06
        %v4959 = vadd.f32 %v4943, 1e-06
        %v4960 = vadd.f32 %v4944, 1e-06
        %v4961 = vadd.f32 %v4945, 1e-06
        %v4962 = vadd.f32 %v4946, 1e-06
        %v4963 = vadd.f32 %v4947, 1e-06
        %v4964 = vadd.f32 %v4948, 1e-06
        %v4965 = vrsqrt.pop %v4949
        %v4966 = vrsqrt.pop %v4950
        %v4967 = vrsqrt.pop %v4951
        %v4968 = vrsqrt.pop %v4952
        %v4969 = vrsqrt.pop %v4953
        %v4970 = vrsqrt.pop %v4954
        %v4971 = vrsqrt.pop %v4955
        %v4972 = vrsqrt.pop %v4956
        %v4973 = vrsqrt.pop %v4957
        %v4974 = vrsqrt.pop %v4958
        %v4975 = vrsqrt.pop %v4959
        %v4976 = vrsqrt.pop %v4960
        %v4977 = vrsqrt.pop %v4961
        %v4978 = vrsqrt.pop %v4962
        %v4979 = vrsqrt.pop %v4963
        %v4980 = vrsqrt.pop %v4964
        %v4981 = vmul.f32 %v4869, %v4965
        %v4982 = vmul.f32 %v4870, %v4966
        %v4983 = vmul.f32 %v4871, %v4967
        %v4984 = vmul.f32 %v4872, %v4968
        %v4985 = vmul.f32 %v4873, %v4969
        %v4986 = vmul.f32 %v4874, %v4970
        %v4987 = vmul.f32 %v4875, %v4971
        %v4988 = vmul.f32 %v4876, %v4972
        %v4989 = vmul.f32 %v4877, %v4973
        %v4990 = vmul.f32 %v4878, %v4974
        %v4991 = vmul.f32 %v4879, %v4975
        %v4992 = vmul.f32 %v4880, %v4976
        %v4993 = vmul.f32 %v4881, %v4977
        %v4994 = vmul.f32 %v4882, %v4978
        %v4995 = vmul.f32 %v4883, %v4979
        %v4996 = vmul.f32 %v4884, %v4980
        %v4998 = vlaneseq
        %v4999 = vshrl.u32 %v4998, 7
        %v5000 = vsub.s32 0, %v4999
        %v5001 = vrot.slane %v4818, %v5000
        %v5003 = vmul.f32 %v4981, %v5001
        %v5004 = vmul.f32 %v4982, %v5001
        %v5005 = vmul.f32 %v4983, %v5001
        %v5006 = vmul.f32 %v4984, %v5001
        %v5007 = vmul.f32 %v4985, %v5001
        %v5008 = vmul.f32 %v4986, %v5001
        %v5009 = vmul.f32 %v4987, %v5001
        %v5010 = vmul.f32 %v4988, %v5001
        %v5011 = vmul.f32 %v4989, %v5001
        %v5012 = vmul.f32 %v4990, %v5001
        %v5013 = vmul.f32 %v4991, %v5001
        %v5014 = vmul.f32 %v4992, %v5001
        %v5015 = vmul.f32 %v4993, %v5001
        %v5016 = vmul.f32 %v4994, %v5001
        %v5017 = vmul.f32 %v4995, %v5001
        %v5018 = vmul.f32 %v4996, %v5001
        %v5020 = vlaneseq
        %v5021 = vshrl.u32 %v5020, 7
        %v5022 = vsub.s32 0, %v5021
        %v5023 = vrot.slane %v4819, %v5022
        %v5025 = vadd.f32 %v5003, %v5023
        %v5026 = vadd.f32 %v5004, %v5023
        %v5027 = vadd.f32 %v5005, %v5023
        %v5028 = vadd.f32 %v5006, %v5023
        %v5029 = vadd.f32 %v5007, %v5023
        %v5030 = vadd.f32 %v5008, %v5023
        %v5031 = vadd.f32 %v5009, %v5023
        %v5032 = vadd.f32 %v5010, %v5023
        %v5033 = vadd.f32 %v5011, %v5023
        %v5034 = vadd.f32 %v5012, %v5023
        %v5035 = vadd.f32 %v5013, %v5023
        %v5036 = vadd.f32 %v5014, %v5023
        %v5037 = vadd.f32 %v5015, %v5023
        %v5038 = vadd.f32 %v5016, %v5023
        %v5039 = vadd.f32 %v5017, %v5023
        %v5040 = vadd.f32 %v5018, %v5023
        %v5041 = vpack.c.bf16 %v5026, %v5025
        %v5042 = vpack.c.bf16 %v5028, %v5027
        %v5043 = vpack.c.bf16 %v5030, %v5029
        %v5044 = vpack.c.bf16 %v5032, %v5031
        %v5045 = vpack.c.bf16 %v5034, %v5033
        %v5046 = vpack.c.bf16 %v5036, %v5035
        %v5047 = vpack.c.bf16 %v5038, %v5037
        %v5048 = vpack.c.bf16 %v5040, %v5039
        %v5049 = vld [vmem:[%s763] sm:$0xff]
        %v5050 = vld [vmem:[%s763 + $0x8] sm:$0xff]
        %v5051 = vld [vmem:[%s763 + $0x10] sm:$0xff]
        %v5052 = vld [vmem:[%s763 + $0x18] sm:$0xff]
        %v5053 = vld [vmem:[%s763 + $0x20] sm:$0xff]
        %v5054 = vld [vmem:[%s763 + $0x28] sm:$0xff]
        %v5055 = vld [vmem:[%s763 + $0x30] sm:$0xff]
        %v5056 = vld [vmem:[%s763 + $0x38] sm:$0xff]
        %v5057 = vld [vmem:[%s763 + $0x40] sm:$0xff]
        %v5058 = vld [vmem:[%s763 + $0x48] sm:$0xff]
        %v5059 = vld [vmem:[%s763 + $0x50] sm:$0xff]
        %v5060 = vld [vmem:[%s763 + $0x58] sm:$0xff]
        %v5061 = vld [vmem:[%s763 + $0x60] sm:$0xff]
        %v5062 = vld [vmem:[%s763 + $0x68] sm:$0xff]
        %v5063 = vld [vmem:[%s763 + $0x70] sm:$0xff]
        %v5064 = vld [vmem:[%s763 + $0x78] sm:$0xff]
        %v5065 = vld [vmem:[%s895] sm:$0x3]
        %v5067 = vlaneseq
        %v5068 = vshrl.u32 %v5067, 7
        %v5069 = vsub.s32 0, %v5068
        %v5070 = vrot.slane %v5065, %v5069
        %v5071 = vlaneseq
        %v5072 = vshrl.u32 %v5071, 7
        %v5073 = vsub.s32 1, %v5072
        %v5074 = vrot.slane %v5065, %v5073
        %v5093 = vunpack.c.l.b16 %v5049
        %v5094 = vunpack.c.h.b16 %v5049
        %v5095 = vunpack.c.l.b16 %v5050
        %v5096 = vunpack.c.h.b16 %v5050
        %v5097 = vunpack.c.l.b16 %v5051
        %v5098 = vunpack.c.h.b16 %v5051
        %v5099 = vunpack.c.l.b16 %v5052
        %v5100 = vunpack.c.h.b16 %v5052
        %v5101 = vunpack.c.l.b16 %v5053
        %v5102 = vunpack.c.h.b16 %v5053
        %v5103 = vunpack.c.l.b16 %v5054
        %v5104 = vunpack.c.h.b16 %v5054
        %v5105 = vunpack.c.l.b16 %v5055
        %v5106 = vunpack.c.h.b16 %v5055
        %v5107 = vunpack.c.l.b16 %v5056
        %v5108 = vunpack.c.h.b16 %v5056
        %v5109 = vunpack.c.l.b16 %v5057
        %v5110 = vunpack.c.h.b16 %v5057
        %v5111 = vunpack.c.l.b16 %v5058
        %v5112 = vunpack.c.h.b16 %v5058
        %v5113 = vunpack.c.l.b16 %v5059
        %v5114 = vunpack.c.h.b16 %v5059
        %v5115 = vunpack.c.l.b16 %v5060
        %v5116 = vunpack.c.h.b16 %v5060
        %v5117 = vunpack.c.l.b16 %v5061
        %v5118 = vunpack.c.h.b16 %v5061
        %v5119 = vunpack.c.l.b16 %v5062
        %v5120 = vunpack.c.h.b16 %v5062
        %v5121 = vunpack.c.l.b16 %v5063
        %v5122 = vunpack.c.h.b16 %v5063
        %v5123 = vunpack.c.l.b16 %v5064
        %v5124 = vunpack.c.h.b16 %v5064
        %v5125 = vpack.c.b16 %v5095, %v5093
        %v5126 = vpack.c.b16 %v5096, %v5094
        %v5127 = vpack.c.b16 %v5099, %v5097
        %v5128 = vpack.c.b16 %v5100, %v5098
        %v5129 = vpack.c.b16 %v5103, %v5101
        %v5130 = vpack.c.b16 %v5104, %v5102
        %v5131 = vpack.c.b16 %v5107, %v5105
        %v5132 = vpack.c.b16 %v5108, %v5106
        %v5133 = vpack.c.b16 %v5111, %v5109
        %v5134 = vpack.c.b16 %v5112, %v5110
        %v5135 = vpack.c.b16 %v5115, %v5113
        %v5136 = vpack.c.b16 %v5116, %v5114
        %v5137 = vpack.c.b16 %v5119, %v5117
        %v5138 = vpack.c.b16 %v5120, %v5118
        %v5139 = vpack.c.b16 %v5123, %v5121
        %v5140 = vpack.c.b16 %v5124, %v5122
        %5157 = vmatprep.subr.bf16.mxu0 %v5126
        %5158 = vmatpush1.bf16.msra.mxu0 %v5125
        %5159 = vmatprep.subr.bf16.mxu0 %v5128
        %5160 = vmatpush1.bf16.msra.mxu0 %v5127
        %5161 = vmatprep.subr.bf16.mxu0 %v5130
        %5162 = vmatpush1.bf16.msra.mxu0 %v5129
        %5163 = vmatprep.subr.bf16.mxu0 %v5132
        %5164 = vmatpush1.bf16.msra.mxu0 %v5131
        %5165 = vmatprep.subr.bf16.mxu0 %v5134
        %5166 = vmatpush1.bf16.msra.mxu0 %v5133
        %5167 = vmatprep.subr.bf16.mxu0 %v5136
        %5168 = vmatpush1.bf16.msra.mxu0 %v5135
        %5169 = vmatprep.subr.bf16.mxu0 %v5138
        %5170 = vmatpush1.bf16.msra.mxu0 %v5137
        %5171 = vmatprep.subr.bf16.mxu0 %v5140
        %5172 = vmatpush1.bf16.msra.mxu0 %v5139
        %5173 = vmatprep.subr.bf16.mxu0 0
        %5174 = vmatpush1.bf16.msra.mxu0 0
        %5175 = vmatprep.subr.bf16.mxu0 0
        %5176 = vmatpush1.bf16.msra.mxu0 0
        %5177 = vmatprep.subr.bf16.mxu0 0
        %5178 = vmatpush1.bf16.msra.mxu0 0
        %5179 = vmatprep.subr.bf16.mxu0 0
        %5180 = vmatpush1.bf16.msra.mxu0 0
        %5181 = vmatprep.subr.bf16.mxu0 0
        %5182 = vmatpush1.bf16.msra.mxu0 0
        %5183 = vmatprep.subr.bf16.mxu0 0
        %5184 = vmatpush1.bf16.msra.mxu0 0
        %5185 = vmatprep.subr.bf16.mxu0 0
        %5186 = vmatpush1.bf16.msra.mxu0 0
        %5187 = vmatprep.subr.bf16.mxu0 0
        %5188 = vmatpush1.bf16.msra.mxu0 0
        %5189 = vmatprep.mubr.bf16.mxu0 0
        %5190 = vmatmul.mubr.bf16.gmra.mrb[0].mxu0 %v5041
        %v5191 = vpop.f32.mrb[0].mxu0
        %v5192 = vadd.f32 %v5070, %v5191
        %v5193 = vpop.f32.mrb[0].mxu0
        %v5194 = vadd.f32 %v5074, %v5193
        %v5195 = vpop.f32.mrb[0].mxu0
        %v5196 = vadd.f32 %v5070, %v5195
        %v5197 = vpop.f32.mrb[0].mxu0
        %v5198 = vadd.f32 %v5074, %v5197
        %5199 = vmatprep.mubr.bf16.mxu0 0
        %5200 = vmatmul.mubr.bf16.gmra.mrb[0].mxu0 %v5042
        %v5201 = vpop.f32.mrb[0].mxu0
        %v5202 = vadd.f32 %v5070, %v5201
        %v5203 = vpop.f32.mrb[0].mxu0
        %v5204 = vadd.f32 %v5074, %v5203
        %v5205 = vpop.f32.mrb[0].mxu0
        %v5206 = vadd.f32 %v5070, %v5205
        %v5207 = vpop.f32.mrb[0].mxu0
        %v5208 = vadd.f32 %v5074, %v5207
        %5209 = vmatprep.mubr.bf16.mxu0 0
        %5210 = vmatmul.mubr.bf16.gmra.mrb[0].mxu0 %v5043
        %v5211 = vpop.f32.mrb[0].mxu0
        %v5212 = vadd.f32 %v5070, %v5211
        %v5213 = vpop.f32.mrb[0].mxu0
        %v5214 = vadd.f32 %v5074, %v5213
        %v5215 = vpop.f32.mrb[0].mxu0
        %v5216 = vadd.f32 %v5070, %v5215
        %v5217 = vpop.f32.mrb[0].mxu0
        %v5218 = vadd.f32 %v5074, %v5217
        %5219 = vmatprep.mubr.bf16.mxu0 0
        %5220 = vmatmul.mubr.bf16.gmra.mrb[0].mxu0 %v5044
        %v5221 = vpop.f32.mrb[0].mxu0
        %v5222 = vadd.f32 %v5070, %v5221
        %v5223 = vpop.f32.mrb[0].mxu0
        %v5224 = vadd.f32 %v5074, %v5223
        %v5225 = vpop.f32.mrb[0].mxu0
        %v5226 = vadd.f32 %v5070, %v5225
        %v5227 = vpop.f32.mrb[0].mxu0
        %v5228 = vadd.f32 %v5074, %v5227
        %5229 = vmatprep.mubr.bf16.mxu0 0
        %5230 = vmatmul.mubr.bf16.gmra.mrb[0].mxu0 %v5045
        %v5231 = vpop.f32.mrb[0].mxu0
        %v5232 = vadd.f32 %v5070, %v5231
        %v5233 = vpop.f32.mrb[0].mxu0
        %v5234 = vadd.f32 %v5074, %v5233
        %v5235 = vpop.f32.mrb[0].mxu0
        %v5236 = vadd.f32 %v5070, %v5235
        %v5237 = vpop.f32.mrb[0].mxu0
        %v5238 = vadd.f32 %v5074, %v5237
        %5239 = vmatprep.mubr.bf16.mxu0 0
        %5240 = vmatmul.mubr.bf16.gmra.mrb[0].mxu0 %v5046
        %v5241 = vpop.f32.mrb[0].mxu0
        %v5242 = vadd.f32 %v5070, %v5241
        %v5243 = vpop.f32.mrb[0].mxu0
        %v5244 = vadd.f32 %v5074, %v5243
        %v5245 = vpop.f32.mrb[0].mxu0
        %v5246 = vadd.f32 %v5070, %v5245
        %v5247 = vpop.f32.mrb[0].mxu0
        %v5248 = vadd.f32 %v5074, %v5247
        %5249 = vmatprep.mubr.bf16.mxu0 0
        %5250 = vmatmul.mubr.bf16.gmra.mrb[0].mxu0 %v5047
        %v5251 = vpop.f32.mrb[0].mxu0
        %v5252 = vadd.f32 %v5070, %v5251
        %v5253 = vpop.f32.mrb[0].mxu0
        %v5254 = vadd.f32 %v5074, %v5253
        %v5255 = vpop.f32.mrb[0].mxu0
        %v5256 = vadd.f32 %v5070, %v5255
        %v5257 = vpop.f32.mrb[0].mxu0
        %v5258 = vadd.f32 %v5074, %v5257
        %5259 = vmatprep.mubr.bf16.mxu0 0
        %5260 = vmatmul.mubr.bf16.gmra.mrb[0].mxu0 %v5048
        %v5261 = vpop.f32.mrb[0].mxu0
        %v5262 = vadd.f32 %v5070, %v5261
        %v5263 = vpop.f32.mrb[0].mxu0
        %v5264 = vadd.f32 %v5074, %v5263
        %v5265 = vpop.f32.mrb[0].mxu0
        %v5266 = vadd.f32 %v5070, %v5265
        %v5267 = vpop.f32.mrb[0].mxu0
        %v5268 = vadd.f32 %v5074, %v5267
        %5269 = vdwg.mxu0
        %v5270 = vmax.f32 %v5192, 0.0
        %v5271 = vmax.f32 %v5194, 0.0
        %v5272 = vmax.f32 %v5196, 0.0
        %v5273 = vmax.f32 %v5198, 0.0
        %v5274 = vmax.f32 %v5202, 0.0
        %v5275 = vmax.f32 %v5204, 0.0
        %v5276 = vmax.f32 %v5206, 0.0
        %v5277 = vmax.f32 %v5208, 0.0
        %v5278 = vmax.f32 %v5212, 0.0
        %v5279 = vmax.f32 %v5214, 0.0
        %v5280 = vmax.f32 %v5216, 0.0
        %v5281 = vmax.f32 %v5218, 0.0
        %v5282 = vmax.f32 %v5222, 0.0
        %v5283 = vmax.f32 %v5224, 0.0
        %v5284 = vmax.f32 %v5226, 0.0
        %v5285 = vmax.f32 %v5228, 0.0
        %v5286 = vmax.f32 %v5232, 0.0
        %v5287 = vmax.f32 %v5234, 0.0
        %v5288 = vmax.f32 %v5236, 0.0
        %v5289 = vmax.f32 %v5238, 0.0
        %v5290 = vmax.f32 %v5242, 0.0
        %v5291 = vmax.f32 %v5244, 0.0
        %v5292 = vmax.f32 %v5246, 0.0
        %v5293 = vmax.f32 %v5248, 0.0
        %v5294 = vmax.f32 %v5252, 0.0
        %v5295 = vmax.f32 %v5254, 0.0
        %v5296 = vmax.f32 %v5256, 0.0
        %v5297 = vmax.f32 %v5258, 0.0
        %v5298 = vmax.f32 %v5262, 0.0
        %v5299 = vmax.f32 %v5264, 0.0
        %v5300 = vmax.f32 %v5266, 0.0
        %v5301 = vmax.f32 %v5268, 0.0
        %v5302 = vpack.c.bf16 %v5272, %v5270
        %v5303 = vpack.c.bf16 %v5273, %v5271
        %v5304 = vpack.c.bf16 %v5276, %v5274
        %v5305 = vpack.c.bf16 %v5277, %v5275
        %v5306 = vpack.c.bf16 %v5280, %v5278
        %v5307 = vpack.c.bf16 %v5281, %v5279
        %v5308 = vpack.c.bf16 %v5284, %v5282
        %v5309 = vpack.c.bf16 %v5285, %v5283
        %v5310 = vpack.c.bf16 %v5288, %v5286
        %v5311 = vpack.c.bf16 %v5289, %v5287
        %v5312 = vpack.c.bf16 %v5292, %v5290
        %v5313 = vpack.c.bf16 %v5293, %v5291
        %v5314 = vpack.c.bf16 %v5296, %v5294
        %v5315 = vpack.c.bf16 %v5297, %v5295
        %v5316 = vpack.c.bf16 %v5300, %v5298
        %v5317 = vpack.c.bf16 %v5301, %v5299
        %v5318 = vld [vmem:[%s772] sm:$0xf]
        %v5319 = vld [vmem:[%s772 + $0x4] sm:$0xf]
        %v5320 = vld [vmem:[%s772 + $0x8] sm:$0xf]
        %v5321 = vld [vmem:[%s772 + $0xc] sm:$0xf]
        %v5322 = vld [vmem:[%s772 + $0x10] sm:$0xf]
        %v5323 = vld [vmem:[%s772 + $0x14] sm:$0xf]
        %v5324 = vld [vmem:[%s772 + $0x18] sm:$0xf]
        %v5325 = vld [vmem:[%s772 + $0x1c] sm:$0xf]
        %v5326 = vld [vmem:[%s772 + $0x20] sm:$0xf]
        %v5327 = vld [vmem:[%s772 + $0x24] sm:$0xf]
        %v5328 = vld [vmem:[%s772 + $0x28] sm:$0xf]
        %v5329 = vld [vmem:[%s772 + $0x2c] sm:$0xf]
        %v5330 = vld [vmem:[%s772 + $0x30] sm:$0xf]
        %v5331 = vld [vmem:[%s772 + $0x34] sm:$0xf]
        %v5332 = vld [vmem:[%s772 + $0x38] sm:$0xf]
        %v5333 = vld [vmem:[%s772 + $0x3c] sm:$0xf]
        %v5334 = vld [vmem:[%s772 + $0x40] sm:$0xf]
        %v5335 = vld [vmem:[%s772 + $0x44] sm:$0xf]
        %v5336 = vld [vmem:[%s772 + $0x48] sm:$0xf]
        %v5337 = vld [vmem:[%s772 + $0x4c] sm:$0xf]
        %v5338 = vld [vmem:[%s772 + $0x50] sm:$0xf]
        %v5339 = vld [vmem:[%s772 + $0x54] sm:$0xf]
        %v5340 = vld [vmem:[%s772 + $0x58] sm:$0xf]
        %v5341 = vld [vmem:[%s772 + $0x5c] sm:$0xf]
        %v5342 = vld [vmem:[%s772 + $0x60] sm:$0xf]
        %v5343 = vld [vmem:[%s772 + $0x64] sm:$0xf]
        %v5344 = vld [vmem:[%s772 + $0x68] sm:$0xf]
        %v5345 = vld [vmem:[%s772 + $0x6c] sm:$0xf]
        %v5346 = vld [vmem:[%s772 + $0x70] sm:$0xf]
        %v5347 = vld [vmem:[%s772 + $0x74] sm:$0xf]
        %v5348 = vld [vmem:[%s772 + $0x78] sm:$0xf]
        %v5349 = vld [vmem:[%s772 + $0x7c] sm:$0xf]
        %v5350 = vld [vmem:[%s898] sm:$0x1]
        %v5352 = vlaneseq
        %v5353 = vshrl.u32 %v5352, 7
        %v5354 = vsub.s32 0, %v5353
        %v5355 = vrot.slane %v5350, %v5354
        %v5389 = vunpack.c.l.b16 %v5318
        %v5390 = vunpack.c.l.b16 %v5319
        %v5391 = vunpack.c.l.b16 %v5320
        %v5392 = vunpack.c.l.b16 %v5321
        %v5393 = vunpack.c.l.b16 %v5322
        %v5394 = vunpack.c.l.b16 %v5323
        %v5395 = vunpack.c.l.b16 %v5324
        %v5396 = vunpack.c.l.b16 %v5325
        %v5397 = vunpack.c.l.b16 %v5326
        %v5398 = vunpack.c.l.b16 %v5327
        %v5399 = vunpack.c.l.b16 %v5328
        %v5400 = vunpack.c.l.b16 %v5329
        %v5401 = vunpack.c.l.b16 %v5330
        %v5402 = vunpack.c.l.b16 %v5331
        %v5403 = vunpack.c.l.b16 %v5332
        %v5404 = vunpack.c.l.b16 %v5333
        %v5405 = vunpack.c.l.b16 %v5334
        %v5406 = vunpack.c.l.b16 %v5335
        %v5407 = vunpack.c.l.b16 %v5336
        %v5408 = vunpack.c.l.b16 %v5337
        %v5409 = vunpack.c.l.b16 %v5338
        %v5410 = vunpack.c.l.b16 %v5339
        %v5411 = vunpack.c.l.b16 %v5340
        %v5412 = vunpack.c.l.b16 %v5341
        %v5413 = vunpack.c.l.b16 %v5342
        %v5414 = vunpack.c.l.b16 %v5343
        %v5415 = vunpack.c.l.b16 %v5344
        %v5416 = vunpack.c.l.b16 %v5345
        %v5417 = vunpack.c.l.b16 %v5346
        %v5418 = vunpack.c.l.b16 %v5347
        %v5419 = vunpack.c.l.b16 %v5348
        %v5420 = vunpack.c.l.b16 %v5349
        %v5421 = vpack.c.b16 %v5390, %v5389
        %v5422 = vpack.c.b16 %v5392, %v5391
        %v5423 = vpack.c.b16 %v5394, %v5393
        %v5424 = vpack.c.b16 %v5396, %v5395
        %v5425 = vpack.c.b16 %v5398, %v5397
        %v5426 = vpack.c.b16 %v5400, %v5399
        %v5427 = vpack.c.b16 %v5402, %v5401
        %v5428 = vpack.c.b16 %v5404, %v5403
        %v5429 = vpack.c.b16 %v5406, %v5405
        %v5430 = vpack.c.b16 %v5408, %v5407
        %v5431 = vpack.c.b16 %v5410, %v5409
        %v5432 = vpack.c.b16 %v5412, %v5411
        %v5433 = vpack.c.b16 %v5414, %v5413
        %v5434 = vpack.c.b16 %v5416, %v5415
        %v5435 = vpack.c.b16 %v5418, %v5417
        %v5436 = vpack.c.b16 %v5420, %v5419
        %5453 = vmatprep.subr.bf16.mxu0 0
        %5454 = vmatpush1.bf16.msra.mxu0 %v5421
        %5455 = vmatprep.subr.bf16.mxu0 0
        %5456 = vmatpush1.bf16.msra.mxu0 %v5422
        %5457 = vmatprep.subr.bf16.mxu0 0
        %5458 = vmatpush1.bf16.msra.mxu0 %v5423
        %5459 = vmatprep.subr.bf16.mxu0 0
        %5460 = vmatpush1.bf16.msra.mxu0 %v5424
        %5461 = vmatprep.subr.bf16.mxu0 0
        %5462 = vmatpush1.bf16.msra.mxu0 %v5425
        %5463 = vmatprep.subr.bf16.mxu0 0
        %5464 = vmatpush1.bf16.msra.mxu0 %v5426
        %5465 = vmatprep.subr.bf16.mxu0 0
        %5466 = vmatpush1.bf16.msra.mxu0 %v5427
        %5467 = vmatprep.subr.bf16.mxu0 0
        %5468 = vmatpush1.bf16.msra.mxu0 %v5428
        %5469 = vmatprep.subr.bf16.mxu0 0
        %5470 = vmatpush1.bf16.msra.mxu0 %v5429
        %5471 = vmatprep.subr.bf16.mxu0 0
        %5472 = vmatpush1.bf16.msra.mxu0 %v5430
        %5473 = vmatprep.subr.bf16.mxu0 0
        %5474 = vmatpush1.bf16.msra.mxu0 %v5431
        %5475 = vmatprep.subr.bf16.mxu0 0
        %5476 = vmatpush1.bf16.msra.mxu0 %v5432
        %5477 = vmatprep.subr.bf16.mxu0 0
        %5478 = vmatpush1.bf16.msra.mxu0 %v5433
        %5479 = vmatprep.subr.bf16.mxu0 0
        %5480 = vmatpush1.bf16.msra.mxu0 %v5434
        %5481 = vmatprep.subr.bf16.mxu0 0
        %5482 = vmatpush1.bf16.msra.mxu0 %v5435
        %5483 = vmatprep.subr.bf16.mxu0 0
        %5484 = vmatpush1.bf16.msra.mxu0 %v5436
        %5485 = vmatprep.mubr.bf16.mxu0 %v5303
        %5486 = vmatmul.mubr.bf16.gmra.mrb[0].mxu0 %v5302
        %v5487 = vpop.f32.mrb[0].mxu0
        %v5488 = vadd.f32 %v5355, %v5487
        %v5489 = vpop.f32.mrb[0].mxu0
        %v5490 = vpop.f32.mrb[0].mxu0
        %v5491 = vadd.f32 %v5355, %v5490
        %v5492 = vpop.f32.mrb[0].mxu0
        %5493 = vmatprep.mubr.bf16.mxu0 %v5305
        %5494 = vmatmul.mubr.bf16.gmra.mrb[0].mxu0 %v5304
        %v5495 = vpop.f32.mrb[0].mxu0
        %v5496 = vadd.f32 %v5355, %v5495
        %v5497 = vpop.f32.mrb[0].mxu0
        %v5498 = vpop.f32.mrb[0].mxu0
        %v5499 = vadd.f32 %v5355, %v5498
        %v5500 = vpop.f32.mrb[0].mxu0
        %5501 = vmatprep.mubr.bf16.mxu0 %v5307
        %5502 = vmatmul.mubr.bf16.gmra.mrb[0].mxu0 %v5306
        %v5503 = vpop.f32.mrb[0].mxu0
        %v5504 = vadd.f32 %v5355, %v5503
        %v5505 = vpop.f32.mrb[0].mxu0
        %v5506 = vpop.f32.mrb[0].mxu0
        %v5507 = vadd.f32 %v5355, %v5506
        %v5508 = vpop.f32.mrb[0].mxu0
        %5509 = vmatprep.mubr.bf16.mxu0 %v5309
        %5510 = vmatmul.mubr.bf16.gmra.mrb[0].mxu0 %v5308
        %v5511 = vpop.f32.mrb[0].mxu0
        %v5512 = vadd.f32 %v5355, %v5511
        %v5513 = vpop.f32.mrb[0].mxu0
        %v5514 = vpop.f32.mrb[0].mxu0
        %v5515 = vadd.f32 %v5355, %v5514
        %v5516 = vpop.f32.mrb[0].mxu0
        %5517 = vmatprep.mubr.bf16.mxu0 %v5311
        %5518 = vmatmul.mubr.bf16.gmra.mrb[0].mxu0 %v5310
        %v5519 = vpop.f32.mrb[0].mxu0
        %v5520 = vadd.f32 %v5355, %v5519
        %v5521 = vpop.f32.mrb[0].mxu0
        %v5522 = vpop.f32.mrb[0].mxu0
        %v5523 = vadd.f32 %v5355, %v5522
        %v5524 = vpop.f32.mrb[0].mxu0
        %5525 = vmatprep.mubr.bf16.mxu0 %v5313
        %5526 = vmatmul.mubr.bf16.gmra.mrb[0].mxu0 %v5312
        %v5527 = vpop.f32.mrb[0].mxu0
        %v5528 = vadd.f32 %v5355, %v5527
        %v5529 = vpop.f32.mrb[0].mxu0
        %v5530 = vpop.f32.mrb[0].mxu0
        %v5531 = vadd.f32 %v5355, %v5530
        %v5532 = vpop.f32.mrb[0].mxu0
        %5533 = vmatprep.mubr.bf16.mxu0 %v5315
        %5534 = vmatmul.mubr.bf16.gmra.mrb[0].mxu0 %v5314
        %v5535 = vpop.f32.mrb[0].mxu0
        %v5536 = vadd.f32 %v5355, %v5535
        %v5537 = vpop.f32.mrb[0].mxu0
        %v5538 = vpop.f32.mrb[0].mxu0
        %v5539 = vadd.f32 %v5355, %v5538
        %v5540 = vpop.f32.mrb[0].mxu0
        %5541 = vmatprep.mubr.bf16.mxu0 %v5317
        %5542 = vmatmul.mubr.bf16.gmra.mrb[0].mxu0 %v5316
        %v5543 = vpop.f32.mrb[0].mxu0
        %v5544 = vadd.f32 %v5355, %v5543
        %v5545 = vpop.f32.mrb[0].mxu0
        %v5546 = vpop.f32.mrb[0].mxu0
        %v5547 = vadd.f32 %v5355, %v5546
        %v5548 = vpop.f32.mrb[0].mxu0
        %5549 = vdwg.mxu0
        %v5550 = vadd.f32 %v5025, %v5488
        %v5551 = vadd.f32 %v5026, %v5491
        %v5552 = vadd.f32 %v5027, %v5496
        %v5553 = vadd.f32 %v5028, %v5499
        %v5554 = vadd.f32 %v5029, %v5504
        %v5555 = vadd.f32 %v5030, %v5507
        %v5556 = vadd.f32 %v5031, %v5512
        %v5557 = vadd.f32 %v5032, %v5515
        %v5558 = vadd.f32 %v5033, %v5520
        %v5559 = vadd.f32 %v5034, %v5523
        %v5560 = vadd.f32 %v5035, %v5528
        %v5561 = vadd.f32 %v5036, %v5531
        %v5562 = vadd.f32 %v5037, %v5536
        %v5563 = vadd.f32 %v5038, %v5539
        %v5564 = vadd.f32 %v5039, %v5544
        %v5565 = vadd.f32 %v5040, %v5547
        %v5566 = vld [vmem:[%s901] sm:$0x1]
        %v5567 = vld [vmem:[%s904] sm:$0x1]
        %5568 = vadd.xlane.f32.xlu0 %v5550
        %v5569 = vpop.xlane.xlu0 %5568
        %5570 = vadd.xlane.f32.xlu0 %v5551
        %v5571 = vpop.xlane.xlu0 %5570
        %5572 = vadd.xlane.f32.xlu0 %v5552
        %v5573 = vpop.xlane.xlu0 %5572
        %5574 = vadd.xlane.f32.xlu0 %v5553
        %v5575 = vpop.xlane.xlu0 %5574
        %5576 = vadd.xlane.f32.xlu0 %v5554
        %v5577 = vpop.xlane.xlu0 %5576
        %5578 = vadd.xlane.f32.xlu0 %v5555
        %v5579 = vpop.xlane.xlu0 %5578
        %5580 = vadd.xlane.f32.xlu0 %v5556
        %v5581 = vpop.xlane.xlu0 %5580
        %5582 = vadd.xlane.f32.xlu0 %v5557
        %v5583 = vpop.xlane.xlu0 %5582
        %5584 = vadd.xlane.f32.xlu0 %v5558
        %v5585 = vpop.xlane.xlu0 %5584
        %5586 = vadd.xlane.f32.xlu0 %v5559
        %v5587 = vpop.xlane.xlu0 %5586
        %5588 = vadd.xlane.f32.xlu0 %v5560
        %v5589 = vpop.xlane.xlu0 %5588
        %5590 = vadd.xlane.f32.xlu0 %v5561
        %v5591 = vpop.xlane.xlu0 %5590
        %5592 = vadd.xlane.f32.xlu0 %v5562
        %v5593 = vpop.xlane.xlu0 %5592
        %5594 = vadd.xlane.f32.xlu0 %v5563
        %v5595 = vpop.xlane.xlu0 %5594
        %5596 = vadd.xlane.f32.xlu0 %v5564
        %v5597 = vpop.xlane.xlu0 %5596
        %5598 = vadd.xlane.f32.xlu0 %v5565
        %v5599 = vpop.xlane.xlu0 %5598
        %v5600 = vmul.f32 %v5569, %v4852
        %v5601 = vmul.f32 %v5571, %v4852
        %v5602 = vmul.f32 %v5573, %v4852
        %v5603 = vmul.f32 %v5575, %v4852
        %v5604 = vmul.f32 %v5577, %v4852
        %v5605 = vmul.f32 %v5579, %v4852
        %v5606 = vmul.f32 %v5581, %v4852
        %v5607 = vmul.f32 %v5583, %v4852
        %v5608 = vmul.f32 %v5585, %v4852
        %v5609 = vmul.f32 %v5587, %v4852
        %v5610 = vmul.f32 %v5589, %v4852
        %v5611 = vmul.f32 %v5591, %v4852
        %v5612 = vmul.f32 %v5593, %v4852
        %v5613 = vmul.f32 %v5595, %v4852
        %v5614 = vmul.f32 %v5597, %v4852
        %v5615 = vmul.f32 %v5599, %v4852
        %v5616 = vsub.f32 %v5550, %v5600
        %v5617 = vsub.f32 %v5551, %v5601
        %v5618 = vsub.f32 %v5552, %v5602
        %v5619 = vsub.f32 %v5553, %v5603
        %v5620 = vsub.f32 %v5554, %v5604
        %v5621 = vsub.f32 %v5555, %v5605
        %v5622 = vsub.f32 %v5556, %v5606
        %v5623 = vsub.f32 %v5557, %v5607
        %v5624 = vsub.f32 %v5558, %v5608
        %v5625 = vsub.f32 %v5559, %v5609
        %v5626 = vsub.f32 %v5560, %v5610
        %v5627 = vsub.f32 %v5561, %v5611
        %v5628 = vsub.f32 %v5562, %v5612
        %v5629 = vsub.f32 %v5563, %v5613
        %v5630 = vsub.f32 %v5564, %v5614
        %v5631 = vsub.f32 %v5565, %v5615
        %v5632 = vmul.f32 %v5616, %v5616
        %v5633 = vmul.f32 %v5617, %v5617
        %v5634 = vmul.f32 %v5618, %v5618
        %v5635 = vmul.f32 %v5619, %v5619
        %v5636 = vmul.f32 %v5620, %v5620
        %v5637 = vmul.f32 %v5621, %v5621
        %v5638 = vmul.f32 %v5622, %v5622
        %v5639 = vmul.f32 %v5623, %v5623
        %v5640 = vmul.f32 %v5624, %v5624
        %v5641 = vmul.f32 %v5625, %v5625
        %v5642 = vmul.f32 %v5626, %v5626
        %v5643 = vmul.f32 %v5627, %v5627
        %v5644 = vmul.f32 %v5628, %v5628
        %v5645 = vmul.f32 %v5629, %v5629
        %v5646 = vmul.f32 %v5630, %v5630
        %v5647 = vmul.f32 %v5631, %v5631
        %5648 = vadd.xlane.f32.xlu0 %v5632
        %v5649 = vpop.xlane.xlu0 %5648
        %5650 = vadd.xlane.f32.xlu0 %v5633
        %v5651 = vpop.xlane.xlu0 %5650
        %5652 = vadd.xlane.f32.xlu0 %v5634
        %v5653 = vpop.xlane.xlu0 %5652
        %5654 = vadd.xlane.f32.xlu0 %v5635
        %v5655 = vpop.xlane.xlu0 %5654
        %5656 = vadd.xlane.f32.xlu0 %v5636
        %v5657 = vpop.xlane.xlu0 %5656
        %5658 = vadd.xlane.f32.xlu0 %v5637
        %v5659 = vpop.xlane.xlu0 %5658
        %5660 = vadd.xlane.f32.xlu0 %v5638
        %v5661 = vpop.xlane.xlu0 %5660
        %5662 = vadd.xlane.f32.xlu0 %v5639
        %v5663 = vpop.xlane.xlu0 %5662
        %5664 = vadd.xlane.f32.xlu0 %v5640
        %v5665 = vpop.xlane.xlu0 %5664
        %5666 = vadd.xlane.f32.xlu0 %v5641
        %v5667 = vpop.xlane.xlu0 %5666
        %5668 = vadd.xlane.f32.xlu0 %v5642
        %v5669 = vpop.xlane.xlu0 %5668
        %5670 = vadd.xlane.f32.xlu0 %v5643
        %v5671 = vpop.xlane.xlu0 %5670
        %5672 = vadd.xlane.f32.xlu0 %v5644
        %v5673 = vpop.xlane.xlu0 %5672
        %5674 = vadd.xlane.f32.xlu0 %v5645
        %v5675 = vpop.xlane.xlu0 %5674
        %5676 = vadd.xlane.f32.xlu0 %v5646
        %v5677 = vpop.xlane.xlu0 %5676
        %5678 = vadd.xlane.f32.xlu0 %v5647
        %v5679 = vpop.xlane.xlu0 %5678
        %v5680 = vmul.f32 %v5649, %v4852
        %v5681 = vmul.f32 %v5651, %v4852
        %v5682 = vmul.f32 %v5653, %v4852
        %v5683 = vmul.f32 %v5655, %v4852
        %v5684 = vmul.f32 %v5657, %v4852
        %v5685 = vmul.f32 %v5659, %v4852
        %v5686 = vmul.f32 %v5661, %v4852
        %v5687 = vmul.f32 %v5663, %v4852
        %v5688 = vmul.f32 %v5665, %v4852
        %v5689 = vmul.f32 %v5667, %v4852
        %v5690 = vmul.f32 %v5669, %v4852
        %v5691 = vmul.f32 %v5671, %v4852
        %v5692 = vmul.f32 %v5673, %v4852
        %v5693 = vmul.f32 %v5675, %v4852
        %v5694 = vmul.f32 %v5677, %v4852
        %v5695 = vmul.f32 %v5679, %v4852
        %v5696 = vadd.f32 %v5680, 1e-06
        %v5697 = vadd.f32 %v5681, 1e-06
        %v5698 = vadd.f32 %v5682, 1e-06
        %v5699 = vadd.f32 %v5683, 1e-06
        %v5700 = vadd.f32 %v5684, 1e-06
        %v5701 = vadd.f32 %v5685, 1e-06
        %v5702 = vadd.f32 %v5686, 1e-06
        %v5703 = vadd.f32 %v5687, 1e-06
        %v5704 = vadd.f32 %v5688, 1e-06
        %v5705 = vadd.f32 %v5689, 1e-06
        %v5706 = vadd.f32 %v5690, 1e-06
        %v5707 = vadd.f32 %v5691, 1e-06
        %v5708 = vadd.f32 %v5692, 1e-06
        %v5709 = vadd.f32 %v5693, 1e-06
        %v5710 = vadd.f32 %v5694, 1e-06
        %v5711 = vadd.f32 %v5695, 1e-06
        %v5712 = vrsqrt.pop %v5696
        %v5713 = vrsqrt.pop %v5697
        %v5714 = vrsqrt.pop %v5698
        %v5715 = vrsqrt.pop %v5699
        %v5716 = vrsqrt.pop %v5700
        %v5717 = vrsqrt.pop %v5701
        %v5718 = vrsqrt.pop %v5702
        %v5719 = vrsqrt.pop %v5703
        %v5720 = vrsqrt.pop %v5704
        %v5721 = vrsqrt.pop %v5705
        %v5722 = vrsqrt.pop %v5706
        %v5723 = vrsqrt.pop %v5707
        %v5724 = vrsqrt.pop %v5708
        %v5725 = vrsqrt.pop %v5709
        %v5726 = vrsqrt.pop %v5710
        %v5727 = vrsqrt.pop %v5711
        %v5728 = vmul.f32 %v5616, %v5712
        %v5729 = vmul.f32 %v5617, %v5713
        %v5730 = vmul.f32 %v5618, %v5714
        %v5731 = vmul.f32 %v5619, %v5715
        %v5732 = vmul.f32 %v5620, %v5716
        %v5733 = vmul.f32 %v5621, %v5717
        %v5734 = vmul.f32 %v5622, %v5718
        %v5735 = vmul.f32 %v5623, %v5719
        %v5736 = vmul.f32 %v5624, %v5720
        %v5737 = vmul.f32 %v5625, %v5721
        %v5738 = vmul.f32 %v5626, %v5722
        %v5739 = vmul.f32 %v5627, %v5723
        %v5740 = vmul.f32 %v5628, %v5724
        %v5741 = vmul.f32 %v5629, %v5725
        %v5742 = vmul.f32 %v5630, %v5726
        %v5743 = vmul.f32 %v5631, %v5727
        %v5745 = vlaneseq
        %v5746 = vshrl.u32 %v5745, 7
        %v5747 = vsub.s32 0, %v5746
        %v5748 = vrot.slane %v5566, %v5747
        %v5750 = vmul.f32 %v5728, %v5748
        %v5751 = vmul.f32 %v5729, %v5748
        %v5752 = vmul.f32 %v5730, %v5748
        %v5753 = vmul.f32 %v5731, %v5748
        %v5754 = vmul.f32 %v5732, %v5748
        %v5755 = vmul.f32 %v5733, %v5748
        %v5756 = vmul.f32 %v5734, %v5748
        %v5757 = vmul.f32 %v5735, %v5748
        %v5758 = vmul.f32 %v5736, %v5748
        %v5759 = vmul.f32 %v5737, %v5748
        %v5760 = vmul.f32 %v5738, %v5748
        %v5761 = vmul.f32 %v5739, %v5748
        %v5762 = vmul.f32 %v5740, %v5748
        %v5763 = vmul.f32 %v5741, %v5748
        %v5764 = vmul.f32 %v5742, %v5748
        %v5765 = vmul.f32 %v5743, %v5748
        %v5767 = vlaneseq
        %v5768 = vshrl.u32 %v5767, 7
        %v5769 = vsub.s32 0, %v5768
        %v5770 = vrot.slane %v5567, %v5769
        %v5772 = vadd.f32 %v5750, %v5770
        %v5773 = vadd.f32 %v5751, %v5770
        %v5774 = vadd.f32 %v5752, %v5770
        %v5775 = vadd.f32 %v5753, %v5770
        %v5776 = vadd.f32 %v5754, %v5770
        %v5777 = vadd.f32 %v5755, %v5770
        %v5778 = vadd.f32 %v5756, %v5770
        %v5779 = vadd.f32 %v5757, %v5770
        %v5780 = vadd.f32 %v5758, %v5770
        %v5781 = vadd.f32 %v5759, %v5770
        %v5782 = vadd.f32 %v5760, %v5770
        %v5783 = vadd.f32 %v5761, %v5770
        %v5784 = vadd.f32 %v5762, %v5770
        %v5785 = vadd.f32 %v5763, %v5770
        %v5786 = vadd.f32 %v5764, %v5770
        %v5787 = vadd.f32 %v5765, %v5770
        %5788 = vst [vmem:[%s872] sm:$0xff] %v5772
        %5789 = vst [vmem:[%s872 + $0x8] sm:$0xff] %v5773
        %5790 = vst [vmem:[%s872 + $0x10] sm:$0xff] %v5774
        %5791 = vst [vmem:[%s872 + $0x18] sm:$0xff] %v5775
        %5792 = vst [vmem:[%s872 + $0x20] sm:$0xff] %v5776
        %5793 = vst [vmem:[%s872 + $0x28] sm:$0xff] %v5777
        %5794 = vst [vmem:[%s872 + $0x30] sm:$0xff] %v5778
        %5795 = vst [vmem:[%s872 + $0x38] sm:$0xff] %v5779
        %5796 = vst [vmem:[%s872 + $0x40] sm:$0xff] %v5780
        %5797 = vst [vmem:[%s872 + $0x48] sm:$0xff] %v5781
        %5798 = vst [vmem:[%s872 + $0x50] sm:$0xff] %v5782
        %5799 = vst [vmem:[%s872 + $0x58] sm:$0xff] %v5783
        %5800 = vst [vmem:[%s872 + $0x60] sm:$0xff] %v5784
        %5801 = vst [vmem:[%s872 + $0x68] sm:$0xff] %v5785
        %5802 = vst [vmem:[%s872 + $0x70] sm:$0xff] %v5786
        %5803 = vst [vmem:[%s872 + $0x78] sm:$0xff] %v5787
        %s5804 = sand.u32 %s483, 1
        %s5805 = scalar_lea.sflag [#allocation4], %s5804
        %s5806 = sand.u32 %s483, 1
        %s5807 = smul.addr %s5806, 128
        %s5808 = scalar_lea.vmem [#allocation14], %s5807
        // Predicated region
        $region125: #{tpu_custom_call.1} parent=87 // pred_check
          %p5809 = pneg %p493
        $region126: #{tpu_custom_call.1} parent=87 // pred_check_branch
          %5811 = sbr.rel (%p5809) target = $region128
        $region127: #{tpu_custom_call.1} parent=87 // pred_region
          %s5812 = smul.u32 16, %s40
          %s5814 = ssub.s32 2048, 2048
          %5815 = vsyncadd %s5805, %s5814
          %s5816 = smul.addr %s5812, 128
          %s5817 = scalar_lea.hbm %s17, %s5816
          %s5818 = sshll.u32 %s5808, 4
          %s5819 = int_to_ptr.vmem [resolvable:$true] %s5818
          %5824 = dma.vmem_to_hbm [thread:$0]  %s5819, 2048, %s5817, %s5805, 128, 128, 8
        $region128: #{tpu_custom_call.1} parent=87 // pred_fallthru
          _
      $region88: #{tpu_custom_call.1} parent=5 // pred_fallthru
        _
      %p5825 = scmp.le.s32.totalorder 2, %s31
      // Predicated region
      $region129: #{tpu_custom_call.1} parent=5 // pred_check
        %p5826 = pneg %p5825
      $region130: #{tpu_custom_call.1} parent=5 // pred_check_branch
        %5828 = sbr.rel (%p5826) target = $region132
      $region131: #{tpu_custom_call.1} parent=5 // pred_region
        %s5829 = ssub.s32 %s31, 2
        // Predicated region
        $region133: #{tpu_custom_call.1} parent=131 // pred_check
          %p5830 = pneg %p499
        $region134: #{tpu_custom_call.1} parent=131 // pred_check_branch
          %5832 = sbr.rel (%p5830) target = $region136
        $region135: #{tpu_custom_call.1} parent=131 // pred_region
          %s5833 = sand.u32 %s484, 1
          %s5834 = scalar_lea.sflag [#allocation4], %s5833
          %s5835 = sand.u32 %s484, 1
          %s5836 = smul.addr %s5835, 128
          %s5837 = scalar_lea.vmem [#allocation14], %s5836
          %5838 = dma.done %s5834, 2048
        $region136: #{tpu_custom_call.1} parent=131 // pred_fallthru
          _
      $region132: #{tpu_custom_call.1} parent=5 // pred_fallthru
        _
    $region6: #{tpu_custom_call.1} parent=1 // loop_footer
      %s35 = sadd.s32 1, %s31
    $region7: #{tpu_custom_call.1} parent=1 // loop_footer_branch
      %30 = sbr.rel target = $region3
    $region8: #{tpu_custom_call.1} parent=1 // loop_exit
      _
    %5839 = vsyncpa [#allocation3], 1
    %s5840 = scalar_lea.sflag [#allocation3], 1
    %5841 = vsyncpa %s5840, 1
    %5842 = vsyncpa [#allocation6], 1
    %5843 = vsyncpa [#allocation9], 1
    %5844 = vsyncpa [#allocation4], 1
    %s5845 = scalar_lea.sflag [#allocation4], 1
    %5846 = vsyncpa %s5845, 1

</llo_original>
